<compile_context>
chip_gen: v7x
topology: tpu7x:2x2x1
jax: 0.10.0
libtpu: 0.0.40
codegen_flags: <defaults>
</compile_context>

<pallas_src>
import jax
import jax.numpy as jnp
from jax.experimental import pallas as pl
from jax.experimental.pallas import tpu as pltpu


# ----------------------------------------------------------------------------
# config (scaled-down stand-in)
# ----------------------------------------------------------------------------
HEADS = {"ct_hm": 2, "wh": 2}          # snake-style heads
HEAD_ORDER = ("wh", "ct_hm")           # packing order inside fused head slabs
IN_CH = 3
BASE1_CH = 16
CNN_CH = 32                            # DLASeg output feature channels (scaled)
HEAD_CONV = 32                         # head_conv (scaled down from 256)
DOWN_RATIO = 4

LANE = 128                             # TPU lane width: output-channel padding
TM_MAX = 512                           # max rows per tile
TK_MAX = 512                           # max reduction tile

HEAD_OFFS = {}
_off = 0
for _h in HEAD_ORDER:
    HEAD_OFFS[_h] = (_off, _off + HEADS[_h])
    _off += HEADS[_h]
N_HEAD_CH = _off                       # total packed head channels (=4)


def _round_up(x, m):
    return (x + m - 1) // m * m


# ----------------------------------------------------------------------------
# Fused, tiled matmul + bias + epilogue Pallas kernel (the only kernel needed)
# ----------------------------------------------------------------------------

def _ep_none(acc):
    return acc


def _ep_relu(acc):
    return jnp.maximum(acc, 0.0)


def _ep_tanh(acc):
    return jnp.tanh(acc)


def _ep_sigmoid(acc):
    return jax.nn.sigmoid(acc)


def _ep_gru_update(acc_q, sz, h):
    # acc_q: q-gate pre-activation, sz: sigmoid(z) (already fused upstream),
    # h: previous hidden.  All math in f32 (v5e has no bf16 VPU/EUP).
    return (1.0 - sz) * h + sz * jnp.tanh(acc_q)


def _ep_residual(acc, base):
    return acc + base


def _make_mm_kernel(n_extra, epilogue):
    def kernel(*refs):
        x_ref, w_ref, b_ref = refs[0], refs[1], refs[2]
        extra_refs = refs[3:3 + n_extra]
        o_ref = refs[3 + n_extra]
        acc_ref = refs[4 + n_extra]

        @pl.when(pl.program_id(2) == 0)
        def _init():
            acc_ref[...] = jnp.zeros_like(acc_ref)

        # bf16 x bf16 -> f32 on the MXU, accumulated in VMEM scratch.
        acc_ref[...] += jnp.dot(x_ref[...], w_ref[...],
                                preferred_element_type=jnp.float32)

        @pl.when(pl.program_id(2) == pl.num_programs(2) - 1)
        def _finalize():
            acc = acc_ref[...] + b_ref[...]                 # f32 epilogue
            out = epilogue(acc, *[e[...] for e in extra_refs])
            o_ref[...] = out.astype(o_ref.dtype)            # lane-dense store

    return kernel


def fused_matmul(x2d, w2d, bias, extras=(), epilogue=_ep_none):
    """Tiled MXU matmul with fused bias + activation / elementwise epilogue.

    x2d   : (M, K)   activations (cast to bf16 for the MXU)
    w2d   : (Kp, Np) bf16 weight, K/N already lane-padded at init
    bias  : (1, Np)  f32
    extras: f32 (Mp, Np) slabs consumed elementwise by `epilogue` at finalize
    returns (Mp, Np) f32 padded output slab (caller slices real rows/lanes).
    """
    M, K = x2d.shape
    Kp, Np = w2d.shape
    assert K <= Kp and bias.shape == (1, Np)

    # ---- tile selection (double-buffered tiles stay ~2-3 MiB: v7x-safe) ----
    tm = _round_up(M, 8) if M <= TM_MAX else TM_MAX
    Mp = _round_up(M, tm)
    tn = LANE
    if Kp <= TK_MAX:
        tk = Kp
    else:
        tk = TK_MAX if Kp % TK_MAX == 0 else (256 if Kp % 256 == 0 else 128)
    nk = Kp // tk

    # ---- pad operands (weight/bias already padded once at init) ----
    xp = jnp.pad(x2d.astype(jnp.bfloat16), ((0, Mp - M), (0, Kp - K)))
    exs = tuple(
        jnp.pad(e.astype(jnp.float32),
                ((0, Mp - e.shape[0]), (0, Np - e.shape[1])))
        for e in extras)

    grid = (Mp // tm, Np // tn, nk)
    kernel = _make_mm_kernel(len(exs), epilogue)

    in_specs = [
        pl.BlockSpec((tm, tk), lambda i, j, k: (i, k)),      # activations
        pl.BlockSpec((tk, tn), lambda i, j, k: (k, j)),      # weight
        pl.BlockSpec((1, tn), lambda i, j, k: (0, j)),       # bias
    ] + [pl.BlockSpec((tm, tn), lambda i, j, k: (i, j)) for _ in exs]

    cost = pl.CostEstimate(
        flops=2 * Mp * Np * Kp,
        transcendentals=Mp * Np,
        bytes_accessed=(Mp * Kp + Kp * Np) * 2 + Mp * Np * 4 * (1 + len(exs)),
    )

    return pl.pallas_call(
        kernel,
        out_shape=jax.ShapeDtypeStruct((Mp, Np), jnp.float32),
        grid_spec=pltpu.PrefetchScalarGridSpec(
            num_scalar_prefetch=0,
            grid=grid,
            in_specs=in_specs,
            out_specs=pl.BlockSpec((tm, tn), lambda i, j, k: (i, j)),
            scratch_shapes=[pltpu.VMEM((tm, tn), jnp.float32)],
        ),
        compiler_params=pltpu.CompilerParams(
            dimension_semantics=("parallel", "parallel", "arbitrary"),
            vmem_limit_bytes=32 * 1024 * 1024,
        ),
        cost_estimate=cost,
    )(xp, w2d, bias, *exs)


# ----------------------------------------------------------------------------
# im2col glue (bf16) for the 3x3 convs
# ----------------------------------------------------------------------------

def _im2col(x_nhwc, kh, kw, stride, pad):
    # TODO(synk): replace HBM-materialized im2col with a streaming tap-wise
    #             conv kernel; built in bf16 and shared across fused gate/head
    #             matmuls to cut its traffic in the meantime.
    x = jnp.pad(x_nhwc.astype(jnp.bfloat16),
                ((0, 0), (pad, pad), (pad, pad), (0, 0)))
    n, h, w, c = x.shape
    oh = (h - kh) // stride + 1
    ow = (w - kw) // stride + 1
    taps = []
    for i in range(kh):
        for j in range(kw):
            taps.append(x[:, i:i + oh * stride:stride,
                          j:j + ow * stride:stride, :])
    cols = jnp.concatenate(taps, axis=-1)            # (n, oh, ow, kh*kw*c)
    return cols.reshape(n * oh * ow, kh * kw * c), (n, oh, ow)


# ----------------------------------------------------------------------------
# Parameters: PyTorch-style OIHW init, then fused/padded/bf16 matmul weights
# ----------------------------------------------------------------------------

def _conv_param(key, oc, ic, k):
    kw_, kb_ = jax.random.split(key)
    w = 0.1 * jax.random.normal(kw_, (oc, ic, k, k), jnp.float32)
    b = 0.01 * jax.random.normal(kb_, (oc,), jnp.float32)
    return {"w": w, "b": b}


def init_params(seed=1):
    key = jax.random.PRNGKey(seed)
    keys = jax.random.split(key, 16)
    p = {
        # DLASeg-like backbone (down_ratio = 4 via two stride-2 convs)
        "base1": _conv_param(keys[0], BASE1_CH, IN_CH, 3),
        "base2": _conv_param(keys[1], CNN_CH, BASE1_CH, 3),
        "heads": {},
        # RAFT-like refinement
        "raft_hidden": _conv_param(keys[2], CNN_CH, CNN_CH, 1),
        "raft_motion": _conv_param(keys[3], CNN_CH, sum(HEADS.values()), 1),
        "raft_gru_z": _conv_param(keys[4], CNN_CH, 2 * CNN_CH, 3),
        "raft_gru_r": _conv_param(keys[5], CNN_CH, 2 * CNN_CH, 3),
        "raft_gru_q": _conv_param(keys[6], CNN_CH, 2 * CNN_CH, 3),
        "raft_delta": _conv_param(keys[7], HEADS["wh"], CNN_CH, 3),
    }
    hkeys = jax.random.split(keys[8], 2 * len(HEADS))
    for i, (name, out_ch) in enumerate(HEADS.items()):
        p["heads"][name] = {
            "c0": _conv_param(hkeys[2 * i], HEAD_CONV, CNN_CH, 3),
            "c1": _conv_param(hkeys[2 * i + 1], out_ch, HEAD_CONV, 1),
        }
    return p


def _im2col_weight(w_oihw):
    """OIHW conv weight -> (kh*kw*ic, oc) im2col-layout matrix."""
    oc, ic, kh, kw = w_oihw.shape
    return jnp.transpose(w_oihw, (2, 3, 1, 0)).reshape(kh * kw * ic, oc)


def _pad_mm(w2d, b, kp=None):
    """Pad to lane-aligned (Kp, Np) bf16 weight and (1, Np) f32 bias."""
    k, n = w2d.shape
    kp = _round_up(k, LANE) if kp is None else kp
    np_ = _round_up(n, LANE)
    w = jnp.pad(w2d, ((0, kp - k), (0, np_ - n))).astype(jnp.bfloat16)
    bb = jnp.pad(b, (0, np_ - n)).reshape(1, np_).astype(jnp.float32)
    return w, bb


def prepare_params(p):
    """Fuse, im2col-reorder, lane-pad and bf16-cast weights once (off hot path)."""
    q = {}
    q["base1"] = _pad_mm(_im2col_weight(p["base1"]["w"]), p["base1"]["b"])
    q["base2"] = _pad_mm(_im2col_weight(p["base2"]["w"]), p["base2"]["b"])

    # Heads: fuse the two 3x3 c0 convs (shared cnn_feature input) into one
    # matmul and the two 1x1 c1 convs into one block-diagonal matmul that
    # consumes the packed c0 slab directly (K = 128 lanes).
    w_c0 = jnp.concatenate(
        [_im2col_weight(p["heads"][h]["c0"]["w"]) for h in HEAD_ORDER], axis=1)
    b_c0 = jnp.concatenate([p["heads"][h]["c0"]["b"] for h in HEAD_ORDER])
    q["head_c0"] = _pad_mm(w_c0, b_c0)

    w_c1 = jnp.zeros((LANE, N_HEAD_CH), jnp.float32)
    b_c1 = jnp.zeros((N_HEAD_CH,), jnp.float32)
    for idx, h in enumerate(HEAD_ORDER):
        lo, hi = HEAD_OFFS[h]
        wi = _im2col_weight(p["heads"][h]["c1"]["w"])        # (HEAD_CONV, oc_h)
        w_c1 = w_c1.at[idx * HEAD_CONV:(idx + 1) * HEAD_CONV, lo:hi].set(wi)
        b_c1 = b_c1.at[lo:hi].set(p["heads"][h]["c1"]["b"])
    q["head_c1"] = _pad_mm(w_c1, b_c1, kp=LANE)

    # RAFT 1x1 convs consume the lane-padded slabs directly (K = 128).
    q["raft_hidden"] = _pad_mm(_im2col_weight(p["raft_hidden"]["w"]),
                               p["raft_hidden"]["b"], kp=LANE)
    q["raft_motion"] = _pad_mm(_im2col_weight(p["raft_motion"]["w"]),
                               p["raft_motion"]["b"], kp=LANE)

    # GRU: fuse z and r gates (same 3x3 window over `inp`) -> [z | r] channels.
    w_zr = jnp.concatenate([_im2col_weight(p["raft_gru_z"]["w"]),
                            _im2col_weight(p["raft_gru_r"]["w"])], axis=1)
    b_zr = jnp.concatenate([p["raft_gru_z"]["b"], p["raft_gru_r"]["b"]])
    q["raft_gru_zr"] = _pad_mm(w_zr, b_zr)
    q["raft_gru_q"] = _pad_mm(_im2col_weight(p["raft_gru_q"]["w"]),
                              p["raft_gru_q"]["b"])
    q["raft_delta"] = _pad_mm(_im2col_weight(p["raft_delta"]["w"]),
                              p["raft_delta"]["b"])
    return q


# ----------------------------------------------------------------------------
# Forward pass (mirrors Network.forward)
# ----------------------------------------------------------------------------

def dla_seg(q, x_nhwc):
    """Backbone + heads.  Returns the packed head slab, the cnn_feature slab
    (lane-padded, used directly by the 1x1 RAFT convs), the NHWC cnn_feature
    and the spatial dims."""
    # down_ratio = 4 via two stride-2 3x3 convs, ReLU fused in the epilogue.
    cols, (n, h2, w2) = _im2col(x_nhwc, 3, 3, 2, 1)
    f1_p = fused_matmul(cols, *q["base1"], epilogue=_ep_relu)
    f1 = f1_p[:n * h2 * w2, :BASE1_CH].reshape(n, h2, w2, BASE1_CH)

    cols, (n, oh, ow) = _im2col(f1, 3, 3, 2, 1)
    cnn_p = fused_matmul(cols, *q["base2"], epilogue=_ep_relu)
    m = n * oh * ow
    cnn = cnn_p[:m, :CNN_CH].reshape(n, oh, ow, CNN_CH)

    # heads: one fused conv3x3+ReLU for both heads, then one fused 1x1.
    cols, _ = _im2col(cnn, 3, 3, 1, 1)
    hfeat_p = fused_matmul(cols, *q["head_c0"], epilogue=_ep_relu)
    head_p = fused_matmul(hfeat_p, *q["head_c1"], epilogue=_ep_none)
    return head_p, cnn_p, cnn, (n, oh, ow, m)


def raft(q, head_p, cnn_p, dims, batch=None):
    n, oh, ow, m = dims

    # hidden / motion: 1x1 convs reading the lane-padded slabs directly.
    hidden_p = fused_matmul(cnn_p, *q["raft_hidden"], epilogue=_ep_tanh)
    motion_p = fused_matmul(head_p, *q["raft_motion"], epilogue=_ep_relu)

    hidden = hidden_p[:m, :CNN_CH].reshape(n, oh, ow, CNN_CH)
    motion = motion_p[:m, :CNN_CH].reshape(n, oh, ow, CNN_CH)

    # fused z|r gate conv; the sigmoid is applied in the matmul epilogue.
    inp = jnp.concatenate([hidden, motion], axis=-1)
    cols, _ = _im2col(inp, 3, 3, 1, 1)
    szr_p = fused_matmul(cols, *q["raft_gru_zr"], epilogue=_ep_sigmoid)

    # r-gate: rh = sigmoid(r) * hidden (cheap glue multiply, fuses into the
    # q_in im2col construction; the transcendental was done on the MXU pass).
    rh = (szr_p[:m, CNN_CH:2 * CNN_CH] * hidden_p[:m, :CNN_CH]
          ).reshape(n, oh, ow, CNN_CH)

    # q-gate conv with the GRU state update fused into its epilogue:
    #   h' = (1 - sigmoid(z)) * h + sigmoid(z) * tanh(q_pre)
    q_in = jnp.concatenate([rh, motion], axis=-1)
    cols, _ = _im2col(q_in, 3, 3, 1, 1)
    newh_p = fused_matmul(cols, *q["raft_gru_q"],
                          extras=(szr_p, hidden_p), epilogue=_ep_gru_update)

    # delta conv with the 'wh' residual add fused into the epilogue. The delta
    # weights are zero outside lanes [0:2], so the packed head slab rides
    # through untouched and the result slab already holds the final ct_hm.
    new_hidden = newh_p[:m, :CNN_CH].reshape(n, oh, ow, CNN_CH)
    cols, _ = _im2col(new_hidden, 3, 3, 1, 1)
    out_p = fused_matmul(cols, *q["raft_delta"],
                         extras=(head_p,), epilogue=_ep_residual)

    output = {}
    for hname, (lo, hi) in HEAD_OFFS.items():
        output[hname] = out_p[:m, lo:hi].reshape(n, oh, ow, hi - lo)
    return output


def network_forward(mm_params, x_nchw, batch=None):
    # NCHW (PyTorch convention) -> NHWC for the TPU kernels.
    x_nhwc = jnp.transpose(x_nchw, (0, 2, 3, 1)).astype(jnp.float32)
    head_p, cnn_p, _cnn_feature, dims = dla_seg(mm_params, x_nhwc)
    output = raft(mm_params, head_p, cnn_p, dims, batch)
    # back to NCHW for the caller.
    return {k: jnp.transpose(v, (0, 3, 1, 2)) for k, v in output.items()}


# ----------------------------------------------------------------------------

if __name__ == "__main__":
    key = jax.random.PRNGKey(0)
    x = jax.random.normal(key, (2, IN_CH, 16, 16), jnp.float32)   # NCHW input

    params = init_params(seed=1)
    mm_params = prepare_params(params)     # fused / padded / bf16, off hot path

    out = jax.jit(network_forward)(mm_params, x)
    out = jax.tree_util.tree_map(jax.block_until_ready, out)

    s = 16 // DOWN_RATIO
    assert out["ct_hm"].shape == (2, HEADS["ct_hm"], s, s), out["ct_hm"].shape
    assert out["wh"].shape == (2, HEADS["wh"], s, s), out["wh"].shape
    assert all(bool(jnp.all(jnp.isfinite(v))) for v in out.values())
    print("KERNEL_OK")
</pallas_src>

<mosaic_0001>
module attributes {stable_mosaic.version = 11 : i64} {
  func.func @kernel(%arg0: i32, %arg1: i32, %arg2: i32, %arg3: memref<128x128xbf16, #tpu.memory_space<vmem>>, %arg4: memref<128x128xbf16, #tpu.memory_space<vmem>>, %arg5: memref<1x128xf32, #tpu.memory_space<vmem>>, %arg6: memref<128x128xf32, #tpu.memory_space<vmem>>, %arg7: memref<128x128xf32, #tpu.memory_space<vmem>>) attributes {dimension_semantics = [#tpu.dimension_semantics<parallel>, #tpu.dimension_semantics<parallel>, #tpu.dimension_semantics<arbitrary>], iteration_bounds = array<i64: 1, 1, 1>, scalar_prefetch = 0 : i64, scratch_operands = 1 : i64, tpu.core_type = #tpu.core_type<tc>, window_params = [{transform_indices = @transform_0, window_bounds = array<i64: 128, 128>}, {transform_indices = @transform_1, window_bounds = array<i64: 128, 128>}, {transform_indices = @transform_2, window_bounds = array<i64: 1, 128>}, {transform_indices = @transform_3, window_bounds = array<i64: 128, 128>}]} {
    %c0_i32 = arith.constant 0 : i32
    %0 = arith.cmpi eq, %arg2, %c0_i32 : i32
    %1 = arith.extui %0 : i1 to i32
    %c0_i32_0 = arith.constant 0 : i32
    %2 = arith.cmpi ne, %1, %c0_i32_0 : i32
    scf.if %2 {
      %cst_10 = arith.constant 0.000000e+00 : f32
      %12 = vector.broadcast %cst_10 : f32 to vector<128x128xf32>
      %c0_11 = arith.constant 0 : index
      %c0_12 = arith.constant 0 : index
      %13 = vector.load %arg7[%c0_11, %c0_12] : memref<128x128xf32, #tpu.memory_space<vmem>>, vector<128x128xf32>
      tpu.vector_store %arg7[%c0_11, %c0_12], %12 {strides = array<i32>} : memref<128x128xf32, #tpu.memory_space<vmem>>, vector<128x128xf32>,
    } else {
    }
    %c0 = arith.constant 0 : index
    %c0_1 = arith.constant 0 : index
    %3 = vector.load %arg7[%c0, %c0_1] : memref<128x128xf32, #tpu.memory_space<vmem>>, vector<128x128xf32>
    %c0_2 = arith.constant 0 : index
    %c0_3 = arith.constant 0 : index
    %4 = vector.load %arg3[%c0_2, %c0_3] : memref<128x128xbf16, #tpu.memory_space<vmem>>, vector<128x128xbf16>
    %c0_4 = arith.constant 0 : index
    %c0_5 = arith.constant 0 : index
    %5 = vector.load %arg4[%c0_4, %c0_5] : memref<128x128xbf16, #tpu.memory_space<vmem>>, vector<128x128xbf16>
    %cst = arith.constant dense<0.000000e+00> : vector<128x128xf32>
    %6 = tpu.matmul %4, %5, %cst {dimension_numbers = #tpu.dot_dimension_numbers<[1], [0], [0], [1], [0, 0, 1, 1], [], []>} : vector<128x128xbf16>, vector<128x128xbf16>, vector<128x128xf32> -> vector<128x128xf32>
    %7 = arith.addf %3, %6 : vector<128x128xf32>
    %c0_6 = arith.constant 0 : index
    %c0_7 = arith.constant 0 : index
    %8 = vector.load %arg7[%c0_6, %c0_7] : memref<128x128xf32, #tpu.memory_space<vmem>>, vector<128x128xf32>
    tpu.vector_store %arg7[%c0_6, %c0_7], %7 {strides = array<i32>} : memref<128x128xf32, #tpu.memory_space<vmem>>, vector<128x128xf32>,
    %c0_i32_8 = arith.constant 0 : i32
    %9 = arith.cmpi eq, %arg2, %c0_i32_8 : i32
    %10 = arith.extui %9 : i1 to i32
    %c0_i32_9 = arith.constant 0 : i32
    %11 = arith.cmpi ne, %10, %c0_i32_9 : i32
    scf.if %11 {
      %c0_10 = arith.constant 0 : index
      %c0_11 = arith.constant 0 : index
      %12 = vector.load %arg7[%c0_10, %c0_11] : memref<128x128xf32, #tpu.memory_space<vmem>>, vector<128x128xf32>
      %c0_12 = arith.constant 0 : index
      %c0_13 = arith.constant 0 : index
      %13 = vector.load %arg5[%c0_12, %c0_13] : memref<1x128xf32, #tpu.memory_space<vmem>>, vector<1x128xf32>
      %14 = vector.broadcast %13 : vector<1x128xf32> to vector<128x128xf32>
      %15 = arith.addf %12, %14 : vector<128x128xf32>
      %cst_14 = arith.constant 0.000000e+00 : f32
      %16 = vector.broadcast %cst_14 : f32 to vector<128x128xf32>
      %17 = arith.maximumf %15, %16 : vector<128x128xf32>
      %c0_15 = arith.constant 0 : index
      %c0_16 = arith.constant 0 : index
      %18 = vector.load %arg6[%c0_15, %c0_16] : memref<128x128xf32, #tpu.memory_space<vmem>>, vector<128x128xf32>
      tpu.vector_store %arg6[%c0_15, %c0_16], %17 {strides = array<i32>} : memref<128x128xf32, #tpu.memory_space<vmem>>, vector<128x128xf32>,
    } else {
    }
    return
  }
  func.func @transform_0(%arg0: i32, %arg1: i32, %arg2: i32) -> (i32, i32) {
    %c0_i32 = arith.constant 0 : i32
    return %arg0, %arg2 : i32, i32
  }
  func.func @transform_1(%arg0: i32, %arg1: i32, %arg2: i32) -> (i32, i32) {
    %c0_i32 = arith.constant 0 : i32
    return %arg2, %arg1 : i32, i32
  }
  func.func @transform_2(%arg0: i32, %arg1: i32, %arg2: i32) -> (i32, i32) {
    %c0_i32 = arith.constant 0 : i32
    %c0_i32_0 = arith.constant 0 : i32
    return %c0_i32, %arg1 : i32, i32
  }
  func.func @transform_3(%arg0: i32, %arg1: i32, %arg2: i32) -> (i32, i32) {
    %c0_i32 = arith.constant 0 : i32
    return %arg0, %arg1 : i32, i32
  }
}

module attributes {stable_mosaic.version = 11 : i64} {
  func.func @kernel(%arg0: i32, %arg1: i32, %arg2: i32, %arg3: memref<32x256xbf16, #tpu.memory_space<vmem>>, %arg4: memref<256x128xbf16, #tpu.memory_space<vmem>>, %arg5: memref<1x128xf32, #tpu.memory_space<vmem>>, %arg6: memref<32x128xf32, #tpu.memory_space<vmem>>, %arg7: memref<32x128xf32, #tpu.memory_space<vmem>>) attributes {dimension_semantics = [#tpu.dimension_semantics<parallel>, #tpu.dimension_semantics<parallel>, #tpu.dimension_semantics<arbitrary>], iteration_bounds = array<i64: 1, 1, 1>, scalar_prefetch = 0 : i64, scratch_operands = 1 : i64, tpu.core_type = #tpu.core_type<tc>, window_params = [{transform_indices = @transform_0, window_bounds = array<i64: 32, 256>}, {transform_indices = @transform_1, window_bounds = array<i64: 256, 128>}, {transform_indices = @transform_2, window_bounds = array<i64: 1, 128>}, {transform_indices = @transform_3, window_bounds = array<i64: 32, 128>}]} {
    %c0_i32 = arith.constant 0 : i32
    %0 = arith.cmpi eq, %arg2, %c0_i32 : i32
    %1 = arith.extui %0 : i1 to i32
    %c0_i32_0 = arith.constant 0 : i32
    %2 = arith.cmpi ne, %1, %c0_i32_0 : i32
    scf.if %2 {
      %cst_10 = arith.constant 0.000000e+00 : f32
      %12 = vector.broadcast %cst_10 : f32 to vector<32x128xf32>
      %c0_11 = arith.constant 0 : index
      %c0_12 = arith.constant 0 : index
      %13 = vector.load %arg7[%c0_11, %c0_12] : memref<32x128xf32, #tpu.memory_space<vmem>>, vector<32x128xf32>
      tpu.vector_store %arg7[%c0_11, %c0_12], %12 {strides = array<i32>} : memref<32x128xf32, #tpu.memory_space<vmem>>, vector<32x128xf32>,
    } else {
    }
    %c0 = arith.constant 0 : index
    %c0_1 = arith.constant 0 : index
    %3 = vector.load %arg7[%c0, %c0_1] : memref<32x128xf32, #tpu.memory_space<vmem>>, vector<32x128xf32>
    %c0_2 = arith.constant 0 : index
    %c0_3 = arith.constant 0 : index
    %4 = vector.load %arg3[%c0_2, %c0_3] : memref<32x256xbf16, #tpu.memory_space<vmem>>, vector<32x256xbf16>
    %c0_4 = arith.constant 0 : index
    %c0_5 = arith.constant 0 : index
    %5 = vector.load %arg4[%c0_4, %c0_5] : memref<256x128xbf16, #tpu.memory_space<vmem>>, vector<256x128xbf16>
    %cst = arith.constant dense<0.000000e+00> : vector<32x128xf32>
    %6 = tpu.matmul %4, %5, %cst {dimension_numbers = #tpu.dot_dimension_numbers<[1], [0], [0], [1], [0, 0, 1, 1], [], []>} : vector<32x256xbf16>, vector<256x128xbf16>, vector<32x128xf32> -> vector<32x128xf32>
    %7 = arith.addf %3, %6 : vector<32x128xf32>
    %c0_6 = arith.constant 0 : index
    %c0_7 = arith.constant 0 : index
    %8 = vector.load %arg7[%c0_6, %c0_7] : memref<32x128xf32, #tpu.memory_space<vmem>>, vector<32x128xf32>
    tpu.vector_store %arg7[%c0_6, %c0_7], %7 {strides = array<i32>} : memref<32x128xf32, #tpu.memory_space<vmem>>, vector<32x128xf32>,
    %c0_i32_8 = arith.constant 0 : i32
    %9 = arith.cmpi eq, %arg2, %c0_i32_8 : i32
    %10 = arith.extui %9 : i1 to i32
    %c0_i32_9 = arith.constant 0 : i32
    %11 = arith.cmpi ne, %10, %c0_i32_9 : i32
    scf.if %11 {
      %c0_10 = arith.constant 0 : index
      %c0_11 = arith.constant 0 : index
      %12 = vector.load %arg7[%c0_10, %c0_11] : memref<32x128xf32, #tpu.memory_space<vmem>>, vector<32x128xf32>
      %c0_12 = arith.constant 0 : index
      %c0_13 = arith.constant 0 : index
      %13 = vector.load %arg5[%c0_12, %c0_13] : memref<1x128xf32, #tpu.memory_space<vmem>>, vector<1x128xf32>
      %14 = vector.broadcast %13 : vector<1x128xf32> to vector<32x128xf32>
      %15 = arith.addf %12, %14 : vector<32x128xf32>
      %cst_14 = arith.constant 0.000000e+00 : f32
      %16 = vector.broadcast %cst_14 : f32 to vector<32x128xf32>
      %17 = arith.maximumf %15, %16 : vector<32x128xf32>
      %c0_15 = arith.constant 0 : index
      %c0_16 = arith.constant 0 : index
      %18 = vector.load %arg6[%c0_15, %c0_16] : memref<32x128xf32, #tpu.memory_space<vmem>>, vector<32x128xf32>
      tpu.vector_store %arg6[%c0_15, %c0_16], %17 {strides = array<i32>} : memref<32x128xf32, #tpu.memory_space<vmem>>, vector<32x128xf32>,
    } else {
    }
    return
  }
  func.func @transform_0(%arg0: i32, %arg1: i32, %arg2: i32) -> (i32, i32) {
    %c0_i32 = arith.constant 0 : i32
    return %arg0, %arg2 : i32, i32
  }
  func.func @transform_1(%arg0: i32, %arg1: i32, %arg2: i32) -> (i32, i32) {
    %c0_i32 = arith.constant 0 : i32
    return %arg2, %arg1 : i32, i32
  }
  func.func @transform_2(%arg0: i32, %arg1: i32, %arg2: i32) -> (i32, i32) {
    %c0_i32 = arith.constant 0 : i32
    %c0_i32_0 = arith.constant 0 : i32
    return %c0_i32, %arg1 : i32, i32
  }
  func.func @transform_3(%arg0: i32, %arg1: i32, %arg2: i32) -> (i32, i32) {
    %c0_i32 = arith.constant 0 : i32
    return %arg0, %arg1 : i32, i32
  }
}

module attributes {stable_mosaic.version = 11 : i64} {
  func.func @kernel(%arg0: i32, %arg1: i32, %arg2: i32, %arg3: memref<32x128xbf16, #tpu.memory_space<vmem>>, %arg4: memref<128x128xbf16, #tpu.memory_space<vmem>>, %arg5: memref<1x128xf32, #tpu.memory_space<vmem>>, %arg6: memref<32x128xf32, #tpu.memory_space<vmem>>, %arg7: memref<32x128xf32, #tpu.memory_space<vmem>>) attributes {dimension_semantics = [#tpu.dimension_semantics<parallel>, #tpu.dimension_semantics<parallel>, #tpu.dimension_semantics<arbitrary>], iteration_bounds = array<i64: 1, 1, 1>, scalar_prefetch = 0 : i64, scratch_operands = 1 : i64, tpu.core_type = #tpu.core_type<tc>, window_params = [{transform_indices = @transform_0, window_bounds = array<i64: 32, 128>}, {transform_indices = @transform_1, window_bounds = array<i64: 128, 128>}, {transform_indices = @transform_2, window_bounds = array<i64: 1, 128>}, {transform_indices = @transform_3, window_bounds = array<i64: 32, 128>}]} {
    %c0_i32 = arith.constant 0 : i32
    %0 = arith.cmpi eq, %arg2, %c0_i32 : i32
    %1 = arith.extui %0 : i1 to i32
    %c0_i32_0 = arith.constant 0 : i32
    %2 = arith.cmpi ne, %1, %c0_i32_0 : i32
    scf.if %2 {
      %cst_10 = arith.constant 0.000000e+00 : f32
      %12 = vector.broadcast %cst_10 : f32 to vector<32x128xf32>
      %c0_11 = arith.constant 0 : index
      %c0_12 = arith.constant 0 : index
      %13 = vector.load %arg7[%c0_11, %c0_12] : memref<32x128xf32, #tpu.memory_space<vmem>>, vector<32x128xf32>
      tpu.vector_store %arg7[%c0_11, %c0_12], %12 {strides = array<i32>} : memref<32x128xf32, #tpu.memory_space<vmem>>, vector<32x128xf32>,
    } else {
    }
    %c0 = arith.constant 0 : index
    %c0_1 = arith.constant 0 : index
    %3 = vector.load %arg7[%c0, %c0_1] : memref<32x128xf32, #tpu.memory_space<vmem>>, vector<32x128xf32>
    %c0_2 = arith.constant 0 : index
    %c0_3 = arith.constant 0 : index
    %4 = vector.load %arg3[%c0_2, %c0_3] : memref<32x128xbf16, #tpu.memory_space<vmem>>, vector<32x128xbf16>
    %c0_4 = arith.constant 0 : index
    %c0_5 = arith.constant 0 : index
    %5 = vector.load %arg4[%c0_4, %c0_5] : memref<128x128xbf16, #tpu.memory_space<vmem>>, vector<128x128xbf16>
    %cst = arith.constant dense<0.000000e+00> : vector<32x128xf32>
    %6 = tpu.matmul %4, %5, %cst {dimension_numbers = #tpu.dot_dimension_numbers<[1], [0], [0], [1], [0, 0, 1, 1], [], []>} : vector<32x128xbf16>, vector<128x128xbf16>, vector<32x128xf32> -> vector<32x128xf32>
    %7 = arith.addf %3, %6 : vector<32x128xf32>
    %c0_6 = arith.constant 0 : index
    %c0_7 = arith.constant 0 : index
    %8 = vector.load %arg7[%c0_6, %c0_7] : memref<32x128xf32, #tpu.memory_space<vmem>>, vector<32x128xf32>
    tpu.vector_store %arg7[%c0_6, %c0_7], %7 {strides = array<i32>} : memref<32x128xf32, #tpu.memory_space<vmem>>, vector<32x128xf32>,
    %c0_i32_8 = arith.constant 0 : i32
    %9 = arith.cmpi eq, %arg2, %c0_i32_8 : i32
    %10 = arith.extui %9 : i1 to i32
    %c0_i32_9 = arith.constant 0 : i32
    %11 = arith.cmpi ne, %10, %c0_i32_9 : i32
    scf.if %11 {
      %c0_10 = arith.constant 0 : index
      %c0_11 = arith.constant 0 : index
      %12 = vector.load %arg7[%c0_10, %c0_11] : memref<32x128xf32, #tpu.memory_space<vmem>>, vector<32x128xf32>
      %c0_12 = arith.constant 0 : index
      %c0_13 = arith.constant 0 : index
      %13 = vector.load %arg5[%c0_12, %c0_13] : memref<1x128xf32, #tpu.memory_space<vmem>>, vector<1x128xf32>
      %14 = vector.broadcast %13 : vector<1x128xf32> to vector<32x128xf32>
      %15 = arith.addf %12, %14 : vector<32x128xf32>
      %16 = math.tanh %15 : vector<32x128xf32>
      %c0_14 = arith.constant 0 : index
      %c0_15 = arith.constant 0 : index
      %17 = vector.load %arg6[%c0_14, %c0_15] : memref<32x128xf32, #tpu.memory_space<vmem>>, vector<32x128xf32>
      tpu.vector_store %arg6[%c0_14, %c0_15], %16 {strides = array<i32>} : memref<32x128xf32, #tpu.memory_space<vmem>>, vector<32x128xf32>,
    } else {
    }
    return
  }
  func.func @transform_0(%arg0: i32, %arg1: i32, %arg2: i32) -> (i32, i32) {
    %c0_i32 = arith.constant 0 : i32
    return %arg0, %arg2 : i32, i32
  }
  func.func @transform_1(%arg0: i32, %arg1: i32, %arg2: i32) -> (i32, i32) {
    %c0_i32 = arith.constant 0 : i32
    return %arg2, %arg1 : i32, i32
  }
  func.func @transform_2(%arg0: i32, %arg1: i32, %arg2: i32) -> (i32, i32) {
    %c0_i32 = arith.constant 0 : i32
    %c0_i32_0 = arith.constant 0 : i32
    return %c0_i32, %arg1 : i32, i32
  }
  func.func @transform_3(%arg0: i32, %arg1: i32, %arg2: i32) -> (i32, i32) {
    %c0_i32 = arith.constant 0 : i32
    return %arg0, %arg1 : i32, i32
  }
}

module attributes {stable_mosaic.version = 11 : i64} {
  func.func @kernel(%arg0: i32, %arg1: i32, %arg2: i32, %arg3: memref<32x128xbf16, #tpu.memory_space<vmem>>, %arg4: memref<128x128xbf16, #tpu.memory_space<vmem>>, %arg5: memref<1x128xf32, #tpu.memory_space<vmem>>, %arg6: memref<32x128xf32, #tpu.memory_space<vmem>>, %arg7: memref<32x128xf32, #tpu.memory_space<vmem>>) attributes {dimension_semantics = [#tpu.dimension_semantics<parallel>, #tpu.dimension_semantics<parallel>, #tpu.dimension_semantics<arbitrary>], iteration_bounds = array<i64: 1, 1, 1>, scalar_prefetch = 0 : i64, scratch_operands = 1 : i64, tpu.core_type = #tpu.core_type<tc>, window_params = [{transform_indices = @transform_0, window_bounds = array<i64: 32, 128>}, {transform_indices = @transform_1, window_bounds = array<i64: 128, 128>}, {transform_indices = @transform_2, window_bounds = array<i64: 1, 128>}, {transform_indices = @transform_3, window_bounds = array<i64: 32, 128>}]} {
    %c0_i32 = arith.constant 0 : i32
    %0 = arith.cmpi eq, %arg2, %c0_i32 : i32
    %1 = arith.extui %0 : i1 to i32
    %c0_i32_0 = arith.constant 0 : i32
    %2 = arith.cmpi ne, %1, %c0_i32_0 : i32
    scf.if %2 {
      %cst_10 = arith.constant 0.000000e+00 : f32
      %12 = vector.broadcast %cst_10 : f32 to vector<32x128xf32>
      %c0_11 = arith.constant 0 : index
      %c0_12 = arith.constant 0 : index
      %13 = vector.load %arg7[%c0_11, %c0_12] : memref<32x128xf32, #tpu.memory_space<vmem>>, vector<32x128xf32>
      tpu.vector_store %arg7[%c0_11, %c0_12], %12 {strides = array<i32>} : memref<32x128xf32, #tpu.memory_space<vmem>>, vector<32x128xf32>,
    } else {
    }
    %c0 = arith.constant 0 : index
    %c0_1 = arith.constant 0 : index
    %3 = vector.load %arg7[%c0, %c0_1] : memref<32x128xf32, #tpu.memory_space<vmem>>, vector<32x128xf32>
    %c0_2 = arith.constant 0 : index
    %c0_3 = arith.constant 0 : index
    %4 = vector.load %arg3[%c0_2, %c0_3] : memref<32x128xbf16, #tpu.memory_space<vmem>>, vector<32x128xbf16>
    %c0_4 = arith.constant 0 : index
    %c0_5 = arith.constant 0 : index
    %5 = vector.load %arg4[%c0_4, %c0_5] : memref<128x128xbf16, #tpu.memory_space<vmem>>, vector<128x128xbf16>
    %cst = arith.constant dense<0.000000e+00> : vector<32x128xf32>
    %6 = tpu.matmul %4, %5, %cst {dimension_numbers = #tpu.dot_dimension_numbers<[1], [0], [0], [1], [0, 0, 1, 1], [], []>} : vector<32x128xbf16>, vector<128x128xbf16>, vector<32x128xf32> -> vector<32x128xf32>
    %7 = arith.addf %3, %6 : vector<32x128xf32>
    %c0_6 = arith.constant 0 : index
    %c0_7 = arith.constant 0 : index
    %8 = vector.load %arg7[%c0_6, %c0_7] : memref<32x128xf32, #tpu.memory_space<vmem>>, vector<32x128xf32>
    tpu.vector_store %arg7[%c0_6, %c0_7], %7 {strides = array<i32>} : memref<32x128xf32, #tpu.memory_space<vmem>>, vector<32x128xf32>,
    %c0_i32_8 = arith.constant 0 : i32
    %9 = arith.cmpi eq, %arg2, %c0_i32_8 : i32
    %10 = arith.extui %9 : i1 to i32
    %c0_i32_9 = arith.constant 0 : i32
    %11 = arith.cmpi ne, %10, %c0_i32_9 : i32
    scf.if %11 {
      %c0_10 = arith.constant 0 : index
      %c0_11 = arith.constant 0 : index
      %12 = vector.load %arg7[%c0_10, %c0_11] : memref<32x128xf32, #tpu.memory_space<vmem>>, vector<32x128xf32>
      %c0_12 = arith.constant 0 : index
      %c0_13 = arith.constant 0 : index
      %13 = vector.load %arg5[%c0_12, %c0_13] : memref<1x128xf32, #tpu.memory_space<vmem>>, vector<1x128xf32>
      %14 = vector.broadcast %13 : vector<1x128xf32> to vector<32x128xf32>
      %15 = arith.addf %12, %14 : vector<32x128xf32>
      %c0_14 = arith.constant 0 : index
      %c0_15 = arith.constant 0 : index
      %16 = vector.load %arg6[%c0_14, %c0_15] : memref<32x128xf32, #tpu.memory_space<vmem>>, vector<32x128xf32>
      tpu.vector_store %arg6[%c0_14, %c0_15], %15 {strides = array<i32>} : memref<32x128xf32, #tpu.memory_space<vmem>>, vector<32x128xf32>,
    } else {
    }
    return
  }
  func.func @transform_0(%arg0: i32, %arg1: i32, %arg2: i32) -> (i32, i32) {
    %c0_i32 = arith.constant 0 : i32
    return %arg0, %arg2 : i32, i32
  }
  func.func @transform_1(%arg0: i32, %arg1: i32, %arg2: i32) -> (i32, i32) {
    %c0_i32 = arith.constant 0 : i32
    return %arg2, %arg1 : i32, i32
  }
  func.func @transform_2(%arg0: i32, %arg1: i32, %arg2: i32) -> (i32, i32) {
    %c0_i32 = arith.constant 0 : i32
    %c0_i32_0 = arith.constant 0 : i32
    return %c0_i32, %arg1 : i32, i32
  }
  func.func @transform_3(%arg0: i32, %arg1: i32, %arg2: i32) -> (i32, i32) {
    %c0_i32 = arith.constant 0 : i32
    return %arg0, %arg1 : i32, i32
  }
}

module attributes {stable_mosaic.version = 11 : i64} {
  func.func @kernel(%arg0: i32, %arg1: i32, %arg2: i32, %arg3: memref<32x128xbf16, #tpu.memory_space<vmem>>, %arg4: memref<128x128xbf16, #tpu.memory_space<vmem>>, %arg5: memref<1x128xf32, #tpu.memory_space<vmem>>, %arg6: memref<32x128xf32, #tpu.memory_space<vmem>>, %arg7: memref<32x128xf32, #tpu.memory_space<vmem>>) attributes {dimension_semantics = [#tpu.dimension_semantics<parallel>, #tpu.dimension_semantics<parallel>, #tpu.dimension_semantics<arbitrary>], iteration_bounds = array<i64: 1, 1, 1>, scalar_prefetch = 0 : i64, scratch_operands = 1 : i64, tpu.core_type = #tpu.core_type<tc>, window_params = [{transform_indices = @transform_0, window_bounds = array<i64: 32, 128>}, {transform_indices = @transform_1, window_bounds = array<i64: 128, 128>}, {transform_indices = @transform_2, window_bounds = array<i64: 1, 128>}, {transform_indices = @transform_3, window_bounds = array<i64: 32, 128>}]} {
    %c0_i32 = arith.constant 0 : i32
    %0 = arith.cmpi eq, %arg2, %c0_i32 : i32
    %1 = arith.extui %0 : i1 to i32
    %c0_i32_0 = arith.constant 0 : i32
    %2 = arith.cmpi ne, %1, %c0_i32_0 : i32
    scf.if %2 {
      %cst_10 = arith.constant 0.000000e+00 : f32
      %12 = vector.broadcast %cst_10 : f32 to vector<32x128xf32>
      %c0_11 = arith.constant 0 : index
      %c0_12 = arith.constant 0 : index
      %13 = vector.load %arg7[%c0_11, %c0_12] : memref<32x128xf32, #tpu.memory_space<vmem>>, vector<32x128xf32>
      tpu.vector_store %arg7[%c0_11, %c0_12], %12 {strides = array<i32>} : memref<32x128xf32, #tpu.memory_space<vmem>>, vector<32x128xf32>,
    } else {
    }
    %c0 = arith.constant 0 : index
    %c0_1 = arith.constant 0 : index
    %3 = vector.load %arg7[%c0, %c0_1] : memref<32x128xf32, #tpu.memory_space<vmem>>, vector<32x128xf32>
    %c0_2 = arith.constant 0 : index
    %c0_3 = arith.constant 0 : index
    %4 = vector.load %arg3[%c0_2, %c0_3] : memref<32x128xbf16, #tpu.memory_space<vmem>>, vector<32x128xbf16>
    %c0_4 = arith.constant 0 : index
    %c0_5 = arith.constant 0 : index
    %5 = vector.load %arg4[%c0_4, %c0_5] : memref<128x128xbf16, #tpu.memory_space<vmem>>, vector<128x128xbf16>
    %cst = arith.constant dense<0.000000e+00> : vector<32x128xf32>
    %6 = tpu.matmul %4, %5, %cst {dimension_numbers = #tpu.dot_dimension_numbers<[1], [0], [0], [1], [0, 0, 1, 1], [], []>} : vector<32x128xbf16>, vector<128x128xbf16>, vector<32x128xf32> -> vector<32x128xf32>
    %7 = arith.addf %3, %6 : vector<32x128xf32>
    %c0_6 = arith.constant 0 : index
    %c0_7 = arith.constant 0 : index
    %8 = vector.load %arg7[%c0_6, %c0_7] : memref<32x128xf32, #tpu.memory_space<vmem>>, vector<32x128xf32>
    tpu.vector_store %arg7[%c0_6, %c0_7], %7 {strides = array<i32>} : memref<32x128xf32, #tpu.memory_space<vmem>>, vector<32x128xf32>,
    %c0_i32_8 = arith.constant 0 : i32
    %9 = arith.cmpi eq, %arg2, %c0_i32_8 : i32
    %10 = arith.extui %9 : i1 to i32
    %c0_i32_9 = arith.constant 0 : i32
    %11 = arith.cmpi ne, %10, %c0_i32_9 : i32
    scf.if %11 {
      %c0_10 = arith.constant 0 : index
      %c0_11 = arith.constant 0 : index
      %12 = vector.load %arg7[%c0_10, %c0_11] : memref<32x128xf32, #tpu.memory_space<vmem>>, vector<32x128xf32>
      %c0_12 = arith.constant 0 : index
      %c0_13 = arith.constant 0 : index
      %13 = vector.load %arg5[%c0_12, %c0_13] : memref<1x128xf32, #tpu.memory_space<vmem>>, vector<1x128xf32>
      %14 = vector.broadcast %13 : vector<1x128xf32> to vector<32x128xf32>
      %15 = arith.addf %12, %14 : vector<32x128xf32>
      %cst_14 = arith.constant 0.000000e+00 : f32
      %16 = vector.broadcast %cst_14 : f32 to vector<32x128xf32>
      %17 = arith.maximumf %15, %16 : vector<32x128xf32>
      %c0_15 = arith.constant 0 : index
      %c0_16 = arith.constant 0 : index
      %18 = vector.load %arg6[%c0_15, %c0_16] : memref<32x128xf32, #tpu.memory_space<vmem>>, vector<32x128xf32>
      tpu.vector_store %arg6[%c0_15, %c0_16], %17 {strides = array<i32>} : memref<32x128xf32, #tpu.memory_space<vmem>>, vector<32x128xf32>,
    } else {
    }
    return
  }
  func.func @transform_0(%arg0: i32, %arg1: i32, %arg2: i32) -> (i32, i32) {
    %c0_i32 = arith.constant 0 : i32
    return %arg0, %arg2 : i32, i32
  }
  func.func @transform_1(%arg0: i32, %arg1: i32, %arg2: i32) -> (i32, i32) {
    %c0_i32 = arith.constant 0 : i32
    return %arg2, %arg1 : i32, i32
  }
  func.func @transform_2(%arg0: i32, %arg1: i32, %arg2: i32) -> (i32, i32) {
    %c0_i32 = arith.constant 0 : i32
    %c0_i32_0 = arith.constant 0 : i32
    return %c0_i32, %arg1 : i32, i32
  }
  func.func @transform_3(%arg0: i32, %arg1: i32, %arg2: i32) -> (i32, i32) {
    %c0_i32 = arith.constant 0 : i32
    return %arg0, %arg1 : i32, i32
  }
}

module attributes {stable_mosaic.version = 11 : i64} {
  func.func @kernel(%arg0: i32, %arg1: i32, %arg2: i32, %arg3: memref<32x384xbf16, #tpu.memory_space<vmem>>, %arg4: memref<384x128xbf16, #tpu.memory_space<vmem>>, %arg5: memref<1x128xf32, #tpu.memory_space<vmem>>, %arg6: memref<32x128xf32, #tpu.memory_space<vmem>>, %arg7: memref<32x128xf32, #tpu.memory_space<vmem>>) attributes {dimension_semantics = [#tpu.dimension_semantics<parallel>, #tpu.dimension_semantics<parallel>, #tpu.dimension_semantics<arbitrary>], iteration_bounds = array<i64: 1, 1, 1>, scalar_prefetch = 0 : i64, scratch_operands = 1 : i64, tpu.core_type = #tpu.core_type<tc>, window_params = [{transform_indices = @transform_0, window_bounds = array<i64: 32, 384>}, {transform_indices = @transform_1, window_bounds = array<i64: 384, 128>}, {transform_indices = @transform_2, window_bounds = array<i64: 1, 128>}, {transform_indices = @transform_3, window_bounds = array<i64: 32, 128>}]} {
    %c0_i32 = arith.constant 0 : i32
    %0 = arith.cmpi eq, %arg2, %c0_i32 : i32
    %1 = arith.extui %0 : i1 to i32
    %c0_i32_0 = arith.constant 0 : i32
    %2 = arith.cmpi ne, %1, %c0_i32_0 : i32
    scf.if %2 {
      %cst_10 = arith.constant 0.000000e+00 : f32
      %12 = vector.broadcast %cst_10 : f32 to vector<32x128xf32>
      %c0_11 = arith.constant 0 : index
      %c0_12 = arith.constant 0 : index
      %13 = vector.load %arg7[%c0_11, %c0_12] : memref<32x128xf32, #tpu.memory_space<vmem>>, vector<32x128xf32>
      tpu.vector_store %arg7[%c0_11, %c0_12], %12 {strides = array<i32>} : memref<32x128xf32, #tpu.memory_space<vmem>>, vector<32x128xf32>,
    } else {
    }
    %c0 = arith.constant 0 : index
    %c0_1 = arith.constant 0 : index
    %3 = vector.load %arg7[%c0, %c0_1] : memref<32x128xf32, #tpu.memory_space<vmem>>, vector<32x128xf32>
    %c0_2 = arith.constant 0 : index
    %c0_3 = arith.constant 0 : index
    %4 = vector.load %arg3[%c0_2, %c0_3] : memref<32x384xbf16, #tpu.memory_space<vmem>>, vector<32x384xbf16>
    %c0_4 = arith.constant 0 : index
    %c0_5 = arith.constant 0 : index
    %5 = vector.load %arg4[%c0_4, %c0_5] : memref<384x128xbf16, #tpu.memory_space<vmem>>, vector<384x128xbf16>
    %cst = arith.constant dense<0.000000e+00> : vector<32x128xf32>
    %6 = tpu.matmul %4, %5, %cst {dimension_numbers = #tpu.dot_dimension_numbers<[1], [0], [0], [1], [0, 0, 1, 1], [], []>} : vector<32x384xbf16>, vector<384x128xbf16>, vector<32x128xf32> -> vector<32x128xf32>
    %7 = arith.addf %3, %6 : vector<32x128xf32>
    %c0_6 = arith.constant 0 : index
    %c0_7 = arith.constant 0 : index
    %8 = vector.load %arg7[%c0_6, %c0_7] : memref<32x128xf32, #tpu.memory_space<vmem>>, vector<32x128xf32>
    tpu.vector_store %arg7[%c0_6, %c0_7], %7 {strides = array<i32>} : memref<32x128xf32, #tpu.memory_space<vmem>>, vector<32x128xf32>,
    %c0_i32_8 = arith.constant 0 : i32
    %9 = arith.cmpi eq, %arg2, %c0_i32_8 : i32
    %10 = arith.extui %9 : i1 to i32
    %c0_i32_9 = arith.constant 0 : i32
    %11 = arith.cmpi ne, %10, %c0_i32_9 : i32
    scf.if %11 {
      %c0_10 = arith.constant 0 : index
      %c0_11 = arith.constant 0 : index
      %12 = vector.load %arg7[%c0_10, %c0_11] : memref<32x128xf32, #tpu.memory_space<vmem>>, vector<32x128xf32>
      %c0_12 = arith.constant 0 : index
      %c0_13 = arith.constant 0 : index
      %13 = vector.load %arg5[%c0_12, %c0_13] : memref<1x128xf32, #tpu.memory_space<vmem>>, vector<1x128xf32>
      %14 = vector.broadcast %13 : vector<1x128xf32> to vector<32x128xf32>
      %15 = arith.addf %12, %14 : vector<32x128xf32>
      %cst_14 = arith.constant 0.000000e+00 : f32
      %16 = vector.broadcast %cst_14 : f32 to vector<32x128xf32>
      %17 = arith.maximumf %15, %16 : vector<32x128xf32>
      %c0_15 = arith.constant 0 : index
      %c0_16 = arith.constant 0 : index
      %18 = vector.load %arg6[%c0_15, %c0_16] : memref<32x128xf32, #tpu.memory_space<vmem>>, vector<32x128xf32>
      tpu.vector_store %arg6[%c0_15, %c0_16], %17 {strides = array<i32>} : memref<32x128xf32, #tpu.memory_space<vmem>>, vector<32x128xf32>,
    } else {
    }
    return
  }
  func.func @transform_0(%arg0: i32, %arg1: i32, %arg2: i32) -> (i32, i32) {
    %c0_i32 = arith.constant 0 : i32
    return %arg0, %arg2 : i32, i32
  }
  func.func @transform_1(%arg0: i32, %arg1: i32, %arg2: i32) -> (i32, i32) {
    %c0_i32 = arith.constant 0 : i32
    return %arg2, %arg1 : i32, i32
  }
  func.func @transform_2(%arg0: i32, %arg1: i32, %arg2: i32) -> (i32, i32) {
    %c0_i32 = arith.constant 0 : i32
    %c0_i32_0 = arith.constant 0 : i32
    return %c0_i32, %arg1 : i32, i32
  }
  func.func @transform_3(%arg0: i32, %arg1: i32, %arg2: i32) -> (i32, i32) {
    %c0_i32 = arith.constant 0 : i32
    return %arg0, %arg1 : i32, i32
  }
}

module attributes {stable_mosaic.version = 11 : i64} {
  func.func @kernel(%arg0: i32, %arg1: i32, %arg2: i32, %arg3: memref<32x128xbf16, #tpu.memory_space<vmem>>, %arg4: memref<128x128xbf16, #tpu.memory_space<vmem>>, %arg5: memref<1x128xf32, #tpu.memory_space<vmem>>, %arg6: memref<32x128xf32, #tpu.memory_space<vmem>>, %arg7: memref<32x128xf32, #tpu.memory_space<vmem>>, %arg8: memref<32x128xf32, #tpu.memory_space<vmem>>, %arg9: memref<32x128xf32, #tpu.memory_space<vmem>>) attributes {dimension_semantics = [#tpu.dimension_semantics<parallel>, #tpu.dimension_semantics<parallel>, #tpu.dimension_semantics<arbitrary>], iteration_bounds = array<i64: 1, 1, 5>, scalar_prefetch = 0 : i64, scratch_operands = 1 : i64, tpu.core_type = #tpu.core_type<tc>, window_params = [{transform_indices = @transform_0, window_bounds = array<i64: 32, 128>}, {transform_indices = @transform_1, window_bounds = array<i64: 128, 128>}, {transform_indices = @transform_2, window_bounds = array<i64: 1, 128>}, {transform_indices = @transform_3, window_bounds = array<i64: 32, 128>}, {transform_indices = @transform_4, window_bounds = array<i64: 32, 128>}, {transform_indices = @transform_5, window_bounds = array<i64: 32, 128>}]} {
    %c0_i32 = arith.constant 0 : i32
    %0 = arith.cmpi eq, %arg2, %c0_i32 : i32
    %1 = arith.extui %0 : i1 to i32
    %c0_i32_0 = arith.constant 0 : i32
    %2 = arith.cmpi ne, %1, %c0_i32_0 : i32
    scf.if %2 {
      %cst_9 = arith.constant 0.000000e+00 : f32
      %12 = vector.broadcast %cst_9 : f32 to vector<32x128xf32>
      %c0_10 = arith.constant 0 : index
      %c0_11 = arith.constant 0 : index
      %13 = vector.load %arg9[%c0_10, %c0_11] : memref<32x128xf32, #tpu.memory_space<vmem>>, vector<32x128xf32>
      tpu.vector_store %arg9[%c0_10, %c0_11], %12 {strides = array<i32>} : memref<32x128xf32, #tpu.memory_space<vmem>>, vector<32x128xf32>,
    } else {
    }
    %c0 = arith.constant 0 : index
    %c0_1 = arith.constant 0 : index
    %3 = vector.load %arg9[%c0, %c0_1] : memref<32x128xf32, #tpu.memory_space<vmem>>, vector<32x128xf32>
    %c0_2 = arith.constant 0 : index
    %c0_3 = arith.constant 0 : index
    %4 = vector.load %arg3[%c0_2, %c0_3] : memref<32x128xbf16, #tpu.memory_space<vmem>>, vector<32x128xbf16>
    %c0_4 = arith.constant 0 : index
    %c0_5 = arith.constant 0 : index
    %5 = vector.load %arg4[%c0_4, %c0_5] : memref<128x128xbf16, #tpu.memory_space<vmem>>, vector<128x128xbf16>
    %cst = arith.constant dense<0.000000e+00> : vector<32x128xf32>
    %6 = tpu.matmul %4, %5, %cst {dimension_numbers = #tpu.dot_dimension_numbers<[1], [0], [0], [1], [0, 0, 1, 1], [], []>} : vector<32x128xbf16>, vector<128x128xbf16>, vector<32x128xf32> -> vector<32x128xf32>
    %7 = arith.addf %3, %6 : vector<32x128xf32>
    %c0_6 = arith.constant 0 : index
    %c0_7 = arith.constant 0 : index
    %8 = vector.load %arg9[%c0_6, %c0_7] : memref<32x128xf32, #tpu.memory_space<vmem>>, vector<32x128xf32>
    tpu.vector_store %arg9[%c0_6, %c0_7], %7 {strides = array<i32>} : memref<32x128xf32, #tpu.memory_space<vmem>>, vector<32x128xf32>,
    %c4_i32 = arith.constant 4 : i32
    %9 = arith.cmpi eq, %arg2, %c4_i32 : i32
    %10 = arith.extui %9 : i1 to i32
    %c0_i32_8 = arith.constant 0 : i32
    %11 = arith.cmpi ne, %10, %c0_i32_8 : i32
    scf.if %11 {
      %c0_9 = arith.constant 0 : index
      %c0_10 = arith.constant 0 : index
      %12 = vector.load %arg9[%c0_9, %c0_10] : memref<32x128xf32, #tpu.memory_space<vmem>>, vector<32x128xf32>
      %c0_11 = arith.constant 0 : index
      %c0_12 = arith.constant 0 : index
      %13 = vector.load %arg5[%c0_11, %c0_12] : memref<1x128xf32, #tpu.memory_space<vmem>>, vector<1x128xf32>
      %14 = vector.broadcast %13 : vector<1x128xf32> to vector<32x128xf32>
      %15 = arith.addf %12, %14 : vector<32x128xf32>
      %c0_13 = arith.constant 0 : index
      %c0_14 = arith.constant 0 : index
      %16 = vector.load %arg6[%c0_13, %c0_14] : memref<32x128xf32, #tpu.memory_space<vmem>>, vector<32x128xf32>
      %c0_15 = arith.constant 0 : index
      %c0_16 = arith.constant 0 : index
      %17 = vector.load %arg7[%c0_15, %c0_16] : memref<32x128xf32, #tpu.memory_space<vmem>>, vector<32x128xf32>
      %cst_17 = arith.constant 1.000000e+00 : f32
      %18 = vector.broadcast %cst_17 : f32 to vector<32x128xf32>
      %19 = arith.subf %18, %16 : vector<32x128xf32>
      %20 = arith.mulf %19, %17 : vector<32x128xf32>
      %21 = math.tanh %15 : vector<32x128xf32>
      %22 = arith.mulf %16, %21 : vector<32x128xf32>
      %23 = arith.addf %20, %22 : vector<32x128xf32>
      %c0_18 = arith.constant 0 : index
      %c0_19 = arith.constant 0 : index
      %24 = vector.load %arg8[%c0_18, %c0_19] : memref<32x128xf32, #tpu.memory_space<vmem>>, vector<32x128xf32>
      tpu.vector_store %arg8[%c0_18, %c0_19], %23 {strides = array<i32>} : memref<32x128xf32, #tpu.memory_space<vmem>>, vector<32x128xf32>,
    } else {
    }
    return
  }
  func.func @transform_0(%arg0: i32, %arg1: i32, %arg2: i32) -> (i32, i32) {
    %c0_i32 = arith.constant 0 : i32
    return %arg0, %arg2 : i32, i32
  }
  func.func @transform_1(%arg0: i32, %arg1: i32, %arg2: i32) -> (i32, i32) {
    %c0_i32 = arith.constant 0 : i32
    return %arg2, %arg1 : i32, i32
  }
  func.func @transform_2(%arg0: i32, %arg1: i32, %arg2: i32) -> (i32, i32) {
    %c0_i32 = arith.constant 0 : i32
    %c0_i32_0 = arith.constant 0 : i32
    return %c0_i32, %arg1 : i32, i32
  }
  func.func @transform_3(%arg0: i32, %arg1: i32, %arg2: i32) -> (i32, i32) {
    %c0_i32 = arith.constant 0 : i32
    return %arg0, %arg1 : i32, i32
  }
  func.func @transform_4(%arg0: i32, %arg1: i32, %arg2: i32) -> (i32, i32) {
    %c0_i32 = arith.constant 0 : i32
    return %arg0, %arg1 : i32, i32
  }
  func.func @transform_5(%arg0: i32, %arg1: i32, %arg2: i32) -> (i32, i32) {
    %c0_i32 = arith.constant 0 : i32
    return %arg0, %arg1 : i32, i32
  }
}

module attributes {stable_mosaic.version = 11 : i64} {
  func.func @kernel(%arg0: i32, %arg1: i32, %arg2: i32, %arg3: memref<32x128xbf16, #tpu.memory_space<vmem>>, %arg4: memref<128x128xbf16, #tpu.memory_space<vmem>>, %arg5: memref<1x128xf32, #tpu.memory_space<vmem>>, %arg6: memref<32x128xf32, #tpu.memory_space<vmem>>, %arg7: memref<32x128xf32, #tpu.memory_space<vmem>>) attributes {dimension_semantics = [#tpu.dimension_semantics<parallel>, #tpu.dimension_semantics<parallel>, #tpu.dimension_semantics<arbitrary>], iteration_bounds = array<i64: 1, 1, 5>, scalar_prefetch = 0 : i64, scratch_operands = 1 : i64, tpu.core_type = #tpu.core_type<tc>, window_params = [{transform_indices = @transform_0, window_bounds = array<i64: 32, 128>}, {transform_indices = @transform_1, window_bounds = array<i64: 128, 128>}, {transform_indices = @transform_2, window_bounds = array<i64: 1, 128>}, {transform_indices = @transform_3, window_bounds = array<i64: 32, 128>}]} {
    %c0_i32 = arith.constant 0 : i32
    %0 = arith.cmpi eq, %arg2, %c0_i32 : i32
    %1 = arith.extui %0 : i1 to i32
    %c0_i32_0 = arith.constant 0 : i32
    %2 = arith.cmpi ne, %1, %c0_i32_0 : i32
    scf.if %2 {
      %cst_9 = arith.constant 0.000000e+00 : f32
      %12 = vector.broadcast %cst_9 : f32 to vector<32x128xf32>
      %c0_10 = arith.constant 0 : index
      %c0_11 = arith.constant 0 : index
      %13 = vector.load %arg7[%c0_10, %c0_11] : memref<32x128xf32, #tpu.memory_space<vmem>>, vector<32x128xf32>
      tpu.vector_store %arg7[%c0_10, %c0_11], %12 {strides = array<i32>} : memref<32x128xf32, #tpu.memory_space<vmem>>, vector<32x128xf32>,
    } else {
    }
    %c0 = arith.constant 0 : index
    %c0_1 = arith.constant 0 : index
    %3 = vector.load %arg7[%c0, %c0_1] : memref<32x128xf32, #tpu.memory_space<vmem>>, vector<32x128xf32>
    %c0_2 = arith.constant 0 : index
    %c0_3 = arith.constant 0 : index
    %4 = vector.load %arg3[%c0_2, %c0_3] : memref<32x128xbf16, #tpu.memory_space<vmem>>, vector<32x128xbf16>
    %c0_4 = arith.constant 0 : index
    %c0_5 = arith.constant 0 : index
    %5 = vector.load %arg4[%c0_4, %c0_5] : memref<128x128xbf16, #tpu.memory_space<vmem>>, vector<128x128xbf16>
    %cst = arith.constant dense<0.000000e+00> : vector<32x128xf32>
    %6 = tpu.matmul %4, %5, %cst {dimension_numbers = #tpu.dot_dimension_numbers<[1], [0], [0], [1], [0, 0, 1, 1], [], []>} : vector<32x128xbf16>, vector<128x128xbf16>, vector<32x128xf32> -> vector<32x128xf32>
    %7 = arith.addf %3, %6 : vector<32x128xf32>
    %c0_6 = arith.constant 0 : index
    %c0_7 = arith.constant 0 : index
    %8 = vector.load %arg7[%c0_6, %c0_7] : memref<32x128xf32, #tpu.memory_space<vmem>>, vector<32x128xf32>
    tpu.vector_store %arg7[%c0_6, %c0_7], %7 {strides = array<i32>} : memref<32x128xf32, #tpu.memory_space<vmem>>, vector<32x128xf32>,
    %c4_i32 = arith.constant 4 : i32
    %9 = arith.cmpi eq, %arg2, %c4_i32 : i32
    %10 = arith.extui %9 : i1 to i32
    %c0_i32_8 = arith.constant 0 : i32
    %11 = arith.cmpi ne, %10, %c0_i32_8 : i32
    scf.if %11 {
      %c0_9 = arith.constant 0 : index
      %c0_10 = arith.constant 0 : index
      %12 = vector.load %arg7[%c0_9, %c0_10] : memref<32x128xf32, #tpu.memory_space<vmem>>, vector<32x128xf32>
      %c0_11 = arith.constant 0 : index
      %c0_12 = arith.constant 0 : index
      %13 = vector.load %arg5[%c0_11, %c0_12] : memref<1x128xf32, #tpu.memory_space<vmem>>, vector<1x128xf32>
      %14 = vector.broadcast %13 : vector<1x128xf32> to vector<32x128xf32>
      %15 = arith.addf %12, %14 : vector<32x128xf32>
      %16 = arith.negf %15 : vector<32x128xf32>
      %17 = math.exp %16 : vector<32x128xf32>
      %cst_13 = arith.constant 1.000000e+00 : f32
      %18 = vector.broadcast %cst_13 : f32 to vector<32x128xf32>
      %19 = arith.addf %18, %17 : vector<32x128xf32>
      %20 = arith.divf %18, %19 : vector<32x128xf32>
      %c0_14 = arith.constant 0 : index
      %c0_15 = arith.constant 0 : index
      %21 = vector.load %arg6[%c0_14, %c0_15] : memref<32x128xf32, #tpu.memory_space<vmem>>, vector<32x128xf32>
      tpu.vector_store %arg6[%c0_14, %c0_15], %20 {strides = array<i32>} : memref<32x128xf32, #tpu.memory_space<vmem>>, vector<32x128xf32>,
    } else {
    }
    return
  }
  func.func @transform_0(%arg0: i32, %arg1: i32, %arg2: i32) -> (i32, i32) {
    %c0_i32 = arith.constant 0 : i32
    return %arg0, %arg2 : i32, i32
  }
  func.func @transform_1(%arg0: i32, %arg1: i32, %arg2: i32) -> (i32, i32) {
    %c0_i32 = arith.constant 0 : i32
    return %arg2, %arg1 : i32, i32
  }
  func.func @transform_2(%arg0: i32, %arg1: i32, %arg2: i32) -> (i32, i32) {
    %c0_i32 = arith.constant 0 : i32
    %c0_i32_0 = arith.constant 0 : i32
    return %c0_i32, %arg1 : i32, i32
  }
  func.func @transform_3(%arg0: i32, %arg1: i32, %arg2: i32) -> (i32, i32) {
    %c0_i32 = arith.constant 0 : i32
    return %arg0, %arg1 : i32, i32
  }
}

module attributes {stable_mosaic.version = 11 : i64} {
  func.func @kernel(%arg0: i32, %arg1: i32, %arg2: i32, %arg3: memref<32x384xbf16, #tpu.memory_space<vmem>>, %arg4: memref<384x128xbf16, #tpu.memory_space<vmem>>, %arg5: memref<1x128xf32, #tpu.memory_space<vmem>>, %arg6: memref<32x128xf32, #tpu.memory_space<vmem>>, %arg7: memref<32x128xf32, #tpu.memory_space<vmem>>, %arg8: memref<32x128xf32, #tpu.memory_space<vmem>>) attributes {dimension_semantics = [#tpu.dimension_semantics<parallel>, #tpu.dimension_semantics<parallel>, #tpu.dimension_semantics<arbitrary>], iteration_bounds = array<i64: 1, 1, 1>, scalar_prefetch = 0 : i64, scratch_operands = 1 : i64, tpu.core_type = #tpu.core_type<tc>, window_params = [{transform_indices = @transform_0, window_bounds = array<i64: 32, 384>}, {transform_indices = @transform_1, window_bounds = array<i64: 384, 128>}, {transform_indices = @transform_2, window_bounds = array<i64: 1, 128>}, {transform_indices = @transform_3, window_bounds = array<i64: 32, 128>}, {transform_indices = @transform_4, window_bounds = array<i64: 32, 128>}]} {
    %c0_i32 = arith.constant 0 : i32
    %0 = arith.cmpi eq, %arg2, %c0_i32 : i32
    %1 = arith.extui %0 : i1 to i32
    %c0_i32_0 = arith.constant 0 : i32
    %2 = arith.cmpi ne, %1, %c0_i32_0 : i32
    scf.if %2 {
      %cst_10 = arith.constant 0.000000e+00 : f32
      %12 = vector.broadcast %cst_10 : f32 to vector<32x128xf32>
      %c0_11 = arith.constant 0 : index
      %c0_12 = arith.constant 0 : index
      %13 = vector.load %arg8[%c0_11, %c0_12] : memref<32x128xf32, #tpu.memory_space<vmem>>, vector<32x128xf32>
      tpu.vector_store %arg8[%c0_11, %c0_12], %12 {strides = array<i32>} : memref<32x128xf32, #tpu.memory_space<vmem>>, vector<32x128xf32>,
    } else {
    }
    %c0 = arith.constant 0 : index
    %c0_1 = arith.constant 0 : index
    %3 = vector.load %arg8[%c0, %c0_1] : memref<32x128xf32, #tpu.memory_space<vmem>>, vector<32x128xf32>
    %c0_2 = arith.constant 0 : index
    %c0_3 = arith.constant 0 : index
    %4 = vector.load %arg3[%c0_2, %c0_3] : memref<32x384xbf16, #tpu.memory_space<vmem>>, vector<32x384xbf16>
    %c0_4 = arith.constant 0 : index
    %c0_5 = arith.constant 0 : index
    %5 = vector.load %arg4[%c0_4, %c0_5] : memref<384x128xbf16, #tpu.memory_space<vmem>>, vector<384x128xbf16>
    %cst = arith.constant dense<0.000000e+00> : vector<32x128xf32>
    %6 = tpu.matmul %4, %5, %cst {dimension_numbers = #tpu.dot_dimension_numbers<[1], [0], [0], [1], [0, 0, 1, 1], [], []>} : vector<32x384xbf16>, vector<384x128xbf16>, vector<32x128xf32> -> vector<32x128xf32>
    %7 = arith.addf %3, %6 : vector<32x128xf32>
    %c0_6 = arith.constant 0 : index
    %c0_7 = arith.constant 0 : index
    %8 = vector.load %arg8[%c0_6, %c0_7] : memref<32x128xf32, #tpu.memory_space<vmem>>, vector<32x128xf32>
    tpu.vector_store %arg8[%c0_6, %c0_7], %7 {strides = array<i32>} : memref<32x128xf32, #tpu.memory_space<vmem>>, vector<32x128xf32>,
    %c0_i32_8 = arith.constant 0 : i32
    %9 = arith.cmpi eq, %arg2, %c0_i32_8 : i32
    %10 = arith.extui %9 : i1 to i32
    %c0_i32_9 = arith.constant 0 : i32
    %11 = arith.cmpi ne, %10, %c0_i32_9 : i32
    scf.if %11 {
      %c0_10 = arith.constant 0 : index
      %c0_11 = arith.constant 0 : index
      %12 = vector.load %arg8[%c0_10, %c0_11] : memref<32x128xf32, #tpu.memory_space<vmem>>, vector<32x128xf32>
      %c0_12 = arith.constant 0 : index
      %c0_13 = arith.constant 0 : index
      %13 = vector.load %arg5[%c0_12, %c0_13] : memref<1x128xf32, #tpu.memory_space<vmem>>, vector<1x128xf32>
      %14 = vector.broadcast %13 : vector<1x128xf32> to vector<32x128xf32>
      %15 = arith.addf %12, %14 : vector<32x128xf32>
      %c0_14 = arith.constant 0 : index
      %c0_15 = arith.constant 0 : index
      %16 = vector.load %arg6[%c0_14, %c0_15] : memref<32x128xf32, #tpu.memory_space<vmem>>, vector<32x128xf32>
      %17 = arith.addf %15, %16 : vector<32x128xf32>
      %c0_16 = arith.constant 0 : index
      %c0_17 = arith.constant 0 : index
      %18 = vector.load %arg7[%c0_16, %c0_17] : memref<32x128xf32, #tpu.memory_space<vmem>>, vector<32x128xf32>
      tpu.vector_store %arg7[%c0_16, %c0_17], %17 {strides = array<i32>} : memref<32x128xf32, #tpu.memory_space<vmem>>, vector<32x128xf32>,
    } else {
    }
    return
  }
  func.func @transform_0(%arg0: i32, %arg1: i32, %arg2: i32) -> (i32, i32) {
    %c0_i32 = arith.constant 0 : i32
    return %arg0, %arg2 : i32, i32
  }
  func.func @transform_1(%arg0: i32, %arg1: i32, %arg2: i32) -> (i32, i32) {
    %c0_i32 = arith.constant 0 : i32
    return %arg2, %arg1 : i32, i32
  }
  func.func @transform_2(%arg0: i32, %arg1: i32, %arg2: i32) -> (i32, i32) {
    %c0_i32 = arith.constant 0 : i32
    %c0_i32_0 = arith.constant 0 : i32
    return %c0_i32, %arg1 : i32, i32
  }
  func.func @transform_3(%arg0: i32, %arg1: i32, %arg2: i32) -> (i32, i32) {
    %c0_i32 = arith.constant 0 : i32
    return %arg0, %arg1 : i32, i32
  }
  func.func @transform_4(%arg0: i32, %arg1: i32, %arg2: i32) -> (i32, i32) {
    %c0_i32 = arith.constant 0 : i32
    return %arg0, %arg1 : i32, i32
  }
}

</mosaic_0001>

<llo_original>
// kernel: network_forward.10
$region0: #{network_forward.10}
  #allocation0 [shape = 'u32[]', space=smem, size = 0x4, offset = 0x4, fixed_abs, tag = 'smem constant byte address 0x4 - core index']
  #allocation1 [shape = 'u32[144,128]{1,0:T(1,128)}', space=vmem, size = 0x12000, scoped, tag = 'internal scratch']
  #allocation2 [shape = 'f32[32,128]{1,0:T(8,128)}', space=vmem, size = 0x4000, scoped, tag = 'scratch operand']
  %s0 = inlined_call_operand.vmem [shape: bf16[32,256], index: 0, kind: input, shape index: {}]
  %s1 = inlined_call_operand.vmem [shape: bf16[256,128], index: 1, kind: input, shape index: {}]
  %s2 = inlined_call_operand.vmem [shape: f32[1,128], index: 2, kind: input, shape index: {}]
  %s3 = inlined_call_operand.vmem [shape: f32[32,128], index: 3, kind: output, shape index: {}]
  %s4 = sld [smem:[#allocation0]]
  $region30: #{network_forward.10} parent=0
    _
  %s6 = ssub.s32 1, %s4
  %s7 = scalar_select 0, %s6, %s4
  // Predicated region
  $region2: #{network_forward.10} parent=0 // pred_check
    _
  $region3: #{network_forward.10} parent=0 // pred_check_branch
    %9 = sbr.rel (0) target = $region5
  $region4: #{network_forward.10} parent=0 // pred_region
    _
  $region5: #{network_forward.10} parent=0 // pred_fallthru
    _
  // Predicated region
  $region6: #{network_forward.10} parent=0 // pred_check
    _
  $region7: #{network_forward.10} parent=0 // pred_check_branch
    %11 = sbr.rel (0) target = $region9
  $region8: #{network_forward.10} parent=0 // pred_region
    _
  $region9: #{network_forward.10} parent=0 // pred_fallthru
    _
  // Predicated region
  $region10: #{network_forward.10} parent=0 // pred_check
    _
  $region11: #{network_forward.10} parent=0 // pred_check_branch
    %13 = sbr.rel (0) target = $region13
  $region12: #{network_forward.10} parent=0 // pred_region
    _
  $region13: #{network_forward.10} parent=0 // pred_fallthru
    _
  %p15 = scmp.eq.s32.totalorder 0, 0
  // Predicated region
  $region14: #{network_forward.10} parent=0 // pred_check
    %p16 = pneg %p15
  $region15: #{network_forward.10} parent=0 // pred_check_branch
    %18 = sbr.rel (%p16) target = $region17
  $region16: #{network_forward.10} parent=0 // pred_region
    %19 = vst [vmem:[#allocation2] sm:$0xff] 0.0
    %20 = vst [vmem:[#allocation2 + $0x8] sm:$0xff] 0.0
    %21 = vst [vmem:[#allocation2 + $0x10] sm:$0xff] 0.0
    %22 = vst [vmem:[#allocation2 + $0x18] sm:$0xff] 0.0
  $region17: #{network_forward.10} parent=0 // pred_fallthru
    _
  %v23 = vld [vmem:[#allocation2] sm:$0xff]
  %v24 = vld [vmem:[#allocation2 + $0x8] sm:$0xff]
  %v25 = vld [vmem:[#allocation2 + $0x10] sm:$0xff]
  %v26 = vld [vmem:[#allocation2 + $0x18] sm:$0xff]
  %v27 = vld [vmem:[%s0] sm:$0xff]
  %v28 = vld [vmem:[%s0 + $0x8] sm:$0xff]
  %v29 = vld [vmem:[%s0 + $0x10] sm:$0xff]
  %v30 = vld [vmem:[%s0 + $0x18] sm:$0xff]
  %v31 = vld [vmem:[%s1] sm:$0xf]
  %v32 = vld [vmem:[%s1 + $0x4] sm:$0xf]
  %v33 = vld [vmem:[%s1 + $0x8] sm:$0xf]
  %v34 = vld [vmem:[%s1 + $0xc] sm:$0xf]
  %v35 = vld [vmem:[%s1 + $0x10] sm:$0xf]
  %v36 = vld [vmem:[%s1 + $0x14] sm:$0xf]
  %v37 = vld [vmem:[%s1 + $0x18] sm:$0xf]
  %v38 = vld [vmem:[%s1 + $0x1c] sm:$0xf]
  %v39 = vld [vmem:[%s1 + $0x20] sm:$0xf]
  %v40 = vld [vmem:[%s1 + $0x24] sm:$0xf]
  %v41 = vld [vmem:[%s1 + $0x28] sm:$0xf]
  %v42 = vld [vmem:[%s1 + $0x2c] sm:$0xf]
  %v43 = vld [vmem:[%s1 + $0x30] sm:$0xf]
  %v44 = vld [vmem:[%s1 + $0x34] sm:$0xf]
  %v45 = vld [vmem:[%s1 + $0x38] sm:$0xf]
  %v46 = vld [vmem:[%s1 + $0x3c] sm:$0xf]
  %v47 = vld [vmem:[%s1 + $0x40] sm:$0xf]
  %v48 = vld [vmem:[%s1 + $0x44] sm:$0xf]
  %v49 = vld [vmem:[%s1 + $0x48] sm:$0xf]
  %v50 = vld [vmem:[%s1 + $0x4c] sm:$0xf]
  %v51 = vld [vmem:[%s1 + $0x50] sm:$0xf]
  %v52 = vld [vmem:[%s1 + $0x54] sm:$0xf]
  %v53 = vld [vmem:[%s1 + $0x58] sm:$0xf]
  %v54 = vld [vmem:[%s1 + $0x5c] sm:$0xf]
  %v55 = vld [vmem:[%s1 + $0x60] sm:$0xf]
  %v56 = vld [vmem:[%s1 + $0x64] sm:$0xf]
  %v57 = vld [vmem:[%s1 + $0x68] sm:$0xf]
  %v58 = vld [vmem:[%s1 + $0x6c] sm:$0xf]
  %v59 = vld [vmem:[%s1 + $0x70] sm:$0xf]
  %v60 = vld [vmem:[%s1 + $0x74] sm:$0xf]
  %v61 = vld [vmem:[%s1 + $0x78] sm:$0xf]
  %v62 = vld [vmem:[%s1 + $0x7c] sm:$0xf]
  %v67 = vunpack.c.l.b16 %v27
  %v68 = vunpack.c.h.b16 %v27
  %v69 = vunpack.c.l.b16 %v28
  %v70 = vunpack.c.h.b16 %v28
  %v71 = vunpack.c.l.b16 %v29
  %v72 = vunpack.c.h.b16 %v29
  %v73 = vunpack.c.l.b16 %v30
  %v74 = vunpack.c.h.b16 %v30
  %v75 = vpack.c.b16 %v69, %v67
  %v76 = vpack.c.b16 %v70, %v68
  %v77 = vpack.c.b16 %v73, %v71
  %v78 = vpack.c.b16 %v74, %v72
  %v115 = vunpack.c.l.b16 %v31
  %v116 = vunpack.c.l.b16 %v32
  %v117 = vunpack.c.l.b16 %v33
  %v118 = vunpack.c.l.b16 %v34
  %v119 = vunpack.c.l.b16 %v35
  %v120 = vunpack.c.l.b16 %v36
  %v121 = vunpack.c.l.b16 %v37
  %v122 = vunpack.c.l.b16 %v38
  %v123 = vunpack.c.l.b16 %v39
  %v124 = vunpack.c.l.b16 %v40
  %v125 = vunpack.c.l.b16 %v41
  %v126 = vunpack.c.l.b16 %v42
  %v127 = vunpack.c.l.b16 %v43
  %v128 = vunpack.c.l.b16 %v44
  %v129 = vunpack.c.l.b16 %v45
  %v130 = vunpack.c.l.b16 %v46
  %v131 = vunpack.c.l.b16 %v47
  %v132 = vunpack.c.l.b16 %v48
  %v133 = vunpack.c.l.b16 %v49
  %v134 = vunpack.c.l.b16 %v50
  %v135 = vunpack.c.l.b16 %v51
  %v136 = vunpack.c.l.b16 %v52
  %v137 = vunpack.c.l.b16 %v53
  %v138 = vunpack.c.l.b16 %v54
  %v139 = vunpack.c.l.b16 %v55
  %v140 = vunpack.c.l.b16 %v56
  %v141 = vunpack.c.l.b16 %v57
  %v142 = vunpack.c.l.b16 %v58
  %v143 = vunpack.c.l.b16 %v59
  %v144 = vunpack.c.l.b16 %v60
  %v145 = vunpack.c.l.b16 %v61
  %v146 = vunpack.c.l.b16 %v62
  %v147 = vpack.c.b16 %v116, %v115
  %v148 = vpack.c.b16 %v118, %v117
  %v149 = vpack.c.b16 %v120, %v119
  %v150 = vpack.c.b16 %v122, %v121
  %v151 = vpack.c.b16 %v124, %v123
  %v152 = vpack.c.b16 %v126, %v125
  %v153 = vpack.c.b16 %v128, %v127
  %v154 = vpack.c.b16 %v130, %v129
  %v155 = vpack.c.b16 %v132, %v131
  %v156 = vpack.c.b16 %v134, %v133
  %v157 = vpack.c.b16 %v136, %v135
  %v158 = vpack.c.b16 %v138, %v137
  %v159 = vpack.c.b16 %v140, %v139
  %v160 = vpack.c.b16 %v142, %v141
  %v161 = vpack.c.b16 %v144, %v143
  %v162 = vpack.c.b16 %v146, %v145
  %179 = vmatprep.subr.bf16.mxu0 0
  %180 = vmatpush1.bf16.msra.mxu0 %v147
  %181 = vmatprep.subr.bf16.mxu0 0
  %182 = vmatpush1.bf16.msra.mxu0 %v148
  %183 = vmatprep.subr.bf16.mxu0 0
  %184 = vmatpush1.bf16.msra.mxu0 %v149
  %185 = vmatprep.subr.bf16.mxu0 0
  %186 = vmatpush1.bf16.msra.mxu0 %v150
  %187 = vmatprep.subr.bf16.mxu0 0
  %188 = vmatpush1.bf16.msra.mxu0 %v151
  %189 = vmatprep.subr.bf16.mxu0 0
  %190 = vmatpush1.bf16.msra.mxu0 %v152
  %191 = vmatprep.subr.bf16.mxu0 0
  %192 = vmatpush1.bf16.msra.mxu0 %v153
  %193 = vmatprep.subr.bf16.mxu0 0
  %194 = vmatpush1.bf16.msra.mxu0 %v154
  %195 = vmatprep.subr.bf16.mxu0 0
  %196 = vmatpush1.bf16.msra.mxu0 %v155
  %197 = vmatprep.subr.bf16.mxu0 0
  %198 = vmatpush1.bf16.msra.mxu0 %v156
  %199 = vmatprep.subr.bf16.mxu0 0
  %200 = vmatpush1.bf16.msra.mxu0 %v157
  %201 = vmatprep.subr.bf16.mxu0 0
  %202 = vmatpush1.bf16.msra.mxu0 %v158
  %203 = vmatprep.subr.bf16.mxu0 0
  %204 = vmatpush1.bf16.msra.mxu0 %v159
  %205 = vmatprep.subr.bf16.mxu0 0
  %206 = vmatpush1.bf16.msra.mxu0 %v160
  %207 = vmatprep.subr.bf16.mxu0 0
  %208 = vmatpush1.bf16.msra.mxu0 %v161
  %209 = vmatprep.subr.bf16.mxu0 0
  %210 = vmatpush1.bf16.msra.mxu0 %v162
  %211 = vmatprep.mubr.bf16.mxu0 %v76
  %212 = vmatmul.mubr.bf16.gmra.mrb[0].mxu0 %v75
  %v213 = vpop.f32.mrb[0].mxu0
  %v214 = vadd.f32 0.0, %v213
  %v215 = vpop.f32.mrb[0].mxu0
  %v216 = vpop.f32.mrb[0].mxu0
  %v217 = vadd.f32 0.0, %v216
  %v218 = vpop.f32.mrb[0].mxu0
  %219 = vmatprep.mubr.bf16.mxu0 %v78
  %220 = vmatmul.mubr.bf16.gmra.mrb[0].mxu0 %v77
  %v221 = vpop.f32.mrb[0].mxu0
  %v222 = vadd.f32 0.0, %v221
  %v223 = vpop.f32.mrb[0].mxu0
  %v224 = vpop.f32.mrb[0].mxu0
  %v225 = vadd.f32 0.0, %v224
  %v226 = vpop.f32.mrb[0].mxu0
  %227 = vdwg.mxu0
  %v228 = vadd.f32 %v23, %v214
  %v229 = vadd.f32 %v24, %v217
  %v230 = vadd.f32 %v25, %v222
  %v231 = vadd.f32 %v26, %v225
  %232 = vst [vmem:[#allocation2] sm:$0xff] %v228
  %233 = vst [vmem:[#allocation2 + $0x8] sm:$0xff] %v229
  %234 = vst [vmem:[#allocation2 + $0x10] sm:$0xff] %v230
  %235 = vst [vmem:[#allocation2 + $0x18] sm:$0xff] %v231
  // Predicated region
  $region18: #{network_forward.10} parent=0 // pred_check
    %p236 = pneg %p15
  $region19: #{network_forward.10} parent=0 // pred_check_branch
    %238 = sbr.rel (%p236) target = $region21
  $region20: #{network_forward.10} parent=0 // pred_region
    %v239 = vld [vmem:[#allocation2] sm:$0xff]
    %v240 = vld [vmem:[#allocation2 + $0x8] sm:$0xff]
    %v241 = vld [vmem:[#allocation2 + $0x10] sm:$0xff]
    %v242 = vld [vmem:[#allocation2 + $0x18] sm:$0xff]
    %v243 = vld [vmem:[%s2] sm:$0x1]
    %v245 = vlaneseq
    %v246 = vshrl.u32 %v245, 7
    %v247 = vsub.s32 0, %v246
    %v248 = vrot.slane %v243, %v247
    %v250 = vadd.f32 %v239, %v248
    %v251 = vadd.f32 %v240, %v248
    %v252 = vadd.f32 %v241, %v248
    %v253 = vadd.f32 %v242, %v248
    %v254 = vmax.f32 %v250, 0.0
    %v255 = vmax.f32 %v251, 0.0
    %v256 = vmax.f32 %v252, 0.0
    %v257 = vmax.f32 %v253, 0.0
    %258 = vst [vmem:[%s3] sm:$0xff] %v254
    %259 = vst [vmem:[%s3 + $0x8] sm:$0xff] %v255
    %260 = vst [vmem:[%s3 + $0x10] sm:$0xff] %v256
    %261 = vst [vmem:[%s3 + $0x18] sm:$0xff] %v257
  $region21: #{network_forward.10} parent=0 // pred_fallthru
    _
  // Predicated region
  $region22: #{network_forward.10} parent=0 // pred_check
    _
  $region23: #{network_forward.10} parent=0 // pred_check_branch
    %263 = sbr.rel (0) target = $region25
  $region24: #{network_forward.10} parent=0 // pred_region
    _
  $region25: #{network_forward.10} parent=0 // pred_fallthru
    _
  // Predicated region
  $region26: #{network_forward.10} parent=0 // pred_check
    _
  $region27: #{network_forward.10} parent=0 // pred_check_branch
    %265 = sbr.rel (0) target = $region29
  $region28: #{network_forward.10} parent=0 // pred_region
    _
  $region29: #{network_forward.10} parent=0 // pred_fallthru
    _

// kernel: network_forward.9
$region0: #{network_forward.9}
  #allocation0 [shape = 'u32[]', space=smem, size = 0x4, offset = 0x4, fixed_abs, tag = 'smem constant byte address 0x4 - core index']
  #allocation1 [shape = 'u32[144,128]{1,0:T(1,128)}', space=vmem, size = 0x12000, scoped, tag = 'internal scratch']
  #allocation2 [shape = 'f32[128,128]{1,0:T(8,128)}', space=vmem, size = 0x10000, scoped, tag = 'scratch operand']
  %s0 = inlined_call_operand.vmem [shape: bf16[128,128], index: 0, kind: input, shape index: {}]
  %s1 = inlined_call_operand.vmem [shape: bf16[128,128], index: 1, kind: input, shape index: {}]
  %s2 = inlined_call_operand.vmem [shape: f32[1,128], index: 2, kind: input, shape index: {}]
  %s3 = inlined_call_operand.vmem [shape: f32[128,128], index: 3, kind: output, shape index: {}]
  %s4 = sld [smem:[#allocation0]]
  $region30: #{network_forward.9} parent=0
    _
  %s6 = ssub.s32 1, %s4
  %s7 = scalar_select 0, %s6, %s4
  // Predicated region
  $region2: #{network_forward.9} parent=0 // pred_check
    _
  $region3: #{network_forward.9} parent=0 // pred_check_branch
    %9 = sbr.rel (0) target = $region5
  $region4: #{network_forward.9} parent=0 // pred_region
    _
  $region5: #{network_forward.9} parent=0 // pred_fallthru
    _
  // Predicated region
  $region6: #{network_forward.9} parent=0 // pred_check
    _
  $region7: #{network_forward.9} parent=0 // pred_check_branch
    %11 = sbr.rel (0) target = $region9
  $region8: #{network_forward.9} parent=0 // pred_region
    _
  $region9: #{network_forward.9} parent=0 // pred_fallthru
    _
  // Predicated region
  $region10: #{network_forward.9} parent=0 // pred_check
    _
  $region11: #{network_forward.9} parent=0 // pred_check_branch
    %13 = sbr.rel (0) target = $region13
  $region12: #{network_forward.9} parent=0 // pred_region
    _
  $region13: #{network_forward.9} parent=0 // pred_fallthru
    _
  %p15 = scmp.eq.s32.totalorder 0, 0
  // Predicated region
  $region14: #{network_forward.9} parent=0 // pred_check
    %p16 = pneg %p15
  $region15: #{network_forward.9} parent=0 // pred_check_branch
    %18 = sbr.rel (%p16) target = $region17
  $region16: #{network_forward.9} parent=0 // pred_region
    %19 = vst [vmem:[#allocation2] sm:$0xff] 0.0
    %20 = vst [vmem:[#allocation2 + $0x8] sm:$0xff] 0.0
    %21 = vst [vmem:[#allocation2 + $0x10] sm:$0xff] 0.0
    %22 = vst [vmem:[#allocation2 + $0x18] sm:$0xff] 0.0
    %23 = vst [vmem:[#allocation2 + $0x20] sm:$0xff] 0.0
    %24 = vst [vmem:[#allocation2 + $0x28] sm:$0xff] 0.0
    %25 = vst [vmem:[#allocation2 + $0x30] sm:$0xff] 0.0
    %26 = vst [vmem:[#allocation2 + $0x38] sm:$0xff] 0.0
    %27 = vst [vmem:[#allocation2 + $0x40] sm:$0xff] 0.0
    %28 = vst [vmem:[#allocation2 + $0x48] sm:$0xff] 0.0
    %29 = vst [vmem:[#allocation2 + $0x50] sm:$0xff] 0.0
    %30 = vst [vmem:[#allocation2 + $0x58] sm:$0xff] 0.0
    %31 = vst [vmem:[#allocation2 + $0x60] sm:$0xff] 0.0
    %32 = vst [vmem:[#allocation2 + $0x68] sm:$0xff] 0.0
    %33 = vst [vmem:[#allocation2 + $0x70] sm:$0xff] 0.0
    %34 = vst [vmem:[#allocation2 + $0x78] sm:$0xff] 0.0
  $region17: #{network_forward.9} parent=0 // pred_fallthru
    _
  %v35 = vld [vmem:[#allocation2] sm:$0xff]
  %v36 = vld [vmem:[#allocation2 + $0x8] sm:$0xff]
  %v37 = vld [vmem:[#allocation2 + $0x10] sm:$0xff]
  %v38 = vld [vmem:[#allocation2 + $0x18] sm:$0xff]
  %v39 = vld [vmem:[#allocation2 + $0x20] sm:$0xff]
  %v40 = vld [vmem:[#allocation2 + $0x28] sm:$0xff]
  %v41 = vld [vmem:[#allocation2 + $0x30] sm:$0xff]
  %v42 = vld [vmem:[#allocation2 + $0x38] sm:$0xff]
  %v43 = vld [vmem:[#allocation2 + $0x40] sm:$0xff]
  %v44 = vld [vmem:[#allocation2 + $0x48] sm:$0xff]
  %v45 = vld [vmem:[#allocation2 + $0x50] sm:$0xff]
  %v46 = vld [vmem:[#allocation2 + $0x58] sm:$0xff]
  %v47 = vld [vmem:[#allocation2 + $0x60] sm:$0xff]
  %v48 = vld [vmem:[#allocation2 + $0x68] sm:$0xff]
  %v49 = vld [vmem:[#allocation2 + $0x70] sm:$0xff]
  %v50 = vld [vmem:[#allocation2 + $0x78] sm:$0xff]
  %v51 = vld [vmem:[%s0] sm:$0xf]
  %v52 = vld [vmem:[%s0 + $0x4] sm:$0xf]
  %v53 = vld [vmem:[%s0 + $0x8] sm:$0xf]
  %v54 = vld [vmem:[%s0 + $0xc] sm:$0xf]
  %v55 = vld [vmem:[%s0 + $0x10] sm:$0xf]
  %v56 = vld [vmem:[%s0 + $0x14] sm:$0xf]
  %v57 = vld [vmem:[%s0 + $0x18] sm:$0xf]
  %v58 = vld [vmem:[%s0 + $0x1c] sm:$0xf]
  %v59 = vld [vmem:[%s0 + $0x20] sm:$0xf]
  %v60 = vld [vmem:[%s0 + $0x24] sm:$0xf]
  %v61 = vld [vmem:[%s0 + $0x28] sm:$0xf]
  %v62 = vld [vmem:[%s0 + $0x2c] sm:$0xf]
  %v63 = vld [vmem:[%s0 + $0x30] sm:$0xf]
  %v64 = vld [vmem:[%s0 + $0x34] sm:$0xf]
  %v65 = vld [vmem:[%s0 + $0x38] sm:$0xf]
  %v66 = vld [vmem:[%s0 + $0x3c] sm:$0xf]
  %v67 = vld [vmem:[%s1] sm:$0xf]
  %v68 = vld [vmem:[%s1 + $0x4] sm:$0xf]
  %v69 = vld [vmem:[%s1 + $0x8] sm:$0xf]
  %v70 = vld [vmem:[%s1 + $0xc] sm:$0xf]
  %v71 = vld [vmem:[%s1 + $0x10] sm:$0xf]
  %v72 = vld [vmem:[%s1 + $0x14] sm:$0xf]
  %v73 = vld [vmem:[%s1 + $0x18] sm:$0xf]
  %v74 = vld [vmem:[%s1 + $0x1c] sm:$0xf]
  %v75 = vld [vmem:[%s1 + $0x20] sm:$0xf]
  %v76 = vld [vmem:[%s1 + $0x24] sm:$0xf]
  %v77 = vld [vmem:[%s1 + $0x28] sm:$0xf]
  %v78 = vld [vmem:[%s1 + $0x2c] sm:$0xf]
  %v79 = vld [vmem:[%s1 + $0x30] sm:$0xf]
  %v80 = vld [vmem:[%s1 + $0x34] sm:$0xf]
  %v81 = vld [vmem:[%s1 + $0x38] sm:$0xf]
  %v82 = vld [vmem:[%s1 + $0x3c] sm:$0xf]
  %v99 = vunpack.c.l.b16 %v51
  %v100 = vunpack.c.l.b16 %v52
  %v101 = vunpack.c.l.b16 %v53
  %v102 = vunpack.c.l.b16 %v54
  %v103 = vunpack.c.l.b16 %v55
  %v104 = vunpack.c.l.b16 %v56
  %v105 = vunpack.c.l.b16 %v57
  %v106 = vunpack.c.l.b16 %v58
  %v107 = vunpack.c.l.b16 %v59
  %v108 = vunpack.c.l.b16 %v60
  %v109 = vunpack.c.l.b16 %v61
  %v110 = vunpack.c.l.b16 %v62
  %v111 = vunpack.c.l.b16 %v63
  %v112 = vunpack.c.l.b16 %v64
  %v113 = vunpack.c.l.b16 %v65
  %v114 = vunpack.c.l.b16 %v66
  %v115 = vpack.c.b16 %v100, %v99
  %v116 = vpack.c.b16 %v102, %v101
  %v117 = vpack.c.b16 %v104, %v103
  %v118 = vpack.c.b16 %v106, %v105
  %v119 = vpack.c.b16 %v108, %v107
  %v120 = vpack.c.b16 %v110, %v109
  %v121 = vpack.c.b16 %v112, %v111
  %v122 = vpack.c.b16 %v114, %v113
  %v147 = vunpack.c.l.b16 %v67
  %v148 = vunpack.c.l.b16 %v68
  %v149 = vunpack.c.l.b16 %v69
  %v150 = vunpack.c.l.b16 %v70
  %v151 = vunpack.c.l.b16 %v71
  %v152 = vunpack.c.l.b16 %v72
  %v153 = vunpack.c.l.b16 %v73
  %v154 = vunpack.c.l.b16 %v74
  %v155 = vunpack.c.l.b16 %v75
  %v156 = vunpack.c.l.b16 %v76
  %v157 = vunpack.c.l.b16 %v77
  %v158 = vunpack.c.l.b16 %v78
  %v159 = vunpack.c.l.b16 %v79
  %v160 = vunpack.c.l.b16 %v80
  %v161 = vunpack.c.l.b16 %v81
  %v162 = vunpack.c.l.b16 %v82
  %v163 = vpack.c.b16 %v148, %v147
  %v164 = vpack.c.b16 %v150, %v149
  %v165 = vpack.c.b16 %v152, %v151
  %v166 = vpack.c.b16 %v154, %v153
  %v167 = vpack.c.b16 %v156, %v155
  %v168 = vpack.c.b16 %v158, %v157
  %v169 = vpack.c.b16 %v160, %v159
  %v170 = vpack.c.b16 %v162, %v161
  %179 = vmatprep.subr.bf16.mxu0 0
  %180 = vmatpush1.bf16.msra.mxu0 %v163
  %181 = vmatprep.subr.bf16.mxu0 0
  %182 = vmatpush1.bf16.msra.mxu0 %v164
  %183 = vmatprep.subr.bf16.mxu0 0
  %184 = vmatpush1.bf16.msra.mxu0 %v165
  %185 = vmatprep.subr.bf16.mxu0 0
  %186 = vmatpush1.bf16.msra.mxu0 %v166
  %187 = vmatprep.subr.bf16.mxu0 0
  %188 = vmatpush1.bf16.msra.mxu0 %v167
  %189 = vmatprep.subr.bf16.mxu0 0
  %190 = vmatpush1.bf16.msra.mxu0 %v168
  %191 = vmatprep.subr.bf16.mxu0 0
  %192 = vmatpush1.bf16.msra.mxu0 %v169
  %193 = vmatprep.subr.bf16.mxu0 0
  %194 = vmatpush1.bf16.msra.mxu0 %v170
  %195 = vmatprep.subr.bf16.mxu0 0
  %196 = vmatpush1.bf16.msra.mxu0 0
  %197 = vmatprep.subr.bf16.mxu0 0
  %198 = vmatpush1.bf16.msra.mxu0 0
  %199 = vmatprep.subr.bf16.mxu0 0
  %200 = vmatpush1.bf16.msra.mxu0 0
  %201 = vmatprep.subr.bf16.mxu0 0
  %202 = vmatpush1.bf16.msra.mxu0 0
  %203 = vmatprep.subr.bf16.mxu0 0
  %204 = vmatpush1.bf16.msra.mxu0 0
  %205 = vmatprep.subr.bf16.mxu0 0
  %206 = vmatpush1.bf16.msra.mxu0 0
  %207 = vmatprep.subr.bf16.mxu0 0
  %208 = vmatpush1.bf16.msra.mxu0 0
  %209 = vmatprep.subr.bf16.mxu0 0
  %210 = vmatpush1.bf16.msra.mxu0 0
  %211 = vmatprep.mubr.bf16.mxu0 0
  %212 = vmatmul.mubr.bf16.gmra.mrb[0].mxu0 %v115
  %v213 = vpop.f32.mrb[0].mxu0
  %v214 = vadd.f32 0.0, %v213
  %v215 = vpop.f32.mrb[0].mxu0
  %v216 = vpop.f32.mrb[0].mxu0
  %v217 = vadd.f32 0.0, %v216
  %v218 = vpop.f32.mrb[0].mxu0
  %219 = vmatprep.mubr.bf16.mxu0 0
  %220 = vmatmul.mubr.bf16.gmra.mrb[0].mxu0 %v116
  %v221 = vpop.f32.mrb[0].mxu0
  %v222 = vadd.f32 0.0, %v221
  %v223 = vpop.f32.mrb[0].mxu0
  %v224 = vpop.f32.mrb[0].mxu0
  %v225 = vadd.f32 0.0, %v224
  %v226 = vpop.f32.mrb[0].mxu0
  %227 = vmatprep.mubr.bf16.mxu0 0
  %228 = vmatmul.mubr.bf16.gmra.mrb[0].mxu0 %v117
  %v229 = vpop.f32.mrb[0].mxu0
  %v230 = vadd.f32 0.0, %v229
  %v231 = vpop.f32.mrb[0].mxu0
  %v232 = vpop.f32.mrb[0].mxu0
  %v233 = vadd.f32 0.0, %v232
  %v234 = vpop.f32.mrb[0].mxu0
  %235 = vmatprep.mubr.bf16.mxu0 0
  %236 = vmatmul.mubr.bf16.gmra.mrb[0].mxu0 %v118
  %v237 = vpop.f32.mrb[0].mxu0
  %v238 = vadd.f32 0.0, %v237
  %v239 = vpop.f32.mrb[0].mxu0
  %v240 = vpop.f32.mrb[0].mxu0
  %v241 = vadd.f32 0.0, %v240
  %v242 = vpop.f32.mrb[0].mxu0
  %243 = vmatprep.mubr.bf16.mxu0 0
  %244 = vmatmul.mubr.bf16.gmra.mrb[0].mxu0 %v119
  %v245 = vpop.f32.mrb[0].mxu0
  %v246 = vadd.f32 0.0, %v245
  %v247 = vpop.f32.mrb[0].mxu0
  %v248 = vpop.f32.mrb[0].mxu0
  %v249 = vadd.f32 0.0, %v248
  %v250 = vpop.f32.mrb[0].mxu0
  %251 = vmatprep.mubr.bf16.mxu0 0
  %252 = vmatmul.mubr.bf16.gmra.mrb[0].mxu0 %v120
  %v253 = vpop.f32.mrb[0].mxu0
  %v254 = vadd.f32 0.0, %v253
  %v255 = vpop.f32.mrb[0].mxu0
  %v256 = vpop.f32.mrb[0].mxu0
  %v257 = vadd.f32 0.0, %v256
  %v258 = vpop.f32.mrb[0].mxu0
  %259 = vmatprep.mubr.bf16.mxu0 0
  %260 = vmatmul.mubr.bf16.gmra.mrb[0].mxu0 %v121
  %v261 = vpop.f32.mrb[0].mxu0
  %v262 = vadd.f32 0.0, %v261
  %v263 = vpop.f32.mrb[0].mxu0
  %v264 = vpop.f32.mrb[0].mxu0
  %v265 = vadd.f32 0.0, %v264
  %v266 = vpop.f32.mrb[0].mxu0
  %267 = vmatprep.mubr.bf16.mxu0 0
  %268 = vmatmul.mubr.bf16.gmra.mrb[0].mxu0 %v122
  %v269 = vpop.f32.mrb[0].mxu0
  %v270 = vadd.f32 0.0, %v269
  %v271 = vpop.f32.mrb[0].mxu0
  %v272 = vpop.f32.mrb[0].mxu0
  %v273 = vadd.f32 0.0, %v272
  %v274 = vpop.f32.mrb[0].mxu0
  %275 = vdwg.mxu0
  %v276 = vadd.f32 %v35, %v214
  %v277 = vadd.f32 %v36, %v217
  %v278 = vadd.f32 %v37, %v222
  %v279 = vadd.f32 %v38, %v225
  %v280 = vadd.f32 %v39, %v230
  %v281 = vadd.f32 %v40, %v233
  %v282 = vadd.f32 %v41, %v238
  %v283 = vadd.f32 %v42, %v241
  %v284 = vadd.f32 %v43, %v246
  %v285 = vadd.f32 %v44, %v249
  %v286 = vadd.f32 %v45, %v254
  %v287 = vadd.f32 %v46, %v257
  %v288 = vadd.f32 %v47, %v262
  %v289 = vadd.f32 %v48, %v265
  %v290 = vadd.f32 %v49, %v270
  %v291 = vadd.f32 %v50, %v273
  %292 = vst [vmem:[#allocation2] sm:$0xff] %v276
  %293 = vst [vmem:[#allocation2 + $0x8] sm:$0xff] %v277
  %294 = vst [vmem:[#allocation2 + $0x10] sm:$0xff] %v278
  %295 = vst [vmem:[#allocation2 + $0x18] sm:$0xff] %v279
  %296 = vst [vmem:[#allocation2 + $0x20] sm:$0xff] %v280
  %297 = vst [vmem:[#allocation2 + $0x28] sm:$0xff] %v281
  %298 = vst [vmem:[#allocation2 + $0x30] sm:$0xff] %v282
  %299 = vst [vmem:[#allocation2 + $0x38] sm:$0xff] %v283
  %300 = vst [vmem:[#allocation2 + $0x40] sm:$0xff] %v284
  %301 = vst [vmem:[#allocation2 + $0x48] sm:$0xff] %v285
  %302 = vst [vmem:[#allocation2 + $0x50] sm:$0xff] %v286
  %303 = vst [vmem:[#allocation2 + $0x58] sm:$0xff] %v287
  %304 = vst [vmem:[#allocation2 + $0x60] sm:$0xff] %v288
  %305 = vst [vmem:[#allocation2 + $0x68] sm:$0xff] %v289
  %306 = vst [vmem:[#allocation2 + $0x70] sm:$0xff] %v290
  %307 = vst [vmem:[#allocation2 + $0x78] sm:$0xff] %v291
  // Predicated region
  $region18: #{network_forward.9} parent=0 // pred_check
    %p308 = pneg %p15
  $region19: #{network_forward.9} parent=0 // pred_check_branch
    %310 = sbr.rel (%p308) target = $region21
  $region20: #{network_forward.9} parent=0 // pred_region
    %v311 = vld [vmem:[#allocation2] sm:$0xff]
    %v312 = vld [vmem:[#allocation2 + $0x8] sm:$0xff]
    %v313 = vld [vmem:[#allocation2 + $0x10] sm:$0xff]
    %v314 = vld [vmem:[#allocation2 + $0x18] sm:$0xff]
    %v315 = vld [vmem:[#allocation2 + $0x20] sm:$0xff]
    %v316 = vld [vmem:[#allocation2 + $0x28] sm:$0xff]
    %v317 = vld [vmem:[#allocation2 + $0x30] sm:$0xff]
    %v318 = vld [vmem:[#allocation2 + $0x38] sm:$0xff]
    %v319 = vld [vmem:[#allocation2 + $0x40] sm:$0xff]
    %v320 = vld [vmem:[#allocation2 + $0x48] sm:$0xff]
    %v321 = vld [vmem:[#allocation2 + $0x50] sm:$0xff]
    %v322 = vld [vmem:[#allocation2 + $0x58] sm:$0xff]
    %v323 = vld [vmem:[#allocation2 + $0x60] sm:$0xff]
    %v324 = vld [vmem:[#allocation2 + $0x68] sm:$0xff]
    %v325 = vld [vmem:[#allocation2 + $0x70] sm:$0xff]
    %v326 = vld [vmem:[#allocation2 + $0x78] sm:$0xff]
    %v327 = vld [vmem:[%s2] sm:$0x1]
    %v329 = vlaneseq
    %v330 = vshrl.u32 %v329, 7
    %v331 = vsub.s32 0, %v330
    %v332 = vrot.slane %v327, %v331
    %v334 = vadd.f32 %v311, %v332
    %v335 = vadd.f32 %v312, %v332
    %v336 = vadd.f32 %v313, %v332
    %v337 = vadd.f32 %v314, %v332
    %v338 = vadd.f32 %v315, %v332
    %v339 = vadd.f32 %v316, %v332
    %v340 = vadd.f32 %v317, %v332
    %v341 = vadd.f32 %v318, %v332
    %v342 = vadd.f32 %v319, %v332
    %v343 = vadd.f32 %v320, %v332
    %v344 = vadd.f32 %v321, %v332
    %v345 = vadd.f32 %v322, %v332
    %v346 = vadd.f32 %v323, %v332
    %v347 = vadd.f32 %v324, %v332
    %v348 = vadd.f32 %v325, %v332
    %v349 = vadd.f32 %v326, %v332
    %v350 = vmax.f32 %v334, 0.0
    %v351 = vmax.f32 %v335, 0.0
    %v352 = vmax.f32 %v336, 0.0
    %v353 = vmax.f32 %v337, 0.0
    %v354 = vmax.f32 %v338, 0.0
    %v355 = vmax.f32 %v339, 0.0
    %v356 = vmax.f32 %v340, 0.0
    %v357 = vmax.f32 %v341, 0.0
    %v358 = vmax.f32 %v342, 0.0
    %v359 = vmax.f32 %v343, 0.0
    %v360 = vmax.f32 %v344, 0.0
    %v361 = vmax.f32 %v345, 0.0
    %v362 = vmax.f32 %v346, 0.0
    %v363 = vmax.f32 %v347, 0.0
    %v364 = vmax.f32 %v348, 0.0
    %v365 = vmax.f32 %v349, 0.0
    %366 = vst [vmem:[%s3] sm:$0xff] %v350
    %367 = vst [vmem:[%s3 + $0x8] sm:$0xff] %v351
    %368 = vst [vmem:[%s3 + $0x10] sm:$0xff] %v352
    %369 = vst [vmem:[%s3 + $0x18] sm:$0xff] %v353
    %370 = vst [vmem:[%s3 + $0x20] sm:$0xff] %v354
    %371 = vst [vmem:[%s3 + $0x28] sm:$0xff] %v355
    %372 = vst [vmem:[%s3 + $0x30] sm:$0xff] %v356
    %373 = vst [vmem:[%s3 + $0x38] sm:$0xff] %v357
    %374 = vst [vmem:[%s3 + $0x40] sm:$0xff] %v358
    %375 = vst [vmem:[%s3 + $0x48] sm:$0xff] %v359
    %376 = vst [vmem:[%s3 + $0x50] sm:$0xff] %v360
    %377 = vst [vmem:[%s3 + $0x58] sm:$0xff] %v361
    %378 = vst [vmem:[%s3 + $0x60] sm:$0xff] %v362
    %379 = vst [vmem:[%s3 + $0x68] sm:$0xff] %v363
    %380 = vst [vmem:[%s3 + $0x70] sm:$0xff] %v364
    %381 = vst [vmem:[%s3 + $0x78] sm:$0xff] %v365
  $region21: #{network_forward.9} parent=0 // pred_fallthru
    _
  // Predicated region
  $region22: #{network_forward.9} parent=0 // pred_check
    _
  $region23: #{network_forward.9} parent=0 // pred_check_branch
    %383 = sbr.rel (0) target = $region25
  $region24: #{network_forward.9} parent=0 // pred_region
    _
  $region25: #{network_forward.9} parent=0 // pred_fallthru
    _
  // Predicated region
  $region26: #{network_forward.9} parent=0 // pred_check
    _
  $region27: #{network_forward.9} parent=0 // pred_check_branch
    %385 = sbr.rel (0) target = $region29
  $region28: #{network_forward.9} parent=0 // pred_region
    _
  $region29: #{network_forward.9} parent=0 // pred_fallthru
    _

// kernel: network_forward.13
$region0: #{network_forward.13}
  #allocation0 [shape = 'u32[]', space=smem, size = 0x4, offset = 0x4, fixed_abs, tag = 'smem constant byte address 0x4 - core index']
  #allocation1 [shape = 'u32[144,128]{1,0:T(1,128)}', space=vmem, size = 0x12000, scoped, tag = 'internal scratch']
  #allocation2 [shape = 'f32[32,128]{1,0:T(8,128)}', space=vmem, size = 0x4000, scoped, tag = 'scratch operand']
  %s0 = inlined_call_operand.vmem [shape: bf16[32,128], index: 0, kind: input, shape index: {}]
  %s1 = inlined_call_operand.vmem [shape: bf16[128,128], index: 1, kind: input, shape index: {}]
  %s2 = inlined_call_operand.vmem [shape: f32[1,128], index: 2, kind: input, shape index: {}]
  %s3 = inlined_call_operand.vmem [shape: f32[32,128], index: 3, kind: output, shape index: {}]
  %s4 = sld [smem:[#allocation0]]
  $region30: #{network_forward.13} parent=0
    _
  %s6 = ssub.s32 1, %s4
  %s7 = scalar_select 0, %s6, %s4
  // Predicated region
  $region2: #{network_forward.13} parent=0 // pred_check
    _
  $region3: #{network_forward.13} parent=0 // pred_check_branch
    %9 = sbr.rel (0) target = $region5
  $region4: #{network_forward.13} parent=0 // pred_region
    _
  $region5: #{network_forward.13} parent=0 // pred_fallthru
    _
  // Predicated region
  $region6: #{network_forward.13} parent=0 // pred_check
    _
  $region7: #{network_forward.13} parent=0 // pred_check_branch
    %11 = sbr.rel (0) target = $region9
  $region8: #{network_forward.13} parent=0 // pred_region
    _
  $region9: #{network_forward.13} parent=0 // pred_fallthru
    _
  // Predicated region
  $region10: #{network_forward.13} parent=0 // pred_check
    _
  $region11: #{network_forward.13} parent=0 // pred_check_branch
    %13 = sbr.rel (0) target = $region13
  $region12: #{network_forward.13} parent=0 // pred_region
    _
  $region13: #{network_forward.13} parent=0 // pred_fallthru
    _
  %p15 = scmp.eq.s32.totalorder 0, 0
  // Predicated region
  $region14: #{network_forward.13} parent=0 // pred_check
    %p16 = pneg %p15
  $region15: #{network_forward.13} parent=0 // pred_check_branch
    %18 = sbr.rel (%p16) target = $region17
  $region16: #{network_forward.13} parent=0 // pred_region
    %19 = vst [vmem:[#allocation2] sm:$0xff] 0.0
    %20 = vst [vmem:[#allocation2 + $0x8] sm:$0xff] 0.0
    %21 = vst [vmem:[#allocation2 + $0x10] sm:$0xff] 0.0
    %22 = vst [vmem:[#allocation2 + $0x18] sm:$0xff] 0.0
  $region17: #{network_forward.13} parent=0 // pred_fallthru
    _
  %v23 = vld [vmem:[#allocation2] sm:$0xff]
  %v24 = vld [vmem:[#allocation2 + $0x8] sm:$0xff]
  %v25 = vld [vmem:[#allocation2 + $0x10] sm:$0xff]
  %v26 = vld [vmem:[#allocation2 + $0x18] sm:$0xff]
  %v27 = vld [vmem:[%s0] sm:$0xf]
  %v28 = vld [vmem:[%s0 + $0x4] sm:$0xf]
  %v29 = vld [vmem:[%s0 + $0x8] sm:$0xf]
  %v30 = vld [vmem:[%s0 + $0xc] sm:$0xf]
  %v31 = vld [vmem:[%s1] sm:$0xf]
  %v32 = vld [vmem:[%s1 + $0x4] sm:$0xf]
  %v33 = vld [vmem:[%s1 + $0x8] sm:$0xf]
  %v34 = vld [vmem:[%s1 + $0xc] sm:$0xf]
  %v35 = vld [vmem:[%s1 + $0x10] sm:$0xf]
  %v36 = vld [vmem:[%s1 + $0x14] sm:$0xf]
  %v37 = vld [vmem:[%s1 + $0x18] sm:$0xf]
  %v38 = vld [vmem:[%s1 + $0x1c] sm:$0xf]
  %v39 = vld [vmem:[%s1 + $0x20] sm:$0xf]
  %v40 = vld [vmem:[%s1 + $0x24] sm:$0xf]
  %v41 = vld [vmem:[%s1 + $0x28] sm:$0xf]
  %v42 = vld [vmem:[%s1 + $0x2c] sm:$0xf]
  %v43 = vld [vmem:[%s1 + $0x30] sm:$0xf]
  %v44 = vld [vmem:[%s1 + $0x34] sm:$0xf]
  %v45 = vld [vmem:[%s1 + $0x38] sm:$0xf]
  %v46 = vld [vmem:[%s1 + $0x3c] sm:$0xf]
  %v51 = vunpack.c.l.b16 %v27
  %v52 = vunpack.c.l.b16 %v28
  %v53 = vunpack.c.l.b16 %v29
  %v54 = vunpack.c.l.b16 %v30
  %v55 = vpack.c.b16 %v52, %v51
  %v56 = vpack.c.b16 %v54, %v53
  %v75 = vunpack.c.l.b16 %v31
  %v76 = vunpack.c.l.b16 %v32
  %v77 = vunpack.c.l.b16 %v33
  %v78 = vunpack.c.l.b16 %v34
  %v79 = vunpack.c.l.b16 %v35
  %v80 = vunpack.c.l.b16 %v36
  %v81 = vunpack.c.l.b16 %v37
  %v82 = vunpack.c.l.b16 %v38
  %v83 = vunpack.c.l.b16 %v39
  %v84 = vunpack.c.l.b16 %v40
  %v85 = vunpack.c.l.b16 %v41
  %v86 = vunpack.c.l.b16 %v42
  %v87 = vunpack.c.l.b16 %v43
  %v88 = vunpack.c.l.b16 %v44
  %v89 = vunpack.c.l.b16 %v45
  %v90 = vunpack.c.l.b16 %v46
  %v91 = vpack.c.b16 %v76, %v75
  %v92 = vpack.c.b16 %v78, %v77
  %v93 = vpack.c.b16 %v80, %v79
  %v94 = vpack.c.b16 %v82, %v81
  %v95 = vpack.c.b16 %v84, %v83
  %v96 = vpack.c.b16 %v86, %v85
  %v97 = vpack.c.b16 %v88, %v87
  %v98 = vpack.c.b16 %v90, %v89
  %107 = vmatprep.subr.bf16.mxu0 0
  %108 = vmatpush1.bf16.msra.mxu0 %v91
  %109 = vmatprep.subr.bf16.mxu0 0
  %110 = vmatpush1.bf16.msra.mxu0 %v92
  %111 = vmatprep.subr.bf16.mxu0 0
  %112 = vmatpush1.bf16.msra.mxu0 %v93
  %113 = vmatprep.subr.bf16.mxu0 0
  %114 = vmatpush1.bf16.msra.mxu0 %v94
  %115 = vmatprep.subr.bf16.mxu0 0
  %116 = vmatpush1.bf16.msra.mxu0 %v95
  %117 = vmatprep.subr.bf16.mxu0 0
  %118 = vmatpush1.bf16.msra.mxu0 %v96
  %119 = vmatprep.subr.bf16.mxu0 0
  %120 = vmatpush1.bf16.msra.mxu0 %v97
  %121 = vmatprep.subr.bf16.mxu0 0
  %122 = vmatpush1.bf16.msra.mxu0 %v98
  %123 = vmatprep.subr.bf16.mxu0 0
  %124 = vmatpush1.bf16.msra.mxu0 0
  %125 = vmatprep.subr.bf16.mxu0 0
  %126 = vmatpush1.bf16.msra.mxu0 0
  %127 = vmatprep.subr.bf16.mxu0 0
  %128 = vmatpush1.bf16.msra.mxu0 0
  %129 = vmatprep.subr.bf16.mxu0 0
  %130 = vmatpush1.bf16.msra.mxu0 0
  %131 = vmatprep.subr.bf16.mxu0 0
  %132 = vmatpush1.bf16.msra.mxu0 0
  %133 = vmatprep.subr.bf16.mxu0 0
  %134 = vmatpush1.bf16.msra.mxu0 0
  %135 = vmatprep.subr.bf16.mxu0 0
  %136 = vmatpush1.bf16.msra.mxu0 0
  %137 = vmatprep.subr.bf16.mxu0 0
  %138 = vmatpush1.bf16.msra.mxu0 0
  %139 = vmatprep.mubr.bf16.mxu0 0
  %140 = vmatmul.mubr.bf16.gmra.mrb[0].mxu0 %v55
  %v141 = vpop.f32.mrb[0].mxu0
  %v142 = vadd.f32 0.0, %v141
  %v143 = vpop.f32.mrb[0].mxu0
  %v144 = vpop.f32.mrb[0].mxu0
  %v145 = vadd.f32 0.0, %v144
  %v146 = vpop.f32.mrb[0].mxu0
  %147 = vmatprep.mubr.bf16.mxu0 0
  %148 = vmatmul.mubr.bf16.gmra.mrb[0].mxu0 %v56
  %v149 = vpop.f32.mrb[0].mxu0
  %v150 = vadd.f32 0.0, %v149
  %v151 = vpop.f32.mrb[0].mxu0
  %v152 = vpop.f32.mrb[0].mxu0
  %v153 = vadd.f32 0.0, %v152
  %v154 = vpop.f32.mrb[0].mxu0
  %155 = vdwg.mxu0
  %v156 = vadd.f32 %v23, %v142
  %v157 = vadd.f32 %v24, %v145
  %v158 = vadd.f32 %v25, %v150
  %v159 = vadd.f32 %v26, %v153
  %160 = vst [vmem:[#allocation2] sm:$0xff] %v156
  %161 = vst [vmem:[#allocation2 + $0x8] sm:$0xff] %v157
  %162 = vst [vmem:[#allocation2 + $0x10] sm:$0xff] %v158
  %163 = vst [vmem:[#allocation2 + $0x18] sm:$0xff] %v159
  // Predicated region
  $region18: #{network_forward.13} parent=0 // pred_check
    %p164 = pneg %p15
  $region19: #{network_forward.13} parent=0 // pred_check_branch
    %166 = sbr.rel (%p164) target = $region21
  $region20: #{network_forward.13} parent=0 // pred_region
    %v167 = vld [vmem:[#allocation2] sm:$0xff]
    %v168 = vld [vmem:[#allocation2 + $0x8] sm:$0xff]
    %v169 = vld [vmem:[#allocation2 + $0x10] sm:$0xff]
    %v170 = vld [vmem:[#allocation2 + $0x18] sm:$0xff]
    %v171 = vld [vmem:[%s2] sm:$0x1]
    %v173 = vlaneseq
    %v174 = vshrl.u32 %v173, 7
    %v175 = vsub.s32 0, %v174
    %v176 = vrot.slane %v171, %v175
    %v178 = vadd.f32 %v167, %v176
    %v179 = vadd.f32 %v168, %v176
    %v180 = vadd.f32 %v169, %v176
    %v181 = vadd.f32 %v170, %v176
    %v182 = vtanh.pop %v178
    %v183 = vtanh.pop %v179
    %v184 = vtanh.pop %v180
    %v185 = vtanh.pop %v181
    %186 = vst [vmem:[%s3] sm:$0xff] %v182
    %187 = vst [vmem:[%s3 + $0x8] sm:$0xff] %v183
    %188 = vst [vmem:[%s3 + $0x10] sm:$0xff] %v184
    %189 = vst [vmem:[%s3 + $0x18] sm:$0xff] %v185
  $region21: #{network_forward.13} parent=0 // pred_fallthru
    _
  // Predicated region
  $region22: #{network_forward.13} parent=0 // pred_check
    _
  $region23: #{network_forward.13} parent=0 // pred_check_branch
    %191 = sbr.rel (0) target = $region25
  $region24: #{network_forward.13} parent=0 // pred_region
    _
  $region25: #{network_forward.13} parent=0 // pred_fallthru
    _
  // Predicated region
  $region26: #{network_forward.13} parent=0 // pred_check
    _
  $region27: #{network_forward.13} parent=0 // pred_check_branch
    %193 = sbr.rel (0) target = $region29
  $region28: #{network_forward.13} parent=0 // pred_region
    _
  $region29: #{network_forward.13} parent=0 // pred_fallthru
    _

// kernel: network_forward.12
$region0: #{network_forward.12}
  #allocation0 [shape = 'u32[]', space=smem, size = 0x4, offset = 0x4, fixed_abs, tag = 'smem constant byte address 0x4 - core index']
  #allocation1 [shape = 'u32[144,128]{1,0:T(1,128)}', space=vmem, size = 0x12000, scoped, tag = 'internal scratch']
  #allocation2 [shape = 'f32[32,128]{1,0:T(8,128)}', space=vmem, size = 0x4000, scoped, tag = 'scratch operand']
  %s0 = inlined_call_operand.vmem [shape: bf16[32,128], index: 0, kind: input, shape index: {}]
  %s1 = inlined_call_operand.vmem [shape: bf16[128,128], index: 1, kind: input, shape index: {}]
  %s2 = inlined_call_operand.vmem [shape: f32[1,128], index: 2, kind: input, shape index: {}]
  %s3 = inlined_call_operand.vmem [shape: f32[32,128], index: 3, kind: output, shape index: {}]
  %s4 = sld [smem:[#allocation0]]
  $region30: #{network_forward.12} parent=0
    _
  %s6 = ssub.s32 1, %s4
  %s7 = scalar_select 0, %s6, %s4
  // Predicated region
  $region2: #{network_forward.12} parent=0 // pred_check
    _
  $region3: #{network_forward.12} parent=0 // pred_check_branch
    %9 = sbr.rel (0) target = $region5
  $region4: #{network_forward.12} parent=0 // pred_region
    _
  $region5: #{network_forward.12} parent=0 // pred_fallthru
    _
  // Predicated region
  $region6: #{network_forward.12} parent=0 // pred_check
    _
  $region7: #{network_forward.12} parent=0 // pred_check_branch
    %11 = sbr.rel (0) target = $region9
  $region8: #{network_forward.12} parent=0 // pred_region
    _
  $region9: #{network_forward.12} parent=0 // pred_fallthru
    _
  // Predicated region
  $region10: #{network_forward.12} parent=0 // pred_check
    _
  $region11: #{network_forward.12} parent=0 // pred_check_branch
    %13 = sbr.rel (0) target = $region13
  $region12: #{network_forward.12} parent=0 // pred_region
    _
  $region13: #{network_forward.12} parent=0 // pred_fallthru
    _
  %p15 = scmp.eq.s32.totalorder 0, 0
  // Predicated region
  $region14: #{network_forward.12} parent=0 // pred_check
    %p16 = pneg %p15
  $region15: #{network_forward.12} parent=0 // pred_check_branch
    %18 = sbr.rel (%p16) target = $region17
  $region16: #{network_forward.12} parent=0 // pred_region
    %19 = vst [vmem:[#allocation2] sm:$0xff] 0.0
    %20 = vst [vmem:[#allocation2 + $0x8] sm:$0xff] 0.0
    %21 = vst [vmem:[#allocation2 + $0x10] sm:$0xff] 0.0
    %22 = vst [vmem:[#allocation2 + $0x18] sm:$0xff] 0.0
  $region17: #{network_forward.12} parent=0 // pred_fallthru
    _
  %v23 = vld [vmem:[#allocation2] sm:$0xff]
  %v24 = vld [vmem:[#allocation2 + $0x8] sm:$0xff]
  %v25 = vld [vmem:[#allocation2 + $0x10] sm:$0xff]
  %v26 = vld [vmem:[#allocation2 + $0x18] sm:$0xff]
  %v27 = vld [vmem:[%s0] sm:$0xf]
  %v28 = vld [vmem:[%s0 + $0x4] sm:$0xf]
  %v29 = vld [vmem:[%s0 + $0x8] sm:$0xf]
  %v30 = vld [vmem:[%s0 + $0xc] sm:$0xf]
  %v31 = vld [vmem:[%s1] sm:$0xf]
  %v32 = vld [vmem:[%s1 + $0x4] sm:$0xf]
  %v33 = vld [vmem:[%s1 + $0x8] sm:$0xf]
  %v34 = vld [vmem:[%s1 + $0xc] sm:$0xf]
  %v35 = vld [vmem:[%s1 + $0x10] sm:$0xf]
  %v36 = vld [vmem:[%s1 + $0x14] sm:$0xf]
  %v37 = vld [vmem:[%s1 + $0x18] sm:$0xf]
  %v38 = vld [vmem:[%s1 + $0x1c] sm:$0xf]
  %v39 = vld [vmem:[%s1 + $0x20] sm:$0xf]
  %v40 = vld [vmem:[%s1 + $0x24] sm:$0xf]
  %v41 = vld [vmem:[%s1 + $0x28] sm:$0xf]
  %v42 = vld [vmem:[%s1 + $0x2c] sm:$0xf]
  %v43 = vld [vmem:[%s1 + $0x30] sm:$0xf]
  %v44 = vld [vmem:[%s1 + $0x34] sm:$0xf]
  %v45 = vld [vmem:[%s1 + $0x38] sm:$0xf]
  %v46 = vld [vmem:[%s1 + $0x3c] sm:$0xf]
  %v51 = vunpack.c.l.b16 %v27
  %v52 = vunpack.c.l.b16 %v28
  %v53 = vunpack.c.l.b16 %v29
  %v54 = vunpack.c.l.b16 %v30
  %v55 = vpack.c.b16 %v52, %v51
  %v56 = vpack.c.b16 %v54, %v53
  %v75 = vunpack.c.l.b16 %v31
  %v76 = vunpack.c.l.b16 %v32
  %v77 = vunpack.c.l.b16 %v33
  %v78 = vunpack.c.l.b16 %v34
  %v79 = vunpack.c.l.b16 %v35
  %v80 = vunpack.c.l.b16 %v36
  %v81 = vunpack.c.l.b16 %v37
  %v82 = vunpack.c.l.b16 %v38
  %v83 = vunpack.c.l.b16 %v39
  %v84 = vunpack.c.l.b16 %v40
  %v85 = vunpack.c.l.b16 %v41
  %v86 = vunpack.c.l.b16 %v42
  %v87 = vunpack.c.l.b16 %v43
  %v88 = vunpack.c.l.b16 %v44
  %v89 = vunpack.c.l.b16 %v45
  %v90 = vunpack.c.l.b16 %v46
  %v91 = vpack.c.b16 %v76, %v75
  %v92 = vpack.c.b16 %v78, %v77
  %v93 = vpack.c.b16 %v80, %v79
  %v94 = vpack.c.b16 %v82, %v81
  %v95 = vpack.c.b16 %v84, %v83
  %v96 = vpack.c.b16 %v86, %v85
  %v97 = vpack.c.b16 %v88, %v87
  %v98 = vpack.c.b16 %v90, %v89
  %107 = vmatprep.subr.bf16.mxu0 0
  %108 = vmatpush1.bf16.msra.mxu0 %v91
  %109 = vmatprep.subr.bf16.mxu0 0
  %110 = vmatpush1.bf16.msra.mxu0 %v92
  %111 = vmatprep.subr.bf16.mxu0 0
  %112 = vmatpush1.bf16.msra.mxu0 %v93
  %113 = vmatprep.subr.bf16.mxu0 0
  %114 = vmatpush1.bf16.msra.mxu0 %v94
  %115 = vmatprep.subr.bf16.mxu0 0
  %116 = vmatpush1.bf16.msra.mxu0 %v95
  %117 = vmatprep.subr.bf16.mxu0 0
  %118 = vmatpush1.bf16.msra.mxu0 %v96
  %119 = vmatprep.subr.bf16.mxu0 0
  %120 = vmatpush1.bf16.msra.mxu0 %v97
  %121 = vmatprep.subr.bf16.mxu0 0
  %122 = vmatpush1.bf16.msra.mxu0 %v98
  %123 = vmatprep.subr.bf16.mxu0 0
  %124 = vmatpush1.bf16.msra.mxu0 0
  %125 = vmatprep.subr.bf16.mxu0 0
  %126 = vmatpush1.bf16.msra.mxu0 0
  %127 = vmatprep.subr.bf16.mxu0 0
  %128 = vmatpush1.bf16.msra.mxu0 0
  %129 = vmatprep.subr.bf16.mxu0 0
  %130 = vmatpush1.bf16.msra.mxu0 0
  %131 = vmatprep.subr.bf16.mxu0 0
  %132 = vmatpush1.bf16.msra.mxu0 0
  %133 = vmatprep.subr.bf16.mxu0 0
  %134 = vmatpush1.bf16.msra.mxu0 0
  %135 = vmatprep.subr.bf16.mxu0 0
  %136 = vmatpush1.bf16.msra.mxu0 0
  %137 = vmatprep.subr.bf16.mxu0 0
  %138 = vmatpush1.bf16.msra.mxu0 0
  %139 = vmatprep.mubr.bf16.mxu0 0
  %140 = vmatmul.mubr.bf16.gmra.mrb[0].mxu0 %v55
  %v141 = vpop.f32.mrb[0].mxu0
  %v142 = vadd.f32 0.0, %v141
  %v143 = vpop.f32.mrb[0].mxu0
  %v144 = vpop.f32.mrb[0].mxu0
  %v145 = vadd.f32 0.0, %v144
  %v146 = vpop.f32.mrb[0].mxu0
  %147 = vmatprep.mubr.bf16.mxu0 0
  %148 = vmatmul.mubr.bf16.gmra.mrb[0].mxu0 %v56
  %v149 = vpop.f32.mrb[0].mxu0
  %v150 = vadd.f32 0.0, %v149
  %v151 = vpop.f32.mrb[0].mxu0
  %v152 = vpop.f32.mrb[0].mxu0
  %v153 = vadd.f32 0.0, %v152
  %v154 = vpop.f32.mrb[0].mxu0
  %155 = vdwg.mxu0
  %v156 = vadd.f32 %v23, %v142
  %v157 = vadd.f32 %v24, %v145
  %v158 = vadd.f32 %v25, %v150
  %v159 = vadd.f32 %v26, %v153
  %160 = vst [vmem:[#allocation2] sm:$0xff] %v156
  %161 = vst [vmem:[#allocation2 + $0x8] sm:$0xff] %v157
  %162 = vst [vmem:[#allocation2 + $0x10] sm:$0xff] %v158
  %163 = vst [vmem:[#allocation2 + $0x18] sm:$0xff] %v159
  // Predicated region
  $region18: #{network_forward.12} parent=0 // pred_check
    %p164 = pneg %p15
  $region19: #{network_forward.12} parent=0 // pred_check_branch
    %166 = sbr.rel (%p164) target = $region21
  $region20: #{network_forward.12} parent=0 // pred_region
    %v167 = vld [vmem:[#allocation2] sm:$0xff]
    %v168 = vld [vmem:[#allocation2 + $0x8] sm:$0xff]
    %v169 = vld [vmem:[#allocation2 + $0x10] sm:$0xff]
    %v170 = vld [vmem:[#allocation2 + $0x18] sm:$0xff]
    %v171 = vld [vmem:[%s2] sm:$0x1]
    %v173 = vlaneseq
    %v174 = vshrl.u32 %v173, 7
    %v175 = vsub.s32 0, %v174
    %v176 = vrot.slane %v171, %v175
    %v178 = vadd.f32 %v167, %v176
    %v179 = vadd.f32 %v168, %v176
    %v180 = vadd.f32 %v169, %v176
    %v181 = vadd.f32 %v170, %v176
    %182 = vst [vmem:[%s3] sm:$0xff] %v178
    %183 = vst [vmem:[%s3 + $0x8] sm:$0xff] %v179
    %184 = vst [vmem:[%s3 + $0x10] sm:$0xff] %v180
    %185 = vst [vmem:[%s3 + $0x18] sm:$0xff] %v181
  $region21: #{network_forward.12} parent=0 // pred_fallthru
    _
  // Predicated region
  $region22: #{network_forward.12} parent=0 // pred_check
    _
  $region23: #{network_forward.12} parent=0 // pred_check_branch
    %187 = sbr.rel (0) target = $region25
  $region24: #{network_forward.12} parent=0 // pred_region
    _
  $region25: #{network_forward.12} parent=0 // pred_fallthru
    _
  // Predicated region
  $region26: #{network_forward.12} parent=0 // pred_check
    _
  $region27: #{network_forward.12} parent=0 // pred_check_branch
    %189 = sbr.rel (0) target = $region29
  $region28: #{network_forward.12} parent=0 // pred_region
    _
  $region29: #{network_forward.12} parent=0 // pred_fallthru
    _

// kernel: network_forward.14
$region0: #{network_forward.14}
  #allocation0 [shape = 'u32[]', space=smem, size = 0x4, offset = 0x4, fixed_abs, tag = 'smem constant byte address 0x4 - core index']
  #allocation1 [shape = 'u32[144,128]{1,0:T(1,128)}', space=vmem, size = 0x12000, scoped, tag = 'internal scratch']
  #allocation2 [shape = 'f32[32,128]{1,0:T(8,128)}', space=vmem, size = 0x4000, scoped, tag = 'scratch operand']
  %s0 = inlined_call_operand.vmem [shape: bf16[32,128], index: 0, kind: input, shape index: {}]
  %s1 = inlined_call_operand.vmem [shape: bf16[128,128], index: 1, kind: input, shape index: {}]
  %s2 = inlined_call_operand.vmem [shape: f32[1,128], index: 2, kind: input, shape index: {}]
  %s3 = inlined_call_operand.vmem [shape: f32[32,128], index: 3, kind: output, shape index: {}]
  %s4 = sld [smem:[#allocation0]]
  $region30: #{network_forward.14} parent=0
    _
  %s6 = ssub.s32 1, %s4
  %s7 = scalar_select 0, %s6, %s4
  // Predicated region
  $region2: #{network_forward.14} parent=0 // pred_check
    _
  $region3: #{network_forward.14} parent=0 // pred_check_branch
    %9 = sbr.rel (0) target = $region5
  $region4: #{network_forward.14} parent=0 // pred_region
    _
  $region5: #{network_forward.14} parent=0 // pred_fallthru
    _
  // Predicated region
  $region6: #{network_forward.14} parent=0 // pred_check
    _
  $region7: #{network_forward.14} parent=0 // pred_check_branch
    %11 = sbr.rel (0) target = $region9
  $region8: #{network_forward.14} parent=0 // pred_region
    _
  $region9: #{network_forward.14} parent=0 // pred_fallthru
    _
  // Predicated region
  $region10: #{network_forward.14} parent=0 // pred_check
    _
  $region11: #{network_forward.14} parent=0 // pred_check_branch
    %13 = sbr.rel (0) target = $region13
  $region12: #{network_forward.14} parent=0 // pred_region
    _
  $region13: #{network_forward.14} parent=0 // pred_fallthru
    _
  %p15 = scmp.eq.s32.totalorder 0, 0
  // Predicated region
  $region14: #{network_forward.14} parent=0 // pred_check
    %p16 = pneg %p15
  $region15: #{network_forward.14} parent=0 // pred_check_branch
    %18 = sbr.rel (%p16) target = $region17
  $region16: #{network_forward.14} parent=0 // pred_region
    %19 = vst [vmem:[#allocation2] sm:$0xff] 0.0
    %20 = vst [vmem:[#allocation2 + $0x8] sm:$0xff] 0.0
    %21 = vst [vmem:[#allocation2 + $0x10] sm:$0xff] 0.0
    %22 = vst [vmem:[#allocation2 + $0x18] sm:$0xff] 0.0
  $region17: #{network_forward.14} parent=0 // pred_fallthru
    _
  %v23 = vld [vmem:[#allocation2] sm:$0xff]
  %v24 = vld [vmem:[#allocation2 + $0x8] sm:$0xff]
  %v25 = vld [vmem:[#allocation2 + $0x10] sm:$0xff]
  %v26 = vld [vmem:[#allocation2 + $0x18] sm:$0xff]
  %v27 = vld [vmem:[%s0] sm:$0xf]
  %v28 = vld [vmem:[%s0 + $0x4] sm:$0xf]
  %v29 = vld [vmem:[%s0 + $0x8] sm:$0xf]
  %v30 = vld [vmem:[%s0 + $0xc] sm:$0xf]
  %v31 = vld [vmem:[%s1] sm:$0xf]
  %v32 = vld [vmem:[%s1 + $0x4] sm:$0xf]
  %v33 = vld [vmem:[%s1 + $0x8] sm:$0xf]
  %v34 = vld [vmem:[%s1 + $0xc] sm:$0xf]
  %v35 = vld [vmem:[%s1 + $0x10] sm:$0xf]
  %v36 = vld [vmem:[%s1 + $0x14] sm:$0xf]
  %v37 = vld [vmem:[%s1 + $0x18] sm:$0xf]
  %v38 = vld [vmem:[%s1 + $0x1c] sm:$0xf]
  %v39 = vld [vmem:[%s1 + $0x20] sm:$0xf]
  %v40 = vld [vmem:[%s1 + $0x24] sm:$0xf]
  %v41 = vld [vmem:[%s1 + $0x28] sm:$0xf]
  %v42 = vld [vmem:[%s1 + $0x2c] sm:$0xf]
  %v43 = vld [vmem:[%s1 + $0x30] sm:$0xf]
  %v44 = vld [vmem:[%s1 + $0x34] sm:$0xf]
  %v45 = vld [vmem:[%s1 + $0x38] sm:$0xf]
  %v46 = vld [vmem:[%s1 + $0x3c] sm:$0xf]
  %v51 = vunpack.c.l.b16 %v27
  %v52 = vunpack.c.l.b16 %v28
  %v53 = vunpack.c.l.b16 %v29
  %v54 = vunpack.c.l.b16 %v30
  %v55 = vpack.c.b16 %v52, %v51
  %v56 = vpack.c.b16 %v54, %v53
  %v75 = vunpack.c.l.b16 %v31
  %v76 = vunpack.c.l.b16 %v32
  %v77 = vunpack.c.l.b16 %v33
  %v78 = vunpack.c.l.b16 %v34
  %v79 = vunpack.c.l.b16 %v35
  %v80 = vunpack.c.l.b16 %v36
  %v81 = vunpack.c.l.b16 %v37
  %v82 = vunpack.c.l.b16 %v38
  %v83 = vunpack.c.l.b16 %v39
  %v84 = vunpack.c.l.b16 %v40
  %v85 = vunpack.c.l.b16 %v41
  %v86 = vunpack.c.l.b16 %v42
  %v87 = vunpack.c.l.b16 %v43
  %v88 = vunpack.c.l.b16 %v44
  %v89 = vunpack.c.l.b16 %v45
  %v90 = vunpack.c.l.b16 %v46
  %v91 = vpack.c.b16 %v76, %v75
  %v92 = vpack.c.b16 %v78, %v77
  %v93 = vpack.c.b16 %v80, %v79
  %v94 = vpack.c.b16 %v82, %v81
  %v95 = vpack.c.b16 %v84, %v83
  %v96 = vpack.c.b16 %v86, %v85
  %v97 = vpack.c.b16 %v88, %v87
  %v98 = vpack.c.b16 %v90, %v89
  %107 = vmatprep.subr.bf16.mxu0 0
  %108 = vmatpush1.bf16.msra.mxu0 %v91
  %109 = vmatprep.subr.bf16.mxu0 0
  %110 = vmatpush1.bf16.msra.mxu0 %v92
  %111 = vmatprep.subr.bf16.mxu0 0
  %112 = vmatpush1.bf16.msra.mxu0 %v93
  %113 = vmatprep.subr.bf16.mxu0 0
  %114 = vmatpush1.bf16.msra.mxu0 %v94
  %115 = vmatprep.subr.bf16.mxu0 0
  %116 = vmatpush1.bf16.msra.mxu0 %v95
  %117 = vmatprep.subr.bf16.mxu0 0
  %118 = vmatpush1.bf16.msra.mxu0 %v96
  %119 = vmatprep.subr.bf16.mxu0 0
  %120 = vmatpush1.bf16.msra.mxu0 %v97
  %121 = vmatprep.subr.bf16.mxu0 0
  %122 = vmatpush1.bf16.msra.mxu0 %v98
  %123 = vmatprep.subr.bf16.mxu0 0
  %124 = vmatpush1.bf16.msra.mxu0 0
  %125 = vmatprep.subr.bf16.mxu0 0
  %126 = vmatpush1.bf16.msra.mxu0 0
  %127 = vmatprep.subr.bf16.mxu0 0
  %128 = vmatpush1.bf16.msra.mxu0 0
  %129 = vmatprep.subr.bf16.mxu0 0
  %130 = vmatpush1.bf16.msra.mxu0 0
  %131 = vmatprep.subr.bf16.mxu0 0
  %132 = vmatpush1.bf16.msra.mxu0 0
  %133 = vmatprep.subr.bf16.mxu0 0
  %134 = vmatpush1.bf16.msra.mxu0 0
  %135 = vmatprep.subr.bf16.mxu0 0
  %136 = vmatpush1.bf16.msra.mxu0 0
  %137 = vmatprep.subr.bf16.mxu0 0
  %138 = vmatpush1.bf16.msra.mxu0 0
  %139 = vmatprep.mubr.bf16.mxu0 0
  %140 = vmatmul.mubr.bf16.gmra.mrb[0].mxu0 %v55
  %v141 = vpop.f32.mrb[0].mxu0
  %v142 = vadd.f32 0.0, %v141
  %v143 = vpop.f32.mrb[0].mxu0
  %v144 = vpop.f32.mrb[0].mxu0
  %v145 = vadd.f32 0.0, %v144
  %v146 = vpop.f32.mrb[0].mxu0
  %147 = vmatprep.mubr.bf16.mxu0 0
  %148 = vmatmul.mubr.bf16.gmra.mrb[0].mxu0 %v56
  %v149 = vpop.f32.mrb[0].mxu0
  %v150 = vadd.f32 0.0, %v149
  %v151 = vpop.f32.mrb[0].mxu0
  %v152 = vpop.f32.mrb[0].mxu0
  %v153 = vadd.f32 0.0, %v152
  %v154 = vpop.f32.mrb[0].mxu0
  %155 = vdwg.mxu0
  %v156 = vadd.f32 %v23, %v142
  %v157 = vadd.f32 %v24, %v145
  %v158 = vadd.f32 %v25, %v150
  %v159 = vadd.f32 %v26, %v153
  %160 = vst [vmem:[#allocation2] sm:$0xff] %v156
  %161 = vst [vmem:[#allocation2 + $0x8] sm:$0xff] %v157
  %162 = vst [vmem:[#allocation2 + $0x10] sm:$0xff] %v158
  %163 = vst [vmem:[#allocation2 + $0x18] sm:$0xff] %v159
  // Predicated region
  $region18: #{network_forward.14} parent=0 // pred_check
    %p164 = pneg %p15
  $region19: #{network_forward.14} parent=0 // pred_check_branch
    %166 = sbr.rel (%p164) target = $region21
  $region20: #{network_forward.14} parent=0 // pred_region
    %v167 = vld [vmem:[#allocation2] sm:$0xff]
    %v168 = vld [vmem:[#allocation2 + $0x8] sm:$0xff]
    %v169 = vld [vmem:[#allocation2 + $0x10] sm:$0xff]
    %v170 = vld [vmem:[#allocation2 + $0x18] sm:$0xff]
    %v171 = vld [vmem:[%s2] sm:$0x1]
    %v173 = vlaneseq
    %v174 = vshrl.u32 %v173, 7
    %v175 = vsub.s32 0, %v174
    %v176 = vrot.slane %v171, %v175
    %v178 = vadd.f32 %v167, %v176
    %v179 = vadd.f32 %v168, %v176
    %v180 = vadd.f32 %v169, %v176
    %v181 = vadd.f32 %v170, %v176
    %v182 = vmax.f32 %v178, 0.0
    %v183 = vmax.f32 %v179, 0.0
    %v184 = vmax.f32 %v180, 0.0
    %v185 = vmax.f32 %v181, 0.0
    %186 = vst [vmem:[%s3] sm:$0xff] %v182
    %187 = vst [vmem:[%s3 + $0x8] sm:$0xff] %v183
    %188 = vst [vmem:[%s3 + $0x10] sm:$0xff] %v184
    %189 = vst [vmem:[%s3 + $0x18] sm:$0xff] %v185
  $region21: #{network_forward.14} parent=0 // pred_fallthru
    _
  // Predicated region
  $region22: #{network_forward.14} parent=0 // pred_check
    _
  $region23: #{network_forward.14} parent=0 // pred_check_branch
    %191 = sbr.rel (0) target = $region25
  $region24: #{network_forward.14} parent=0 // pred_region
    _
  $region25: #{network_forward.14} parent=0 // pred_fallthru
    _
  // Predicated region
  $region26: #{network_forward.14} parent=0 // pred_check
    _
  $region27: #{network_forward.14} parent=0 // pred_check_branch
    %193 = sbr.rel (0) target = $region29
  $region28: #{network_forward.14} parent=0 // pred_region
    _
  $region29: #{network_forward.14} parent=0 // pred_fallthru
    _

// kernel: network_forward.11
$region0: #{network_forward.11}
  #allocation0 [shape = 'u32[]', space=smem, size = 0x4, offset = 0x4, fixed_abs, tag = 'smem constant byte address 0x4 - core index']
  #allocation1 [shape = 'u32[144,128]{1,0:T(1,128)}', space=vmem, size = 0x12000, scoped, tag = 'internal scratch']
  #allocation2 [shape = 'f32[32,128]{1,0:T(8,128)}', space=vmem, size = 0x4000, scoped, tag = 'scratch operand']
  %s0 = inlined_call_operand.vmem [shape: bf16[32,384], index: 0, kind: input, shape index: {}]
  %s1 = inlined_call_operand.vmem [shape: bf16[384,128], index: 1, kind: input, shape index: {}]
  %s2 = inlined_call_operand.vmem [shape: f32[1,128], index: 2, kind: input, shape index: {}]
  %s3 = inlined_call_operand.vmem [shape: f32[32,128], index: 3, kind: output, shape index: {}]
  %s4 = sld [smem:[#allocation0]]
  $region30: #{network_forward.11} parent=0
    _
  %s6 = ssub.s32 1, %s4
  %s7 = scalar_select 0, %s6, %s4
  // Predicated region
  $region2: #{network_forward.11} parent=0 // pred_check
    _
  $region3: #{network_forward.11} parent=0 // pred_check_branch
    %9 = sbr.rel (0) target = $region5
  $region4: #{network_forward.11} parent=0 // pred_region
    _
  $region5: #{network_forward.11} parent=0 // pred_fallthru
    _
  // Predicated region
  $region6: #{network_forward.11} parent=0 // pred_check
    _
  $region7: #{network_forward.11} parent=0 // pred_check_branch
    %11 = sbr.rel (0) target = $region9
  $region8: #{network_forward.11} parent=0 // pred_region
    _
  $region9: #{network_forward.11} parent=0 // pred_fallthru
    _
  // Predicated region
  $region10: #{network_forward.11} parent=0 // pred_check
    _
  $region11: #{network_forward.11} parent=0 // pred_check_branch
    %13 = sbr.rel (0) target = $region13
  $region12: #{network_forward.11} parent=0 // pred_region
    _
  $region13: #{network_forward.11} parent=0 // pred_fallthru
    _
  %p15 = scmp.eq.s32.totalorder 0, 0
  // Predicated region
  $region14: #{network_forward.11} parent=0 // pred_check
    %p16 = pneg %p15
  $region15: #{network_forward.11} parent=0 // pred_check_branch
    %18 = sbr.rel (%p16) target = $region17
  $region16: #{network_forward.11} parent=0 // pred_region
    %19 = vst [vmem:[#allocation2] sm:$0xff] 0.0
    %20 = vst [vmem:[#allocation2 + $0x8] sm:$0xff] 0.0
    %21 = vst [vmem:[#allocation2 + $0x10] sm:$0xff] 0.0
    %22 = vst [vmem:[#allocation2 + $0x18] sm:$0xff] 0.0
  $region17: #{network_forward.11} parent=0 // pred_fallthru
    _
  %v23 = vld [vmem:[#allocation2] sm:$0xff]
  %v24 = vld [vmem:[#allocation2 + $0x8] sm:$0xff]
  %v25 = vld [vmem:[#allocation2 + $0x10] sm:$0xff]
  %v26 = vld [vmem:[#allocation2 + $0x18] sm:$0xff]
  %v27 = vld [vmem:[%s0] sm:$0xff]
  %v28 = vld [vmem:[%s0 + $0x8] sm:$0xf]
  %v29 = vld [vmem:[%s0 + $0xc] sm:$0xff]
  %v30 = vld [vmem:[%s0 + $0x14] sm:$0xf]
  %v31 = vld [vmem:[%s0 + $0x18] sm:$0xff]
  %v32 = vld [vmem:[%s0 + $0x20] sm:$0xf]
  %v33 = vld [vmem:[%s0 + $0x24] sm:$0xff]
  %v34 = vld [vmem:[%s0 + $0x2c] sm:$0xf]
  %v35 = vld [vmem:[%s1] sm:$0xf]
  %v36 = vld [vmem:[%s1 + $0x4] sm:$0xf]
  %v37 = vld [vmem:[%s1 + $0x8] sm:$0xf]
  %v38 = vld [vmem:[%s1 + $0xc] sm:$0xf]
  %v39 = vld [vmem:[%s1 + $0x10] sm:$0xf]
  %v40 = vld [vmem:[%s1 + $0x14] sm:$0xf]
  %v41 = vld [vmem:[%s1 + $0x18] sm:$0xf]
  %v42 = vld [vmem:[%s1 + $0x1c] sm:$0xf]
  %v43 = vld [vmem:[%s1 + $0x20] sm:$0xf]
  %v44 = vld [vmem:[%s1 + $0x24] sm:$0xf]
  %v45 = vld [vmem:[%s1 + $0x28] sm:$0xf]
  %v46 = vld [vmem:[%s1 + $0x2c] sm:$0xf]
  %v47 = vld [vmem:[%s1 + $0x30] sm:$0xf]
  %v48 = vld [vmem:[%s1 + $0x34] sm:$0xf]
  %v49 = vld [vmem:[%s1 + $0x38] sm:$0xf]
  %v50 = vld [vmem:[%s1 + $0x3c] sm:$0xf]
  %v51 = vld [vmem:[%s1 + $0x40] sm:$0xf]
  %v52 = vld [vmem:[%s1 + $0x44] sm:$0xf]
  %v53 = vld [vmem:[%s1 + $0x48] sm:$0xf]
  %v54 = vld [vmem:[%s1 + $0x4c] sm:$0xf]
  %v55 = vld [vmem:[%s1 + $0x50] sm:$0xf]
  %v56 = vld [vmem:[%s1 + $0x54] sm:$0xf]
  %v57 = vld [vmem:[%s1 + $0x58] sm:$0xf]
  %v58 = vld [vmem:[%s1 + $0x5c] sm:$0xf]
  %v59 = vld [vmem:[%s1 + $0x60] sm:$0xf]
  %v60 = vld [vmem:[%s1 + $0x64] sm:$0xf]
  %v61 = vld [vmem:[%s1 + $0x68] sm:$0xf]
  %v62 = vld [vmem:[%s1 + $0x6c] sm:$0xf]
  %v63 = vld [vmem:[%s1 + $0x70] sm:$0xf]
  %v64 = vld [vmem:[%s1 + $0x74] sm:$0xf]
  %v65 = vld [vmem:[%s1 + $0x78] sm:$0xf]
  %v66 = vld [vmem:[%s1 + $0x7c] sm:$0xf]
  %v67 = vld [vmem:[%s1 + $0x80] sm:$0xf]
  %v68 = vld [vmem:[%s1 + $0x84] sm:$0xf]
  %v69 = vld [vmem:[%s1 + $0x88] sm:$0xf]
  %v70 = vld [vmem:[%s1 + $0x8c] sm:$0xf]
  %v71 = vld [vmem:[%s1 + $0x90] sm:$0xf]
  %v72 = vld [vmem:[%s1 + $0x94] sm:$0xf]
  %v73 = vld [vmem:[%s1 + $0x98] sm:$0xf]
  %v74 = vld [vmem:[%s1 + $0x9c] sm:$0xf]
  %v75 = vld [vmem:[%s1 + $0xa0] sm:$0xf]
  %v76 = vld [vmem:[%s1 + $0xa4] sm:$0xf]
  %v77 = vld [vmem:[%s1 + $0xa8] sm:$0xf]
  %v78 = vld [vmem:[%s1 + $0xac] sm:$0xf]
  %v79 = vld [vmem:[%s1 + $0xb0] sm:$0xf]
  %v80 = vld [vmem:[%s1 + $0xb4] sm:$0xf]
  %v81 = vld [vmem:[%s1 + $0xb8] sm:$0xf]
  %v82 = vld [vmem:[%s1 + $0xbc] sm:$0xf]
  %v91 = vunpack.c.l.b16 %v27
  %v92 = vunpack.c.h.b16 %v27
  %v93 = vunpack.c.l.b16 %v28
  %v94 = vunpack.c.l.b16 %v29
  %v95 = vunpack.c.h.b16 %v29
  %v96 = vunpack.c.l.b16 %v30
  %v97 = vunpack.c.l.b16 %v31
  %v98 = vunpack.c.h.b16 %v31
  %v99 = vunpack.c.l.b16 %v32
  %v100 = vunpack.c.l.b16 %v33
  %v101 = vunpack.c.h.b16 %v33
  %v102 = vunpack.c.l.b16 %v34
  %v103 = vpack.c.b16 %v94, %v91
  %v104 = vpack.c.b16 %v95, %v92
  %v105 = vpack.c.b16 %v96, %v93
  %v106 = vpack.c.b16 %v100, %v97
  %v107 = vpack.c.b16 %v101, %v98
  %v108 = vpack.c.b16 %v102, %v99
  %v163 = vunpack.c.l.b16 %v35
  %v164 = vunpack.c.l.b16 %v36
  %v165 = vunpack.c.l.b16 %v37
  %v166 = vunpack.c.l.b16 %v38
  %v167 = vunpack.c.l.b16 %v39
  %v168 = vunpack.c.l.b16 %v40
  %v169 = vunpack.c.l.b16 %v41
  %v170 = vunpack.c.l.b16 %v42
  %v171 = vunpack.c.l.b16 %v43
  %v172 = vunpack.c.l.b16 %v44
  %v173 = vunpack.c.l.b16 %v45
  %v174 = vunpack.c.l.b16 %v46
  %v175 = vunpack.c.l.b16 %v47
  %v176 = vunpack.c.l.b16 %v48
  %v177 = vunpack.c.l.b16 %v49
  %v178 = vunpack.c.l.b16 %v50
  %v179 = vunpack.c.l.b16 %v51
  %v180 = vunpack.c.l.b16 %v52
  %v181 = vunpack.c.l.b16 %v53
  %v182 = vunpack.c.l.b16 %v54
  %v183 = vunpack.c.l.b16 %v55
  %v184 = vunpack.c.l.b16 %v56
  %v185 = vunpack.c.l.b16 %v57
  %v186 = vunpack.c.l.b16 %v58
  %v187 = vunpack.c.l.b16 %v59
  %v188 = vunpack.c.l.b16 %v60
  %v189 = vunpack.c.l.b16 %v61
  %v190 = vunpack.c.l.b16 %v62
  %v191 = vunpack.c.l.b16 %v63
  %v192 = vunpack.c.l.b16 %v64
  %v193 = vunpack.c.l.b16 %v65
  %v194 = vunpack.c.l.b16 %v66
  %v195 = vunpack.c.l.b16 %v67
  %v196 = vunpack.c.l.b16 %v68
  %v197 = vunpack.c.l.b16 %v69
  %v198 = vunpack.c.l.b16 %v70
  %v199 = vunpack.c.l.b16 %v71
  %v200 = vunpack.c.l.b16 %v72
  %v201 = vunpack.c.l.b16 %v73
  %v202 = vunpack.c.l.b16 %v74
  %v203 = vunpack.c.l.b16 %v75
  %v204 = vunpack.c.l.b16 %v76
  %v205 = vunpack.c.l.b16 %v77
  %v206 = vunpack.c.l.b16 %v78
  %v207 = vunpack.c.l.b16 %v79
  %v208 = vunpack.c.l.b16 %v80
  %v209 = vunpack.c.l.b16 %v81
  %v210 = vunpack.c.l.b16 %v82
  %v211 = vpack.c.b16 %v164, %v163
  %v212 = vpack.c.b16 %v166, %v165
  %v213 = vpack.c.b16 %v168, %v167
  %v214 = vpack.c.b16 %v170, %v169
  %v215 = vpack.c.b16 %v172, %v171
  %v216 = vpack.c.b16 %v174, %v173
  %v217 = vpack.c.b16 %v176, %v175
  %v218 = vpack.c.b16 %v178, %v177
  %v219 = vpack.c.b16 %v180, %v179
  %v220 = vpack.c.b16 %v182, %v181
  %v221 = vpack.c.b16 %v184, %v183
  %v222 = vpack.c.b16 %v186, %v185
  %v223 = vpack.c.b16 %v188, %v187
  %v224 = vpack.c.b16 %v190, %v189
  %v225 = vpack.c.b16 %v192, %v191
  %v226 = vpack.c.b16 %v194, %v193
  %v227 = vpack.c.b16 %v196, %v195
  %v228 = vpack.c.b16 %v198, %v197
  %v229 = vpack.c.b16 %v200, %v199
  %v230 = vpack.c.b16 %v202, %v201
  %v231 = vpack.c.b16 %v204, %v203
  %v232 = vpack.c.b16 %v206, %v205
  %v233 = vpack.c.b16 %v208, %v207
  %v234 = vpack.c.b16 %v210, %v209
  %259 = vmatprep.subr.bf16.mxu0 0
  %260 = vmatpush1.bf16.msra.mxu0 %v211
  %261 = vmatprep.subr.bf16.mxu0 0
  %262 = vmatpush1.bf16.msra.mxu0 %v212
  %263 = vmatprep.subr.bf16.mxu0 0
  %264 = vmatpush1.bf16.msra.mxu0 %v213
  %265 = vmatprep.subr.bf16.mxu0 0
  %266 = vmatpush1.bf16.msra.mxu0 %v214
  %267 = vmatprep.subr.bf16.mxu0 0
  %268 = vmatpush1.bf16.msra.mxu0 %v215
  %269 = vmatprep.subr.bf16.mxu0 0
  %270 = vmatpush1.bf16.msra.mxu0 %v216
  %271 = vmatprep.subr.bf16.mxu0 0
  %272 = vmatpush1.bf16.msra.mxu0 %v217
  %273 = vmatprep.subr.bf16.mxu0 0
  %274 = vmatpush1.bf16.msra.mxu0 %v218
  %275 = vmatprep.subr.bf16.mxu0 0
  %276 = vmatpush1.bf16.msra.mxu0 %v219
  %277 = vmatprep.subr.bf16.mxu0 0
  %278 = vmatpush1.bf16.msra.mxu0 %v220
  %279 = vmatprep.subr.bf16.mxu0 0
  %280 = vmatpush1.bf16.msra.mxu0 %v221
  %281 = vmatprep.subr.bf16.mxu0 0
  %282 = vmatpush1.bf16.msra.mxu0 %v222
  %283 = vmatprep.subr.bf16.mxu0 0
  %284 = vmatpush1.bf16.msra.mxu0 %v223
  %285 = vmatprep.subr.bf16.mxu0 0
  %286 = vmatpush1.bf16.msra.mxu0 %v224
  %287 = vmatprep.subr.bf16.mxu0 0
  %288 = vmatpush1.bf16.msra.mxu0 %v225
  %289 = vmatprep.subr.bf16.mxu0 0
  %290 = vmatpush1.bf16.msra.mxu0 %v226
  %291 = vmatprep.mubr.bf16.mxu0 %v104
  %292 = vmatmul.mubr.bf16.gmra.mrb[0].mxu0 %v103
  %v293 = vpop.f32.mrb[0].mxu0
  %v294 = vadd.f32 0.0, %v293
  %v295 = vpop.f32.mrb[0].mxu0
  %v296 = vpop.f32.mrb[0].mxu0
  %v297 = vadd.f32 0.0, %v296
  %v298 = vpop.f32.mrb[0].mxu0
  %299 = vmatprep.mubr.bf16.mxu0 %v107
  %300 = vmatmul.mubr.bf16.gmra.mrb[0].mxu0 %v106
  %v301 = vpop.f32.mrb[0].mxu0
  %v302 = vadd.f32 0.0, %v301
  %v303 = vpop.f32.mrb[0].mxu0
  %v304 = vpop.f32.mrb[0].mxu0
  %v305 = vadd.f32 0.0, %v304
  %v306 = vpop.f32.mrb[0].mxu0
  %307 = vdwg.mxu0
  %308 = vmatprep.subr.bf16.mxu0 0
  %309 = vmatpush1.bf16.msra.mxu0 %v227
  %310 = vmatprep.subr.bf16.mxu0 0
  %311 = vmatpush1.bf16.msra.mxu0 %v228
  %312 = vmatprep.subr.bf16.mxu0 0
  %313 = vmatpush1.bf16.msra.mxu0 %v229
  %314 = vmatprep.subr.bf16.mxu0 0
  %315 = vmatpush1.bf16.msra.mxu0 %v230
  %316 = vmatprep.subr.bf16.mxu0 0
  %317 = vmatpush1.bf16.msra.mxu0 %v231
  %318 = vmatprep.subr.bf16.mxu0 0
  %319 = vmatpush1.bf16.msra.mxu0 %v232
  %320 = vmatprep.subr.bf16.mxu0 0
  %321 = vmatpush1.bf16.msra.mxu0 %v233
  %322 = vmatprep.subr.bf16.mxu0 0
  %323 = vmatpush1.bf16.msra.mxu0 %v234
  %324 = vmatprep.subr.bf16.mxu0 0
  %325 = vmatpush1.bf16.msra.mxu0 0
  %326 = vmatprep.subr.bf16.mxu0 0
  %327 = vmatpush1.bf16.msra.mxu0 0
  %328 = vmatprep.subr.bf16.mxu0 0
  %329 = vmatpush1.bf16.msra.mxu0 0
  %330 = vmatprep.subr.bf16.mxu0 0
  %331 = vmatpush1.bf16.msra.mxu0 0
  %332 = vmatprep.subr.bf16.mxu0 0
  %333 = vmatpush1.bf16.msra.mxu0 0
  %334 = vmatprep.subr.bf16.mxu0 0
  %335 = vmatpush1.bf16.msra.mxu0 0
  %336 = vmatprep.subr.bf16.mxu0 0
  %337 = vmatpush1.bf16.msra.mxu0 0
  %338 = vmatprep.subr.bf16.mxu0 0
  %339 = vmatpush1.bf16.msra.mxu0 0
  %340 = vmatprep.mubr.bf16.mxu0 0
  %341 = vmatmul.mubr.bf16.gmra.mrb[0].mxu0 %v105
  %v342 = vpop.f32.mrb[0].mxu0
  %v343 = vadd.f32 %v294, %v342
  %v344 = vpop.f32.mrb[0].mxu0
  %v345 = vpop.f32.mrb[0].mxu0
  %v346 = vadd.f32 %v297, %v345
  %v347 = vpop.f32.mrb[0].mxu0
  %348 = vmatprep.mubr.bf16.mxu0 0
  %349 = vmatmul.mubr.bf16.gmra.mrb[0].mxu0 %v108
  %v350 = vpop.f32.mrb[0].mxu0
  %v351 = vadd.f32 %v302, %v350
  %v352 = vpop.f32.mrb[0].mxu0
  %v353 = vpop.f32.mrb[0].mxu0
  %v354 = vadd.f32 %v305, %v353
  %v355 = vpop.f32.mrb[0].mxu0
  %356 = vdwg.mxu0
  %v357 = vadd.f32 %v23, %v343
  %v358 = vadd.f32 %v24, %v346
  %v359 = vadd.f32 %v25, %v351
  %v360 = vadd.f32 %v26, %v354
  %361 = vst [vmem:[#allocation2] sm:$0xff] %v357
  %362 = vst [vmem:[#allocation2 + $0x8] sm:$0xff] %v358
  %363 = vst [vmem:[#allocation2 + $0x10] sm:$0xff] %v359
  %364 = vst [vmem:[#allocation2 + $0x18] sm:$0xff] %v360
  // Predicated region
  $region18: #{network_forward.11} parent=0 // pred_check
    %p365 = pneg %p15
  $region19: #{network_forward.11} parent=0 // pred_check_branch
    %367 = sbr.rel (%p365) target = $region21
  $region20: #{network_forward.11} parent=0 // pred_region
    %v368 = vld [vmem:[#allocation2] sm:$0xff]
    %v369 = vld [vmem:[#allocation2 + $0x8] sm:$0xff]
    %v370 = vld [vmem:[#allocation2 + $0x10] sm:$0xff]
    %v371 = vld [vmem:[#allocation2 + $0x18] sm:$0xff]
    %v372 = vld [vmem:[%s2] sm:$0x1]
    %v374 = vlaneseq
    %v375 = vshrl.u32 %v374, 7
    %v376 = vsub.s32 0, %v375
    %v377 = vrot.slane %v372, %v376
    %v379 = vadd.f32 %v368, %v377
    %v380 = vadd.f32 %v369, %v377
    %v381 = vadd.f32 %v370, %v377
    %v382 = vadd.f32 %v371, %v377
    %v383 = vmax.f32 %v379, 0.0
    %v384 = vmax.f32 %v380, 0.0
    %v385 = vmax.f32 %v381, 0.0
    %v386 = vmax.f32 %v382, 0.0
    %387 = vst [vmem:[%s3] sm:$0xff] %v383
    %388 = vst [vmem:[%s3 + $0x8] sm:$0xff] %v384
    %389 = vst [vmem:[%s3 + $0x10] sm:$0xff] %v385
    %390 = vst [vmem:[%s3 + $0x18] sm:$0xff] %v386
  $region21: #{network_forward.11} parent=0 // pred_fallthru
    _
  // Predicated region
  $region22: #{network_forward.11} parent=0 // pred_check
    _
  $region23: #{network_forward.11} parent=0 // pred_check_branch
    %392 = sbr.rel (0) target = $region25
  $region24: #{network_forward.11} parent=0 // pred_region
    _
  $region25: #{network_forward.11} parent=0 // pred_fallthru
    _
  // Predicated region
  $region26: #{network_forward.11} parent=0 // pred_check
    _
  $region27: #{network_forward.11} parent=0 // pred_check_branch
    %394 = sbr.rel (0) target = $region29
  $region28: #{network_forward.11} parent=0 // pred_region
    _
  $region29: #{network_forward.11} parent=0 // pred_fallthru
    _

// kernel: network_forward.16
$region0: #{network_forward.16}
  #allocation0 [shape = 'u32[]', space=smem, size = 0x4, offset = 0x4, fixed_abs, tag = 'smem constant byte address 0x4 - core index']
  #allocation1 [shape = 'u32[144,128]{1,0:T(1,128)}', space=vmem, size = 0x12000, scoped, tag = 'internal scratch']
  #allocation2 [shape = 'f32[32,128]{1,0:T(8,128)}', space=vmem, size = 0x4000, scoped, tag = 'scratch operand']
  %s0 = inlined_call_operand.vmem [shape: bf16[32,640], index: 0, kind: input, shape index: {}]
  %s1 = inlined_call_operand.vmem [shape: bf16[640,128], index: 1, kind: input, shape index: {}]
  %s2 = inlined_call_operand.vmem [shape: f32[1,128], index: 2, kind: input, shape index: {}]
  %s3 = inlined_call_operand.vmem [shape: f32[32,128], index: 3, kind: input, shape index: {}]
  %s4 = inlined_call_operand.vmem [shape: f32[32,128], index: 4, kind: input, shape index: {}]
  %s5 = inlined_call_operand.vmem [shape: f32[32,128], index: 5, kind: output, shape index: {}]
  %s6 = sld [smem:[#allocation0]]
  $region102: #{network_forward.16} parent=0
    _
  %s8 = ssub.s32 1, %s6
  %s9 = scalar_select 0, %s8, %s6
  $region1: #{network_forward.16} parent=0
    #allocation3 [shape = 'u8[16384]{0}', space=vmem, size = 0x4000, scoped, tag = 'input window, operand 0']
    loop: start=0, step=1, limit=7
    $region2: #{network_forward.16} parent=1 // loop_pre_header
      _
    $region3: #{network_forward.16} parent=1 // loop_header
      %s11 = sphi 0, %s15
      %p12 = scmp.ge.s32.totalorder %s11, 7
      %s18 = sphi 0, %s37
      %s19 = sphi 0, %s33
      %s20 = sphi 0, %s29
      %s21 = sphi 0, %s18
      %s22 = sphi 0, %s19
      %s23 = sphi 0, %s20
      %s24 = sphi 0, %s21
      %s25 = sphi 0, %s22
      %s26 = sphi 0, %s23
      %s42 = sphi 0, %s44
      %s45 = sphi 0, %s42
      %s46 = sphi 0, %s45
      %s62 = sphi 0, %s46
      %s70 = sphi 0, %s72
      %s73 = sphi 0, %s70
      %s74 = sphi 0, %s73
      %s90 = sphi 0, %s74
      %s96 = sphi 0, %s98
      %s99 = sphi 0, %s96
      %s100 = sphi 0, %s99
      %s116 = sphi 0, %s100
      %s124 = sphi 0, %s126
      %s127 = sphi 0, %s124
      %s128 = sphi 0, %s127
      %s144 = sphi 0, %s128
      %s152 = sphi 0, %s154
      %s155 = sphi 0, %s152
      %s156 = sphi 0, %s155
      %s172 = sphi 0, %s156
      %s180 = sphi 0, %s182
      %s183 = sphi 0, %s180
      %s184 = sphi 0, %s183
      %s200 = sphi 0, %s184
    $region4: #{network_forward.16} parent=1 // loop_header_branch
      %14 = sbr.rel (%p12) target = $region8
    $region5: #{network_forward.16} parent=1 // loop_body
      %s16 = ssub.s32 %s11, 1
      %s17 = ssub.s32 %s11, 2
      %s27 = sadd.s32 1, %s20
      %p28 = scmp.ge.s32.totalorder %s27, 5
      %s29 = scalar_select %p28, 0, %s27
      %s30 = sadd.s32 1, %s19
      %s31 = scalar_select %p28, %s30, %s19
      %p32 = scmp.ge.s32.totalorder %s31, 1
      %s33 = scalar_select %p32, 0, %s31
      %s34 = sadd.s32 1, %s18
      %s35 = scalar_select %p32, %s34, %s18
      %p36 = scmp.ge.s32.totalorder %s35, 1
      %s37 = scalar_select %p36, 0, %s35
      %s38 = ssub.s32 %s18, %s37
      %s39 = ssub.s32 %s20, %s29
      %s40 = sor.u32 %s38, %s39
      %p41 = scmp.eq.s32.totalorder %s40, 0
      %s43 = sadd.s32 %s42, 1
      %s44 = scalar_select %p41, %s42, %s43
      %p47 = pneg %p41
      %p48 = scmp.eq.s32.totalorder %s11, 4
      %p49 = por %p47, %p48
      %p50 = scmp.ne.s32.totalorder %s42, %s45
      %p51 = scmp.eq.s32.totalorder %s11, 0
      %p52 = por %p50, %p51
      %p53 = scmp.ne.s32.totalorder %s42, %s45
      %p54 = scmp.eq.s32.totalorder %s16, 4
      %p55 = por %p53, %p54
      %p56 = scmp.ne.s32.totalorder %s45, %s46
      %p57 = scmp.eq.s32.totalorder %s16, 0
      %p58 = por %p56, %p57
      %p59 = scmp.ne.s32.totalorder %s45, %s46
      %p60 = scmp.eq.s32.totalorder %s17, 4
      %p61 = por %p59, %p60
      %p63 = scmp.ne.s32.totalorder %s46, %s62
      %p64 = scmp.eq.s32.totalorder %s17, 0
      %p65 = por %p63, %p64
      %s66 = ssub.s32 %s20, %s29
      %s67 = ssub.s32 %s19, %s33
      %s68 = sor.u32 %s66, %s67
      %p69 = scmp.eq.s32.totalorder %s68, 0
      %s71 = sadd.s32 %s70, 1
      %s72 = scalar_select %p69, %s70, %s71
      %p75 = pneg %p69
      %p76 = scmp.eq.s32.totalorder %s11, 4
      %p77 = por %p75, %p76
      %p78 = scmp.ne.s32.totalorder %s70, %s73
      %p79 = scmp.eq.s32.totalorder %s11, 0
      %p80 = por %p78, %p79
      %p81 = scmp.ne.s32.totalorder %s70, %s73
      %p82 = scmp.eq.s32.totalorder %s16, 4
      %p83 = por %p81, %p82
      %p84 = scmp.ne.s32.totalorder %s73, %s74
      %p85 = scmp.eq.s32.totalorder %s16, 0
      %p86 = por %p84, %p85
      %p87 = scmp.ne.s32.totalorder %s73, %s74
      %p88 = scmp.eq.s32.totalorder %s17, 4
      %p89 = por %p87, %p88
      %p91 = scmp.ne.s32.totalorder %s74, %s90
      %p92 = scmp.eq.s32.totalorder %s17, 0
      %p93 = por %p91, %p92
      %s94 = ssub.s32 %s19, %s33
      %p95 = scmp.eq.s32.totalorder %s94, 0
      %s97 = sadd.s32 %s96, 1
      %s98 = scalar_select %p95, %s96, %s97
      %p101 = pneg %p95
      %p102 = scmp.eq.s32.totalorder %s11, 4
      %p103 = por %p101, %p102
      %p104 = scmp.ne.s32.totalorder %s96, %s99
      %p105 = scmp.eq.s32.totalorder %s11, 0
      %p106 = por %p104, %p105
      %p107 = scmp.ne.s32.totalorder %s96, %s99
      %p108 = scmp.eq.s32.totalorder %s16, 4
      %p109 = por %p107, %p108
      %p110 = scmp.ne.s32.totalorder %s99, %s100
      %p111 = scmp.eq.s32.totalorder %s16, 0
      %p112 = por %p110, %p111
      %p113 = scmp.ne.s32.totalorder %s99, %s100
      %p114 = scmp.eq.s32.totalorder %s17, 4
      %p115 = por %p113, %p114
      %p117 = scmp.ne.s32.totalorder %s100, %s116
      %p118 = scmp.eq.s32.totalorder %s17, 0
      %p119 = por %p117, %p118
      %s120 = ssub.s32 %s18, %s37
      %s121 = ssub.s32 %s19, %s33
      %s122 = sor.u32 %s120, %s121
      %p123 = scmp.eq.s32.totalorder %s122, 0
      %s125 = sadd.s32 %s124, 1
      %s126 = scalar_select %p123, %s124, %s125
      %p129 = pneg %p123
      %p130 = scmp.eq.s32.totalorder %s11, 4
      %p131 = por %p129, %p130
      %p132 = scmp.ne.s32.totalorder %s124, %s127
      %p133 = scmp.eq.s32.totalorder %s11, 0
      %p134 = por %p132, %p133
      %p135 = scmp.ne.s32.totalorder %s124, %s127
      %p136 = scmp.eq.s32.totalorder %s16, 4
      %p137 = por %p135, %p136
      %p138 = scmp.ne.s32.totalorder %s127, %s128
      %p139 = scmp.eq.s32.totalorder %s16, 0
      %p140 = por %p138, %p139
      %p141 = scmp.ne.s32.totalorder %s127, %s128
      %p142 = scmp.eq.s32.totalorder %s17, 4
      %p143 = por %p141, %p142
      %p145 = scmp.ne.s32.totalorder %s128, %s144
      %p146 = scmp.eq.s32.totalorder %s17, 0
      %p147 = por %p145, %p146
      %s148 = ssub.s32 %s18, %s37
      %s149 = ssub.s32 %s19, %s33
      %s150 = sor.u32 %s148, %s149
      %p151 = scmp.eq.s32.totalorder %s150, 0
      %s153 = sadd.s32 %s152, 1
      %s154 = scalar_select %p151, %s152, %s153
      %p157 = pneg %p151
      %p158 = scmp.eq.s32.totalorder %s11, 4
      %p159 = por %p157, %p158
      %p160 = scmp.ne.s32.totalorder %s152, %s155
      %p161 = scmp.eq.s32.totalorder %s11, 0
      %p162 = por %p160, %p161
      %p163 = scmp.ne.s32.totalorder %s152, %s155
      %p164 = scmp.eq.s32.totalorder %s16, 4
      %p165 = por %p163, %p164
      %p166 = scmp.ne.s32.totalorder %s155, %s156
      %p167 = scmp.eq.s32.totalorder %s16, 0
      %p168 = por %p166, %p167
      %p169 = scmp.ne.s32.totalorder %s155, %s156
      %p170 = scmp.eq.s32.totalorder %s17, 4
      %p171 = por %p169, %p170
      %p173 = scmp.ne.s32.totalorder %s156, %s172
      %p174 = scmp.eq.s32.totalorder %s17, 0
      %p175 = por %p173, %p174
      %s176 = ssub.s32 %s18, %s37
      %s177 = ssub.s32 %s19, %s33
      %s178 = sor.u32 %s176, %s177
      %p179 = scmp.eq.s32.totalorder %s178, 0
      %s181 = sadd.s32 %s180, 1
      %s182 = scalar_select %p179, %s180, %s181
      %p185 = pneg %p179
      %p186 = scmp.eq.s32.totalorder %s11, 4
      %p187 = por %p185, %p186
      %p188 = scmp.ne.s32.totalorder %s180, %s183
      %p189 = scmp.eq.s32.totalorder %s11, 0
      %p190 = por %p188, %p189
      %p191 = scmp.ne.s32.totalorder %s180, %s183
      %p192 = scmp.eq.s32.totalorder %s16, 4
      %p193 = por %p191, %p192
      %p194 = scmp.ne.s32.totalorder %s183, %s184
      %p195 = scmp.eq.s32.totalorder %s16, 0
      %p196 = por %p194, %p195
      %p197 = scmp.ne.s32.totalorder %s183, %s184
      %p198 = scmp.eq.s32.totalorder %s17, 4
      %p199 = por %p197, %p198
      %p201 = scmp.ne.s32.totalorder %s184, %s200
      %p202 = scmp.eq.s32.totalorder %s17, 0
      %p203 = por %p201, %p202
      %p204 = scmp.le.s32.totalorder 1, %s11
      %p205 = scmp.lt.s32.totalorder %s11, 6
      %p206 = pnand %p204, %p205
      %p207 = pneg %p206
      // Predicated region
      $region9: #{network_forward.16} parent=5 // pred_check
        _
      $region10: #{network_forward.16} parent=5 // pred_check_branch
        %209 = sbr.rel (%p206) target = $region12
      $region11: #{network_forward.16} parent=5 // pred_region
        %s210 = ssub.s32 %s11, 1
        // Predicated region
        $region13: #{network_forward.16} parent=11 // pred_check
          %p211 = pneg %p112
        $region14: #{network_forward.16} parent=11 // pred_check_branch
          %213 = sbr.rel (%p211) target = $region16
        $region15: #{network_forward.16} parent=11 // pred_region
          %p214 = scmp.lt.s32.totalorder %s22, 0
          %s215 = scalar_select %p214, %s22, 0
          %s216 = scalar_lea.vmem %s2, %s215
        $region16: #{network_forward.16} parent=11 // pred_fallthru
          _
        // Predicated region
        $region17: #{network_forward.16} parent=11 // pred_check
          %p217 = pneg %p140
        $region18: #{network_forward.16} parent=11 // pred_check_branch
          %219 = sbr.rel (%p217) target = $region20
        $region19: #{network_forward.16} parent=11 // pred_region
          %s220 = smul.u32 4, %s21
          %p221 = scmp.lt.s32.totalorder %s220, 3
          %s222 = scalar_select %p221, %s220, 3
          %p223 = scmp.lt.s32.totalorder %s22, 0
          %s224 = scalar_select %p223, %s22, 0
          %s225 = sadd.s32 %s224, %s222
          %s226 = smul.addr %s225, 8
          %s227 = scalar_lea.vmem %s3, %s226
          %s228 = smul.u32 4, %s21
        $region20: #{network_forward.16} parent=11 // pred_fallthru
          _
        // Predicated region
        $region21: #{network_forward.16} parent=11 // pred_check
          %p229 = pneg %p168
        $region22: #{network_forward.16} parent=11 // pred_check_branch
          %231 = sbr.rel (%p229) target = $region24
        $region23: #{network_forward.16} parent=11 // pred_region
          %s232 = smul.u32 4, %s21
          %p233 = scmp.lt.s32.totalorder %s232, 3
          %s234 = scalar_select %p233, %s232, 3
          %p235 = scmp.lt.s32.totalorder %s22, 0
          %s236 = scalar_select %p235, %s22, 0
          %s237 = sadd.s32 %s236, %s234
          %s238 = smul.addr %s237, 8
          %s239 = scalar_lea.vmem %s4, %s238
          %s240 = smul.u32 4, %s21
        $region24: #{network_forward.16} parent=11 // pred_fallthru
          _
      $region12: #{network_forward.16} parent=5 // pred_fallthru
        _
      %p241 = scmp.lt.s32.totalorder %s11, 5
      // Predicated region
      $region25: #{network_forward.16} parent=5 // pred_check
        %p242 = pneg %p241
      $region26: #{network_forward.16} parent=5 // pred_check_branch
        %244 = sbr.rel (%p242) target = $region28
      $region27: #{network_forward.16} parent=5 // pred_region
        // Predicated region
        $region29: #{network_forward.16} parent=27 // pred_check
          %p245 = pneg %p52
        $region30: #{network_forward.16} parent=27 // pred_check_branch
          %247 = sbr.rel (%p245) target = $region32
        $region31: #{network_forward.16} parent=27 // pred_region
          %s248 = sand.u32 %s42, 1
          %s249 = sand.u32 %s42, 1
          %s250 = smul.addr %s249, 16
          %s251 = scalar_lea.vmem [#allocation3], %s250
          %s252 = smul.u32 4, %s18
          %s253 = smul.addr %s252, 5
          %s254 = sadd.s32 %s20, %s253
          %s255 = smul.addr %s254, 4
          %s256 = scalar_lea.vmem %s0, %s255
          // Predicated region
          $region33: #{network_forward.16} parent=31 // pred_check
            _
          $region34: #{network_forward.16} parent=31 // pred_check_branch
            %258 = sbr.rel (0) target = $region36
          $region35: #{network_forward.16} parent=31 // pred_region
            // Predicated region
            $region37: #{network_forward.16} parent=35 // pred_check
              _
            $region38: #{network_forward.16} parent=35 // pred_check_branch
              %260 = sbr.rel target = $region40
            $region39: #{network_forward.16} parent=35 // pred_region
              // Predicated region
              $region52: #{network_forward.16} parent=39 // pred_check
                _
              $region53: #{network_forward.16} parent=39 // pred_check_branch
                %281 = sbr.rel (0) target = $region55
              $region54: #{network_forward.16} parent=39 // pred_region
                loop: start=0, step=1, limit=1
                $region56: #{network_forward.16} parent=54 // loop_pre_header
                  _
                $region57: #{network_forward.16} parent=54 // loop_header
                  %s283 = sphi 0, %s287
                  %p284 = scmp.ge.s32.totalorder %s283, 1
                  %s288 = sphi %s256, %s256
                  %s289 = sphi %s251, %s251
                $region58: #{network_forward.16} parent=54 // loop_header_branch
                  %286 = sbr.rel (%p284) target = $region62
                $region59: #{network_forward.16} parent=54 // loop_body
                  _
                $region60: #{network_forward.16} parent=54 // loop_footer
                  %s287 = sadd.s32 1, %s283
                $region61: #{network_forward.16} parent=54 // loop_footer_branch
                  %282 = sbr.rel target = $region57
                $region62: #{network_forward.16} parent=54 // loop_exit
                  _
                loop: start=0, step=1, limit=1
                $region63: #{network_forward.16} parent=54 // loop_pre_header
                  _
                $region64: #{network_forward.16} parent=54 // loop_header
                  %s292 = sphi 0, %s296
                  %p293 = scmp.ge.s32.totalorder %s292, 1
                  %s297 = sphi %s256, %s256
                  %s298 = sphi %s251, %s251
                $region65: #{network_forward.16} parent=54 // loop_header_branch
                  %295 = sbr.rel (%p293) target = $region69
                $region66: #{network_forward.16} parent=54 // loop_body
                  %v299 = vld [vmem:[%s297] sm:$0xf]
                  %300 = vst [vmem:[%s298] sm:$0xf] %v299
                  %v301 = vld [vmem:[%s297 + $0x14] sm:$0xf]
                  %302 = vst [vmem:[%s298 + $0x4] sm:$0xf] %v301
                  %v303 = vld [vmem:[%s297 + $0x28] sm:$0xf]
                  %304 = vst [vmem:[%s298 + $0x8] sm:$0xf] %v303
                  %v305 = vld [vmem:[%s297 + $0x3c] sm:$0xf]
                  %306 = vst [vmem:[%s298 + $0xc] sm:$0xf] %v305
                $region67: #{network_forward.16} parent=54 // loop_footer
                  %s296 = sadd.s32 1, %s292
                $region68: #{network_forward.16} parent=54 // loop_footer_branch
                  %291 = sbr.rel target = $region64
                $region69: #{network_forward.16} parent=54 // loop_exit
                  _
              $region55: #{network_forward.16} parent=39 // pred_fallthru
                _
            $region40: #{network_forward.16} parent=35 // pred_fallthru
              _
            // Predicated region
            $region41: #{network_forward.16} parent=35 // pred_check
              _
            $region42: #{network_forward.16} parent=35 // pred_check_branch
              %262 = sbr.rel (0) target = $region44
            $region43: #{network_forward.16} parent=35 // pred_region
              loop: start=0, step=1, limit=1
              $region45: #{network_forward.16} parent=43 // loop_pre_header
                _
              $region46: #{network_forward.16} parent=43 // loop_header
                %s265 = sphi 0, %s269
                %p266 = scmp.ge.s32.totalorder %s265, 1
                %s270 = sphi %s256, %s256
                %s271 = sphi %s251, %s251
              $region47: #{network_forward.16} parent=43 // loop_header_branch
                %268 = sbr.rel (%p266) target = $region51
              $region48: #{network_forward.16} parent=43 // loop_body
                %v272 = vld [vmem:[%s270] sm:$0xf]
                %273 = vst [vmem:[%s271] sm:$0xf] %v272
                %v274 = vld [vmem:[%s270 + $0x14] sm:$0xf]
                %275 = vst [vmem:[%s271 + $0x4] sm:$0xf] %v274
                %v276 = vld [vmem:[%s270 + $0x28] sm:$0xf]
                %277 = vst [vmem:[%s271 + $0x8] sm:$0xf] %v276
                %v278 = vld [vmem:[%s270 + $0x3c] sm:$0xf]
                %279 = vst [vmem:[%s271 + $0xc] sm:$0xf] %v278
              $region49: #{network_forward.16} parent=43 // loop_footer
                %s269 = sadd.s32 1, %s265
              $region50: #{network_forward.16} parent=43 // loop_footer_branch
                %264 = sbr.rel target = $region46
              $region51: #{network_forward.16} parent=43 // loop_exit
                _
            $region44: #{network_forward.16} parent=35 // pred_fallthru
              _
          $region36: #{network_forward.16} parent=31 // pred_fallthru
            _
          %307 = vnop
        $region32: #{network_forward.16} parent=27 // pred_fallthru
          _
        // Predicated region
        $region70: #{network_forward.16} parent=27 // pred_check
          %p308 = pneg %p80
        $region71: #{network_forward.16} parent=27 // pred_check_branch
          %310 = sbr.rel (%p308) target = $region73
        $region72: #{network_forward.16} parent=27 // pred_region
          %s311 = smul.u32 16, %s20
          %p312 = scmp.lt.s32.totalorder %s311, 79
          %s313 = scalar_select %p312, %s311, 79
          %p314 = scmp.lt.s32.totalorder %s19, 0
          %s315 = scalar_select %p314, %s19, 0
          %s316 = sadd.s32 %s315, %s313
          %s317 = smul.addr %s316, 4
          %s318 = scalar_lea.vmem %s1, %s317
          %s319 = smul.u32 16, %s20
        $region73: #{network_forward.16} parent=27 // pred_fallthru
          _
      $region28: #{network_forward.16} parent=5 // pred_fallthru
        _
      %p320 = scmp.le.s32.totalorder 1, %s11
      %p321 = scmp.lt.s32.totalorder %s11, 6
      %p322 = pnand %p320, %p321
      %p323 = pneg %p322
      // Predicated region
      $region74: #{network_forward.16} parent=5 // pred_check
        _
      $region75: #{network_forward.16} parent=5 // pred_check_branch
        %325 = sbr.rel (%p322) target = $region77
      $region76: #{network_forward.16} parent=5 // pred_region
        %s326 = ssub.s32 %s11, 1
        %s327 = sand.u32 %s45, 1
        %s328 = sand.u32 %s45, 1
        %s329 = smul.addr %s328, 16
        %s330 = scalar_lea.vmem [#allocation3], %s329
        // Predicated region
        $region78: #{network_forward.16} parent=76 // pred_check
          %p331 = pneg %p58
        $region79: #{network_forward.16} parent=76 // pred_check_branch
          %333 = sbr.rel (%p331) target = $region81
        $region80: #{network_forward.16} parent=76 // pred_region
          _
        $region81: #{network_forward.16} parent=76 // pred_fallthru
          _
        %s334 = sand.u32 %s45, 1
        %s335 = sand.u32 %s45, 1
        %s336 = smul.addr %s335, 16
        %s337 = scalar_lea.vmem [#allocation3], %s336
        %p338 = pneg %p58
        %p339 = pneg %p55
        %s340 = smul.u32 16, %s23
        %p341 = scmp.lt.s32.totalorder %s340, 79
        %s342 = scalar_select %p341, %s340, 79
        %p343 = scmp.lt.s32.totalorder %s22, 0
        %s344 = scalar_select %p343, %s22, 0
        %s345 = sadd.s32 %s344, %s342
        %s346 = smul.addr %s345, 4
        %s347 = scalar_lea.vmem %s1, %s346
        %p348 = pneg %p86
        %p349 = pneg %p83
        %p350 = scmp.lt.s32.totalorder %s22, 0
        %s351 = scalar_select %p350, %s22, 0
        %s352 = scalar_lea.vmem %s2, %s351
        %p353 = pneg %p112
        %p354 = pneg %p109
        %s355 = smul.u32 4, %s21
        %p356 = scmp.lt.s32.totalorder %s355, 3
        %s357 = scalar_select %p356, %s355, 3
        %p358 = scmp.lt.s32.totalorder %s22, 0
        %s359 = scalar_select %p358, %s22, 0
        %s360 = sadd.s32 %s359, %s357
        %s361 = smul.addr %s360, 8
        %s362 = scalar_lea.vmem %s3, %s361
        %p363 = pneg %p140
        %p364 = pneg %p137
        %s365 = smul.u32 4, %s21
        %p366 = scmp.lt.s32.totalorder %s365, 3
        %s367 = scalar_select %p366, %s365, 3
        %p368 = scmp.lt.s32.totalorder %s22, 0
        %s369 = scalar_select %p368, %s22, 0
        %s370 = sadd.s32 %s369, %s367
        %s371 = smul.addr %s370, 8
        %s372 = scalar_lea.vmem %s4, %s371
        %p373 = pneg %p168
        %p374 = pneg %p165
        %p375 = pneg %p196
        %p376 = pneg %p193
        %s377 = smul.u32 4, %s21
        %p378 = scmp.lt.s32.totalorder %s377, 3
        %s379 = scalar_select %p378, %s377, 3
        %p380 = scmp.lt.s32.totalorder %s22, 0
        %s381 = scalar_select %p380, %s22, 0
        %s382 = sadd.s32 %s381, %s379
        %s383 = smul.addr %s382, 8
        %s384 = scalar_lea.vmem %s5, %s383
        %s385 = smul.u32 4, %s21
        %s386 = smul.u32 16, %s23
        %p387 = scmp.lt.s32.totalorder %s386, 79
        %s388 = scalar_select %p387, %s386, 79
        %p389 = scmp.lt.s32.totalorder %s22, 0
        %s390 = scalar_select %p389, %s22, 0
        %s391 = sadd.s32 %s390, %s388
        %s392 = smul.addr %s391, 4
        %s393 = scalar_lea.vmem %s1, %s392
        %s394 = smul.u32 16, %s23
        %p395 = scmp.lt.s32.totalorder %s22, 0
        %s396 = scalar_select %p395, %s22, 0
        %s397 = scalar_lea.vmem %s2, %s396
        %s398 = smul.u32 4, %s21
        %p399 = scmp.lt.s32.totalorder %s398, 3
        %s400 = scalar_select %p399, %s398, 3
        %p401 = scmp.lt.s32.totalorder %s22, 0
        %s402 = scalar_select %p401, %s22, 0
        %s403 = sadd.s32 %s402, %s400
        %s404 = smul.addr %s403, 8
        %s405 = scalar_lea.vmem %s3, %s404
        %s406 = smul.u32 4, %s21
        %s407 = smul.u32 4, %s21
        %p408 = scmp.lt.s32.totalorder %s407, 3
        %s409 = scalar_select %p408, %s407, 3
        %p410 = scmp.lt.s32.totalorder %s22, 0
        %s411 = scalar_select %p410, %s22, 0
        %s412 = sadd.s32 %s411, %s409
        %s413 = smul.addr %s412, 8
        %s414 = scalar_lea.vmem %s4, %s413
        %s415 = smul.u32 4, %s21
        %s416 = smul.u32 4, %s21
        %p417 = scmp.lt.s32.totalorder %s416, 3
        %s418 = scalar_select %p417, %s416, 3
        %p419 = scmp.lt.s32.totalorder %s22, 0
        %s420 = scalar_select %p419, %s22, 0
        %s421 = sadd.s32 %s420, %s418
        %s422 = smul.addr %s421, 8
        %s423 = scalar_lea.vmem %s5, %s422
        %s424 = smul.u32 4, %s21
        %p426 = scmp.eq.s32.totalorder %s23, 0
        // Predicated region
        $region82: #{network_forward.16} parent=76 // pred_check
          %p427 = pneg %p426
        $region83: #{network_forward.16} parent=76 // pred_check_branch
          %429 = sbr.rel (%p427) target = $region85
        $region84: #{network_forward.16} parent=76 // pred_region
          %430 = vst [vmem:[#allocation2] sm:$0xff] 0.0
          %431 = vst [vmem:[#allocation2 + $0x8] sm:$0xff] 0.0
          %432 = vst [vmem:[#allocation2 + $0x10] sm:$0xff] 0.0
          %433 = vst [vmem:[#allocation2 + $0x18] sm:$0xff] 0.0
        $region85: #{network_forward.16} parent=76 // pred_fallthru
          _
        %v434 = vld [vmem:[#allocation2] sm:$0xff]
        %v435 = vld [vmem:[#allocation2 + $0x8] sm:$0xff]
        %v436 = vld [vmem:[#allocation2 + $0x10] sm:$0xff]
        %v437 = vld [vmem:[#allocation2 + $0x18] sm:$0xff]
        %v438 = vld [vmem:[%s330] sm:$0xf]
        %v439 = vld [vmem:[%s330 + $0x4] sm:$0xf]
        %v440 = vld [vmem:[%s330 + $0x8] sm:$0xf]
        %v441 = vld [vmem:[%s330 + $0xc] sm:$0xf]
        %v442 = vld [vmem:[%s393] sm:$0xf]
        %v443 = vld [vmem:[%s393 + $0x4] sm:$0xf]
        %v444 = vld [vmem:[%s393 + $0x8] sm:$0xf]
        %v445 = vld [vmem:[%s393 + $0xc] sm:$0xf]
        %v446 = vld [vmem:[%s393 + $0x10] sm:$0xf]
        %v447 = vld [vmem:[%s393 + $0x14] sm:$0xf]
        %v448 = vld [vmem:[%s393 + $0x18] sm:$0xf]
        %v449 = vld [vmem:[%s393 + $0x1c] sm:$0xf]
        %v450 = vld [vmem:[%s393 + $0x20] sm:$0xf]
        %v451 = vld [vmem:[%s393 + $0x24] sm:$0xf]
        %v452 = vld [vmem:[%s393 + $0x28] sm:$0xf]
        %v453 = vld [vmem:[%s393 + $0x2c] sm:$0xf]
        %v454 = vld [vmem:[%s393 + $0x30] sm:$0xf]
        %v455 = vld [vmem:[%s393 + $0x34] sm:$0xf]
        %v456 = vld [vmem:[%s393 + $0x38] sm:$0xf]
        %v457 = vld [vmem:[%s393 + $0x3c] sm:$0xf]
        %v462 = vunpack.c.l.b16 %v438
        %v463 = vunpack.c.l.b16 %v439
        %v464 = vunpack.c.l.b16 %v440
        %v465 = vunpack.c.l.b16 %v441
        %v466 = vpack.c.b16 %v463, %v462
        %v467 = vpack.c.b16 %v465, %v464
        %v486 = vunpack.c.l.b16 %v442
        %v487 = vunpack.c.l.b16 %v443
        %v488 = vunpack.c.l.b16 %v444
        %v489 = vunpack.c.l.b16 %v445
        %v490 = vunpack.c.l.b16 %v446
        %v491 = vunpack.c.l.b16 %v447
        %v492 = vunpack.c.l.b16 %v448
        %v493 = vunpack.c.l.b16 %v449
        %v494 = vunpack.c.l.b16 %v450
        %v495 = vunpack.c.l.b16 %v451
        %v496 = vunpack.c.l.b16 %v452
        %v497 = vunpack.c.l.b16 %v453
        %v498 = vunpack.c.l.b16 %v454
        %v499 = vunpack.c.l.b16 %v455
        %v500 = vunpack.c.l.b16 %v456
        %v501 = vunpack.c.l.b16 %v457
        %v502 = vpack.c.b16 %v487, %v486
        %v503 = vpack.c.b16 %v489, %v488
        %v504 = vpack.c.b16 %v491, %v490
        %v505 = vpack.c.b16 %v493, %v492
        %v506 = vpack.c.b16 %v495, %v494
        %v507 = vpack.c.b16 %v497, %v496
        %v508 = vpack.c.b16 %v499, %v498
        %v509 = vpack.c.b16 %v501, %v500
        %518 = vmatprep.subr.bf16.mxu0 0
        %519 = vmatpush1.bf16.msra.mxu0 %v502
        %520 = vmatprep.subr.bf16.mxu0 0
        %521 = vmatpush1.bf16.msra.mxu0 %v503
        %522 = vmatprep.subr.bf16.mxu0 0
        %523 = vmatpush1.bf16.msra.mxu0 %v504
        %524 = vmatprep.subr.bf16.mxu0 0
        %525 = vmatpush1.bf16.msra.mxu0 %v505
        %526 = vmatprep.subr.bf16.mxu0 0
        %527 = vmatpush1.bf16.msra.mxu0 %v506
        %528 = vmatprep.subr.bf16.mxu0 0
        %529 = vmatpush1.bf16.msra.mxu0 %v507
        %530 = vmatprep.subr.bf16.mxu0 0
        %531 = vmatpush1.bf16.msra.mxu0 %v508
        %532 = vmatprep.subr.bf16.mxu0 0
        %533 = vmatpush1.bf16.msra.mxu0 %v509
        %534 = vmatprep.subr.bf16.mxu0 0
        %535 = vmatpush1.bf16.msra.mxu0 0
        %536 = vmatprep.subr.bf16.mxu0 0
        %537 = vmatpush1.bf16.msra.mxu0 0
        %538 = vmatprep.subr.bf16.mxu0 0
        %539 = vmatpush1.bf16.msra.mxu0 0
        %540 = vmatprep.subr.bf16.mxu0 0
        %541 = vmatpush1.bf16.msra.mxu0 0
        %542 = vmatprep.subr.bf16.mxu0 0
        %543 = vmatpush1.bf16.msra.mxu0 0
        %544 = vmatprep.subr.bf16.mxu0 0
        %545 = vmatpush1.bf16.msra.mxu0 0
        %546 = vmatprep.subr.bf16.mxu0 0
        %547 = vmatpush1.bf16.msra.mxu0 0
        %548 = vmatprep.subr.bf16.mxu0 0
        %549 = vmatpush1.bf16.msra.mxu0 0
        %550 = vmatprep.mubr.bf16.mxu0 0
        %551 = vmatmul.mubr.bf16.gmra.mrb[0].mxu0 %v466
        %v552 = vpop.f32.mrb[0].mxu0
        %v553 = vadd.f32 0.0, %v552
        %v554 = vpop.f32.mrb[0].mxu0
        %v555 = vpop.f32.mrb[0].mxu0
        %v556 = vadd.f32 0.0, %v555
        %v557 = vpop.f32.mrb[0].mxu0
        %558 = vmatprep.mubr.bf16.mxu0 0
        %559 = vmatmul.mubr.bf16.gmra.mrb[0].mxu0 %v467
        %v560 = vpop.f32.mrb[0].mxu0
        %v561 = vadd.f32 0.0, %v560
        %v562 = vpop.f32.mrb[0].mxu0
        %v563 = vpop.f32.mrb[0].mxu0
        %v564 = vadd.f32 0.0, %v563
        %v565 = vpop.f32.mrb[0].mxu0
        %566 = vdwg.mxu0
        %v567 = vadd.f32 %v434, %v553
        %v568 = vadd.f32 %v435, %v556
        %v569 = vadd.f32 %v436, %v561
        %v570 = vadd.f32 %v437, %v564
        %571 = vst [vmem:[#allocation2] sm:$0xff] %v567
        %572 = vst [vmem:[#allocation2 + $0x8] sm:$0xff] %v568
        %573 = vst [vmem:[#allocation2 + $0x10] sm:$0xff] %v569
        %574 = vst [vmem:[#allocation2 + $0x18] sm:$0xff] %v570
        %p575 = scmp.eq.s32.totalorder %s23, 4
        // Predicated region
        $region86: #{network_forward.16} parent=76 // pred_check
          %p576 = pneg %p575
        $region87: #{network_forward.16} parent=76 // pred_check_branch
          %578 = sbr.rel (%p576) target = $region89
        $region88: #{network_forward.16} parent=76 // pred_region
          %v579 = vld [vmem:[#allocation2] sm:$0xff]
          %v580 = vld [vmem:[#allocation2 + $0x8] sm:$0xff]
          %v581 = vld [vmem:[#allocation2 + $0x10] sm:$0xff]
          %v582 = vld [vmem:[#allocation2 + $0x18] sm:$0xff]
          %v583 = vld [vmem:[%s397] sm:$0x1]
          %v585 = vlaneseq
          %v586 = vshrl.u32 %v585, 7
          %v587 = vsub.s32 0, %v586
          %v588 = vrot.slane %v583, %v587
          %v590 = vadd.f32 %v579, %v588
          %v591 = vadd.f32 %v580, %v588
          %v592 = vadd.f32 %v581, %v588
          %v593 = vadd.f32 %v582, %v588
          %v594 = vld [vmem:[%s405] sm:$0xff]
          %v595 = vld [vmem:[%s405 + $0x8] sm:$0xff]
          %v596 = vld [vmem:[%s405 + $0x10] sm:$0xff]
          %v597 = vld [vmem:[%s405 + $0x18] sm:$0xff]
          %v598 = vld [vmem:[%s414] sm:$0xff]
          %v599 = vld [vmem:[%s414 + $0x8] sm:$0xff]
          %v600 = vld [vmem:[%s414 + $0x10] sm:$0xff]
          %v601 = vld [vmem:[%s414 + $0x18] sm:$0xff]
          %v602 = vsub.f32 1.0, %v594
          %v603 = vsub.f32 1.0, %v595
          %v604 = vsub.f32 1.0, %v596
          %v605 = vsub.f32 1.0, %v597
          %v606 = vmul.f32 %v602, %v598
          %v607 = vmul.f32 %v603, %v599
          %v608 = vmul.f32 %v604, %v600
          %v609 = vmul.f32 %v605, %v601
          %v610 = vtanh.pop %v590
          %v611 = vtanh.pop %v591
          %v612 = vtanh.pop %v592
          %v613 = vtanh.pop %v593
          %v614 = vmul.f32 %v594, %v610
          %v615 = vmul.f32 %v595, %v611
          %v616 = vmul.f32 %v596, %v612
          %v617 = vmul.f32 %v597, %v613
          %v618 = vadd.f32 %v606, %v614
          %v619 = vadd.f32 %v607, %v615
          %v620 = vadd.f32 %v608, %v616
          %v621 = vadd.f32 %v609, %v617
          %622 = vst [vmem:[%s423] sm:$0xff] %v618
          %623 = vst [vmem:[%s423 + $0x8] sm:$0xff] %v619
          %624 = vst [vmem:[%s423 + $0x10] sm:$0xff] %v620
          %625 = vst [vmem:[%s423 + $0x18] sm:$0xff] %v621
        $region89: #{network_forward.16} parent=76 // pred_fallthru
          _
        %s626 = smul.u32 4, %s21
        %p627 = scmp.lt.s32.totalorder %s626, 3
        %s628 = scalar_select %p627, %s626, 3
        %p629 = scmp.lt.s32.totalorder %s22, 0
        %s630 = scalar_select %p629, %s22, 0
        %s631 = sadd.s32 %s630, %s628
        %s632 = smul.addr %s631, 8
        %s633 = scalar_lea.vmem %s5, %s632
        // Predicated region
        $region90: #{network_forward.16} parent=76 // pred_check
          %p634 = pneg %p193
        $region91: #{network_forward.16} parent=76 // pred_check_branch
          %636 = sbr.rel (%p634) target = $region93
        $region92: #{network_forward.16} parent=76 // pred_region
          %s637 = smul.u32 4, %s21
        $region93: #{network_forward.16} parent=76 // pred_fallthru
          _
        // Predicated region
        $region94: #{network_forward.16} parent=76 // pred_check
          %p638 = pneg %p193
        $region95: #{network_forward.16} parent=76 // pred_check_branch
          %640 = sbr.rel (%p638) target = $region97
        $region96: #{network_forward.16} parent=76 // pred_region
          %s641 = smul.u32 4, %s21
          %p642 = scmp.lt.s32.totalorder %s641, 3
          %s643 = scalar_select %p642, %s641, 3
          %p644 = scmp.lt.s32.totalorder %s22, 0
          %s645 = scalar_select %p644, %s22, 0
          %s646 = sadd.s32 %s645, %s643
          %s647 = smul.addr %s646, 8
          %s648 = scalar_lea.vmem %s5, %s647
        $region97: #{network_forward.16} parent=76 // pred_fallthru
          _
      $region77: #{network_forward.16} parent=5 // pred_fallthru
        _
      %p649 = scmp.le.s32.totalorder 2, %s11
      // Predicated region
      $region98: #{network_forward.16} parent=5 // pred_check
        %p650 = pneg %p649
      $region99: #{network_forward.16} parent=5 // pred_check_branch
        %652 = sbr.rel (%p650) target = $region101
      $region100: #{network_forward.16} parent=5 // pred_region
        %s653 = ssub.s32 %s11, 2
      $region101: #{network_forward.16} parent=5 // pred_fallthru
        _
    $region6: #{network_forward.16} parent=1 // loop_footer
      %s15 = sadd.s32 1, %s11
    $region7: #{network_forward.16} parent=1 // loop_footer_branch
      %10 = sbr.rel target = $region3
    $region8: #{network_forward.16} parent=1 // loop_exit
      _

// kernel: network_forward.15
$region0: #{network_forward.15}
  #allocation0 [shape = 'u32[]', space=smem, size = 0x4, offset = 0x4, fixed_abs, tag = 'smem constant byte address 0x4 - core index']
  #allocation1 [shape = 'u32[144,128]{1,0:T(1,128)}', space=vmem, size = 0x12000, scoped, tag = 'internal scratch']
  #allocation2 [shape = 'f32[32,128]{1,0:T(8,128)}', space=vmem, size = 0x4000, scoped, tag = 'scratch operand']
  %s0 = inlined_call_operand.vmem [shape: bf16[32,640], index: 0, kind: input, shape index: {}]
  %s1 = inlined_call_operand.vmem [shape: bf16[640,128], index: 1, kind: input, shape index: {}]
  %s2 = inlined_call_operand.vmem [shape: f32[1,128], index: 2, kind: input, shape index: {}]
  %s3 = inlined_call_operand.vmem [shape: f32[32,128], index: 3, kind: output, shape index: {}]
  %s4 = sld [smem:[#allocation0]]
  $region94: #{network_forward.15} parent=0
    _
  %s6 = ssub.s32 1, %s4
  %s7 = scalar_select 0, %s6, %s4
  $region1: #{network_forward.15} parent=0
    #allocation3 [shape = 'u8[16384]{0}', space=vmem, size = 0x4000, scoped, tag = 'input window, operand 0']
    loop: start=0, step=1, limit=7
    $region2: #{network_forward.15} parent=1 // loop_pre_header
      _
    $region3: #{network_forward.15} parent=1 // loop_header
      %s9 = sphi 0, %s13
      %p10 = scmp.ge.s32.totalorder %s9, 7
      %s16 = sphi 0, %s35
      %s17 = sphi 0, %s31
      %s18 = sphi 0, %s27
      %s19 = sphi 0, %s16
      %s20 = sphi 0, %s17
      %s21 = sphi 0, %s18
      %s22 = sphi 0, %s19
      %s23 = sphi 0, %s20
      %s24 = sphi 0, %s21
      %s40 = sphi 0, %s42
      %s43 = sphi 0, %s40
      %s44 = sphi 0, %s43
      %s60 = sphi 0, %s44
      %s68 = sphi 0, %s70
      %s71 = sphi 0, %s68
      %s72 = sphi 0, %s71
      %s88 = sphi 0, %s72
      %s94 = sphi 0, %s96
      %s97 = sphi 0, %s94
      %s98 = sphi 0, %s97
      %s114 = sphi 0, %s98
      %s122 = sphi 0, %s124
      %s125 = sphi 0, %s122
      %s126 = sphi 0, %s125
      %s142 = sphi 0, %s126
    $region4: #{network_forward.15} parent=1 // loop_header_branch
      %12 = sbr.rel (%p10) target = $region8
    $region5: #{network_forward.15} parent=1 // loop_body
      %s14 = ssub.s32 %s9, 1
      %s15 = ssub.s32 %s9, 2
      %s25 = sadd.s32 1, %s18
      %p26 = scmp.ge.s32.totalorder %s25, 5
      %s27 = scalar_select %p26, 0, %s25
      %s28 = sadd.s32 1, %s17
      %s29 = scalar_select %p26, %s28, %s17
      %p30 = scmp.ge.s32.totalorder %s29, 1
      %s31 = scalar_select %p30, 0, %s29
      %s32 = sadd.s32 1, %s16
      %s33 = scalar_select %p30, %s32, %s16
      %p34 = scmp.ge.s32.totalorder %s33, 1
      %s35 = scalar_select %p34, 0, %s33
      %s36 = ssub.s32 %s16, %s35
      %s37 = ssub.s32 %s18, %s27
      %s38 = sor.u32 %s36, %s37
      %p39 = scmp.eq.s32.totalorder %s38, 0
      %s41 = sadd.s32 %s40, 1
      %s42 = scalar_select %p39, %s40, %s41
      %p45 = pneg %p39
      %p46 = scmp.eq.s32.totalorder %s9, 4
      %p47 = por %p45, %p46
      %p48 = scmp.ne.s32.totalorder %s40, %s43
      %p49 = scmp.eq.s32.totalorder %s9, 0
      %p50 = por %p48, %p49
      %p51 = scmp.ne.s32.totalorder %s40, %s43
      %p52 = scmp.eq.s32.totalorder %s14, 4
      %p53 = por %p51, %p52
      %p54 = scmp.ne.s32.totalorder %s43, %s44
      %p55 = scmp.eq.s32.totalorder %s14, 0
      %p56 = por %p54, %p55
      %p57 = scmp.ne.s32.totalorder %s43, %s44
      %p58 = scmp.eq.s32.totalorder %s15, 4
      %p59 = por %p57, %p58
      %p61 = scmp.ne.s32.totalorder %s44, %s60
      %p62 = scmp.eq.s32.totalorder %s15, 0
      %p63 = por %p61, %p62
      %s64 = ssub.s32 %s18, %s27
      %s65 = ssub.s32 %s17, %s31
      %s66 = sor.u32 %s64, %s65
      %p67 = scmp.eq.s32.totalorder %s66, 0
      %s69 = sadd.s32 %s68, 1
      %s70 = scalar_select %p67, %s68, %s69
      %p73 = pneg %p67
      %p74 = scmp.eq.s32.totalorder %s9, 4
      %p75 = por %p73, %p74
      %p76 = scmp.ne.s32.totalorder %s68, %s71
      %p77 = scmp.eq.s32.totalorder %s9, 0
      %p78 = por %p76, %p77
      %p79 = scmp.ne.s32.totalorder %s68, %s71
      %p80 = scmp.eq.s32.totalorder %s14, 4
      %p81 = por %p79, %p80
      %p82 = scmp.ne.s32.totalorder %s71, %s72
      %p83 = scmp.eq.s32.totalorder %s14, 0
      %p84 = por %p82, %p83
      %p85 = scmp.ne.s32.totalorder %s71, %s72
      %p86 = scmp.eq.s32.totalorder %s15, 4
      %p87 = por %p85, %p86
      %p89 = scmp.ne.s32.totalorder %s72, %s88
      %p90 = scmp.eq.s32.totalorder %s15, 0
      %p91 = por %p89, %p90
      %s92 = ssub.s32 %s17, %s31
      %p93 = scmp.eq.s32.totalorder %s92, 0
      %s95 = sadd.s32 %s94, 1
      %s96 = scalar_select %p93, %s94, %s95
      %p99 = pneg %p93
      %p100 = scmp.eq.s32.totalorder %s9, 4
      %p101 = por %p99, %p100
      %p102 = scmp.ne.s32.totalorder %s94, %s97
      %p103 = scmp.eq.s32.totalorder %s9, 0
      %p104 = por %p102, %p103
      %p105 = scmp.ne.s32.totalorder %s94, %s97
      %p106 = scmp.eq.s32.totalorder %s14, 4
      %p107 = por %p105, %p106
      %p108 = scmp.ne.s32.totalorder %s97, %s98
      %p109 = scmp.eq.s32.totalorder %s14, 0
      %p110 = por %p108, %p109
      %p111 = scmp.ne.s32.totalorder %s97, %s98
      %p112 = scmp.eq.s32.totalorder %s15, 4
      %p113 = por %p111, %p112
      %p115 = scmp.ne.s32.totalorder %s98, %s114
      %p116 = scmp.eq.s32.totalorder %s15, 0
      %p117 = por %p115, %p116
      %s118 = ssub.s32 %s16, %s35
      %s119 = ssub.s32 %s17, %s31
      %s120 = sor.u32 %s118, %s119
      %p121 = scmp.eq.s32.totalorder %s120, 0
      %s123 = sadd.s32 %s122, 1
      %s124 = scalar_select %p121, %s122, %s123
      %p127 = pneg %p121
      %p128 = scmp.eq.s32.totalorder %s9, 4
      %p129 = por %p127, %p128
      %p130 = scmp.ne.s32.totalorder %s122, %s125
      %p131 = scmp.eq.s32.totalorder %s9, 0
      %p132 = por %p130, %p131
      %p133 = scmp.ne.s32.totalorder %s122, %s125
      %p134 = scmp.eq.s32.totalorder %s14, 4
      %p135 = por %p133, %p134
      %p136 = scmp.ne.s32.totalorder %s125, %s126
      %p137 = scmp.eq.s32.totalorder %s14, 0
      %p138 = por %p136, %p137
      %p139 = scmp.ne.s32.totalorder %s125, %s126
      %p140 = scmp.eq.s32.totalorder %s15, 4
      %p141 = por %p139, %p140
      %p143 = scmp.ne.s32.totalorder %s126, %s142
      %p144 = scmp.eq.s32.totalorder %s15, 0
      %p145 = por %p143, %p144
      %p146 = scmp.le.s32.totalorder 1, %s9
      %p147 = scmp.lt.s32.totalorder %s9, 6
      %p148 = pnand %p146, %p147
      %p149 = pneg %p148
      // Predicated region
      $region9: #{network_forward.15} parent=5 // pred_check
        _
      $region10: #{network_forward.15} parent=5 // pred_check_branch
        %151 = sbr.rel (%p148) target = $region12
      $region11: #{network_forward.15} parent=5 // pred_region
        %s152 = ssub.s32 %s9, 1
        // Predicated region
        $region13: #{network_forward.15} parent=11 // pred_check
          %p153 = pneg %p110
        $region14: #{network_forward.15} parent=11 // pred_check_branch
          %155 = sbr.rel (%p153) target = $region16
        $region15: #{network_forward.15} parent=11 // pred_region
          %p156 = scmp.lt.s32.totalorder %s20, 0
          %s157 = scalar_select %p156, %s20, 0
          %s158 = scalar_lea.vmem %s2, %s157
        $region16: #{network_forward.15} parent=11 // pred_fallthru
          _
      $region12: #{network_forward.15} parent=5 // pred_fallthru
        _
      %p159 = scmp.lt.s32.totalorder %s9, 5
      // Predicated region
      $region17: #{network_forward.15} parent=5 // pred_check
        %p160 = pneg %p159
      $region18: #{network_forward.15} parent=5 // pred_check_branch
        %162 = sbr.rel (%p160) target = $region20
      $region19: #{network_forward.15} parent=5 // pred_region
        // Predicated region
        $region21: #{network_forward.15} parent=19 // pred_check
          %p163 = pneg %p50
        $region22: #{network_forward.15} parent=19 // pred_check_branch
          %165 = sbr.rel (%p163) target = $region24
        $region23: #{network_forward.15} parent=19 // pred_region
          %s166 = sand.u32 %s40, 1
          %s167 = sand.u32 %s40, 1
          %s168 = smul.addr %s167, 16
          %s169 = scalar_lea.vmem [#allocation3], %s168
          %s170 = smul.u32 4, %s16
          %s171 = smul.addr %s170, 5
          %s172 = sadd.s32 %s18, %s171
          %s173 = smul.addr %s172, 4
          %s174 = scalar_lea.vmem %s0, %s173
          // Predicated region
          $region25: #{network_forward.15} parent=23 // pred_check
            _
          $region26: #{network_forward.15} parent=23 // pred_check_branch
            %176 = sbr.rel (0) target = $region28
          $region27: #{network_forward.15} parent=23 // pred_region
            // Predicated region
            $region29: #{network_forward.15} parent=27 // pred_check
              _
            $region30: #{network_forward.15} parent=27 // pred_check_branch
              %178 = sbr.rel target = $region32
            $region31: #{network_forward.15} parent=27 // pred_region
              // Predicated region
              $region44: #{network_forward.15} parent=31 // pred_check
                _
              $region45: #{network_forward.15} parent=31 // pred_check_branch
                %199 = sbr.rel (0) target = $region47
              $region46: #{network_forward.15} parent=31 // pred_region
                loop: start=0, step=1, limit=1
                $region48: #{network_forward.15} parent=46 // loop_pre_header
                  _
                $region49: #{network_forward.15} parent=46 // loop_header
                  %s201 = sphi 0, %s205
                  %p202 = scmp.ge.s32.totalorder %s201, 1
                  %s206 = sphi %s174, %s174
                  %s207 = sphi %s169, %s169
                $region50: #{network_forward.15} parent=46 // loop_header_branch
                  %204 = sbr.rel (%p202) target = $region54
                $region51: #{network_forward.15} parent=46 // loop_body
                  _
                $region52: #{network_forward.15} parent=46 // loop_footer
                  %s205 = sadd.s32 1, %s201
                $region53: #{network_forward.15} parent=46 // loop_footer_branch
                  %200 = sbr.rel target = $region49
                $region54: #{network_forward.15} parent=46 // loop_exit
                  _
                loop: start=0, step=1, limit=1
                $region55: #{network_forward.15} parent=46 // loop_pre_header
                  _
                $region56: #{network_forward.15} parent=46 // loop_header
                  %s210 = sphi 0, %s214
                  %p211 = scmp.ge.s32.totalorder %s210, 1
                  %s215 = sphi %s174, %s174
                  %s216 = sphi %s169, %s169
                $region57: #{network_forward.15} parent=46 // loop_header_branch
                  %213 = sbr.rel (%p211) target = $region61
                $region58: #{network_forward.15} parent=46 // loop_body
                  %v217 = vld [vmem:[%s215] sm:$0xf]
                  %218 = vst [vmem:[%s216] sm:$0xf] %v217
                  %v219 = vld [vmem:[%s215 + $0x14] sm:$0xf]
                  %220 = vst [vmem:[%s216 + $0x4] sm:$0xf] %v219
                  %v221 = vld [vmem:[%s215 + $0x28] sm:$0xf]
                  %222 = vst [vmem:[%s216 + $0x8] sm:$0xf] %v221
                  %v223 = vld [vmem:[%s215 + $0x3c] sm:$0xf]
                  %224 = vst [vmem:[%s216 + $0xc] sm:$0xf] %v223
                $region59: #{network_forward.15} parent=46 // loop_footer
                  %s214 = sadd.s32 1, %s210
                $region60: #{network_forward.15} parent=46 // loop_footer_branch
                  %209 = sbr.rel target = $region56
                $region61: #{network_forward.15} parent=46 // loop_exit
                  _
              $region47: #{network_forward.15} parent=31 // pred_fallthru
                _
            $region32: #{network_forward.15} parent=27 // pred_fallthru
              _
            // Predicated region
            $region33: #{network_forward.15} parent=27 // pred_check
              _
            $region34: #{network_forward.15} parent=27 // pred_check_branch
              %180 = sbr.rel (0) target = $region36
            $region35: #{network_forward.15} parent=27 // pred_region
              loop: start=0, step=1, limit=1
              $region37: #{network_forward.15} parent=35 // loop_pre_header
                _
              $region38: #{network_forward.15} parent=35 // loop_header
                %s183 = sphi 0, %s187
                %p184 = scmp.ge.s32.totalorder %s183, 1
                %s188 = sphi %s174, %s174
                %s189 = sphi %s169, %s169
              $region39: #{network_forward.15} parent=35 // loop_header_branch
                %186 = sbr.rel (%p184) target = $region43
              $region40: #{network_forward.15} parent=35 // loop_body
                %v190 = vld [vmem:[%s188] sm:$0xf]
                %191 = vst [vmem:[%s189] sm:$0xf] %v190
                %v192 = vld [vmem:[%s188 + $0x14] sm:$0xf]
                %193 = vst [vmem:[%s189 + $0x4] sm:$0xf] %v192
                %v194 = vld [vmem:[%s188 + $0x28] sm:$0xf]
                %195 = vst [vmem:[%s189 + $0x8] sm:$0xf] %v194
                %v196 = vld [vmem:[%s188 + $0x3c] sm:$0xf]
                %197 = vst [vmem:[%s189 + $0xc] sm:$0xf] %v196
              $region41: #{network_forward.15} parent=35 // loop_footer
                %s187 = sadd.s32 1, %s183
              $region42: #{network_forward.15} parent=35 // loop_footer_branch
                %182 = sbr.rel target = $region38
              $region43: #{network_forward.15} parent=35 // loop_exit
                _
            $region36: #{network_forward.15} parent=27 // pred_fallthru
              _
          $region28: #{network_forward.15} parent=23 // pred_fallthru
            _
          %225 = vnop
        $region24: #{network_forward.15} parent=19 // pred_fallthru
          _
        // Predicated region
        $region62: #{network_forward.15} parent=19 // pred_check
          %p226 = pneg %p78
        $region63: #{network_forward.15} parent=19 // pred_check_branch
          %228 = sbr.rel (%p226) target = $region65
        $region64: #{network_forward.15} parent=19 // pred_region
          %s229 = smul.u32 16, %s18
          %p230 = scmp.lt.s32.totalorder %s229, 79
          %s231 = scalar_select %p230, %s229, 79
          %p232 = scmp.lt.s32.totalorder %s17, 0
          %s233 = scalar_select %p232, %s17, 0
          %s234 = sadd.s32 %s233, %s231
          %s235 = smul.addr %s234, 4
          %s236 = scalar_lea.vmem %s1, %s235
          %s237 = smul.u32 16, %s18
        $region65: #{network_forward.15} parent=19 // pred_fallthru
          _
      $region20: #{network_forward.15} parent=5 // pred_fallthru
        _
      %p238 = scmp.le.s32.totalorder 1, %s9
      %p239 = scmp.lt.s32.totalorder %s9, 6
      %p240 = pnand %p238, %p239
      %p241 = pneg %p240
      // Predicated region
      $region66: #{network_forward.15} parent=5 // pred_check
        _
      $region67: #{network_forward.15} parent=5 // pred_check_branch
        %243 = sbr.rel (%p240) target = $region69
      $region68: #{network_forward.15} parent=5 // pred_region
        %s244 = ssub.s32 %s9, 1
        %s245 = sand.u32 %s43, 1
        %s246 = sand.u32 %s43, 1
        %s247 = smul.addr %s246, 16
        %s248 = scalar_lea.vmem [#allocation3], %s247
        // Predicated region
        $region70: #{network_forward.15} parent=68 // pred_check
          %p249 = pneg %p56
        $region71: #{network_forward.15} parent=68 // pred_check_branch
          %251 = sbr.rel (%p249) target = $region73
        $region72: #{network_forward.15} parent=68 // pred_region
          _
        $region73: #{network_forward.15} parent=68 // pred_fallthru
          _
        %s252 = sand.u32 %s43, 1
        %s253 = sand.u32 %s43, 1
        %s254 = smul.addr %s253, 16
        %s255 = scalar_lea.vmem [#allocation3], %s254
        %p256 = pneg %p56
        %p257 = pneg %p53
        %s258 = smul.u32 16, %s21
        %p259 = scmp.lt.s32.totalorder %s258, 79
        %s260 = scalar_select %p259, %s258, 79
        %p261 = scmp.lt.s32.totalorder %s20, 0
        %s262 = scalar_select %p261, %s20, 0
        %s263 = sadd.s32 %s262, %s260
        %s264 = smul.addr %s263, 4
        %s265 = scalar_lea.vmem %s1, %s264
        %p266 = pneg %p84
        %p267 = pneg %p81
        %p268 = scmp.lt.s32.totalorder %s20, 0
        %s269 = scalar_select %p268, %s20, 0
        %s270 = scalar_lea.vmem %s2, %s269
        %p271 = pneg %p110
        %p272 = pneg %p107
        %p273 = pneg %p138
        %p274 = pneg %p135
        %s275 = smul.u32 4, %s19
        %p276 = scmp.lt.s32.totalorder %s275, 3
        %s277 = scalar_select %p276, %s275, 3
        %p278 = scmp.lt.s32.totalorder %s20, 0
        %s279 = scalar_select %p278, %s20, 0
        %s280 = sadd.s32 %s279, %s277
        %s281 = smul.addr %s280, 8
        %s282 = scalar_lea.vmem %s3, %s281
        %s283 = smul.u32 4, %s19
        %s284 = smul.u32 16, %s21
        %p285 = scmp.lt.s32.totalorder %s284, 79
        %s286 = scalar_select %p285, %s284, 79
        %p287 = scmp.lt.s32.totalorder %s20, 0
        %s288 = scalar_select %p287, %s20, 0
        %s289 = sadd.s32 %s288, %s286
        %s290 = smul.addr %s289, 4
        %s291 = scalar_lea.vmem %s1, %s290
        %s292 = smul.u32 16, %s21
        %p293 = scmp.lt.s32.totalorder %s20, 0
        %s294 = scalar_select %p293, %s20, 0
        %s295 = scalar_lea.vmem %s2, %s294
        %s296 = smul.u32 4, %s19
        %p297 = scmp.lt.s32.totalorder %s296, 3
        %s298 = scalar_select %p297, %s296, 3
        %p299 = scmp.lt.s32.totalorder %s20, 0
        %s300 = scalar_select %p299, %s20, 0
        %s301 = sadd.s32 %s300, %s298
        %s302 = smul.addr %s301, 8
        %s303 = scalar_lea.vmem %s3, %s302
        %s304 = smul.u32 4, %s19
        %p306 = scmp.eq.s32.totalorder %s21, 0
        // Predicated region
        $region74: #{network_forward.15} parent=68 // pred_check
          %p307 = pneg %p306
        $region75: #{network_forward.15} parent=68 // pred_check_branch
          %309 = sbr.rel (%p307) target = $region77
        $region76: #{network_forward.15} parent=68 // pred_region
          %310 = vst [vmem:[#allocation2] sm:$0xff] 0.0
          %311 = vst [vmem:[#allocation2 + $0x8] sm:$0xff] 0.0
          %312 = vst [vmem:[#allocation2 + $0x10] sm:$0xff] 0.0
          %313 = vst [vmem:[#allocation2 + $0x18] sm:$0xff] 0.0
        $region77: #{network_forward.15} parent=68 // pred_fallthru
          _
        %v314 = vld [vmem:[#allocation2] sm:$0xff]
        %v315 = vld [vmem:[#allocation2 + $0x8] sm:$0xff]
        %v316 = vld [vmem:[#allocation2 + $0x10] sm:$0xff]
        %v317 = vld [vmem:[#allocation2 + $0x18] sm:$0xff]
        %v318 = vld [vmem:[%s248] sm:$0xf]
        %v319 = vld [vmem:[%s248 + $0x4] sm:$0xf]
        %v320 = vld [vmem:[%s248 + $0x8] sm:$0xf]
        %v321 = vld [vmem:[%s248 + $0xc] sm:$0xf]
        %v322 = vld [vmem:[%s291] sm:$0xf]
        %v323 = vld [vmem:[%s291 + $0x4] sm:$0xf]
        %v324 = vld [vmem:[%s291 + $0x8] sm:$0xf]
        %v325 = vld [vmem:[%s291 + $0xc] sm:$0xf]
        %v326 = vld [vmem:[%s291 + $0x10] sm:$0xf]
        %v327 = vld [vmem:[%s291 + $0x14] sm:$0xf]
        %v328 = vld [vmem:[%s291 + $0x18] sm:$0xf]
        %v329 = vld [vmem:[%s291 + $0x1c] sm:$0xf]
        %v330 = vld [vmem:[%s291 + $0x20] sm:$0xf]
        %v331 = vld [vmem:[%s291 + $0x24] sm:$0xf]
        %v332 = vld [vmem:[%s291 + $0x28] sm:$0xf]
        %v333 = vld [vmem:[%s291 + $0x2c] sm:$0xf]
        %v334 = vld [vmem:[%s291 + $0x30] sm:$0xf]
        %v335 = vld [vmem:[%s291 + $0x34] sm:$0xf]
        %v336 = vld [vmem:[%s291 + $0x38] sm:$0xf]
        %v337 = vld [vmem:[%s291 + $0x3c] sm:$0xf]
        %v342 = vunpack.c.l.b16 %v318
        %v343 = vunpack.c.l.b16 %v319
        %v344 = vunpack.c.l.b16 %v320
        %v345 = vunpack.c.l.b16 %v321
        %v346 = vpack.c.b16 %v343, %v342
        %v347 = vpack.c.b16 %v345, %v344
        %v366 = vunpack.c.l.b16 %v322
        %v367 = vunpack.c.l.b16 %v323
        %v368 = vunpack.c.l.b16 %v324
        %v369 = vunpack.c.l.b16 %v325
        %v370 = vunpack.c.l.b16 %v326
        %v371 = vunpack.c.l.b16 %v327
        %v372 = vunpack.c.l.b16 %v328
        %v373 = vunpack.c.l.b16 %v329
        %v374 = vunpack.c.l.b16 %v330
        %v375 = vunpack.c.l.b16 %v331
        %v376 = vunpack.c.l.b16 %v332
        %v377 = vunpack.c.l.b16 %v333
        %v378 = vunpack.c.l.b16 %v334
        %v379 = vunpack.c.l.b16 %v335
        %v380 = vunpack.c.l.b16 %v336
        %v381 = vunpack.c.l.b16 %v337
        %v382 = vpack.c.b16 %v367, %v366
        %v383 = vpack.c.b16 %v369, %v368
        %v384 = vpack.c.b16 %v371, %v370
        %v385 = vpack.c.b16 %v373, %v372
        %v386 = vpack.c.b16 %v375, %v374
        %v387 = vpack.c.b16 %v377, %v376
        %v388 = vpack.c.b16 %v379, %v378
        %v389 = vpack.c.b16 %v381, %v380
        %398 = vmatprep.subr.bf16.mxu0 0
        %399 = vmatpush1.bf16.msra.mxu0 %v382
        %400 = vmatprep.subr.bf16.mxu0 0
        %401 = vmatpush1.bf16.msra.mxu0 %v383
        %402 = vmatprep.subr.bf16.mxu0 0
        %403 = vmatpush1.bf16.msra.mxu0 %v384
        %404 = vmatprep.subr.bf16.mxu0 0
        %405 = vmatpush1.bf16.msra.mxu0 %v385
        %406 = vmatprep.subr.bf16.mxu0 0
        %407 = vmatpush1.bf16.msra.mxu0 %v386
        %408 = vmatprep.subr.bf16.mxu0 0
        %409 = vmatpush1.bf16.msra.mxu0 %v387
        %410 = vmatprep.subr.bf16.mxu0 0
        %411 = vmatpush1.bf16.msra.mxu0 %v388
        %412 = vmatprep.subr.bf16.mxu0 0
        %413 = vmatpush1.bf16.msra.mxu0 %v389
        %414 = vmatprep.subr.bf16.mxu0 0
        %415 = vmatpush1.bf16.msra.mxu0 0
        %416 = vmatprep.subr.bf16.mxu0 0
        %417 = vmatpush1.bf16.msra.mxu0 0
        %418 = vmatprep.subr.bf16.mxu0 0
        %419 = vmatpush1.bf16.msra.mxu0 0
        %420 = vmatprep.subr.bf16.mxu0 0
        %421 = vmatpush1.bf16.msra.mxu0 0
        %422 = vmatprep.subr.bf16.mxu0 0
        %423 = vmatpush1.bf16.msra.mxu0 0
        %424 = vmatprep.subr.bf16.mxu0 0
        %425 = vmatpush1.bf16.msra.mxu0 0
        %426 = vmatprep.subr.bf16.mxu0 0
        %427 = vmatpush1.bf16.msra.mxu0 0
        %428 = vmatprep.subr.bf16.mxu0 0
        %429 = vmatpush1.bf16.msra.mxu0 0
        %430 = vmatprep.mubr.bf16.mxu0 0
        %431 = vmatmul.mubr.bf16.gmra.mrb[0].mxu0 %v346
        %v432 = vpop.f32.mrb[0].mxu0
        %v433 = vadd.f32 0.0, %v432
        %v434 = vpop.f32.mrb[0].mxu0
        %v435 = vpop.f32.mrb[0].mxu0
        %v436 = vadd.f32 0.0, %v435
        %v437 = vpop.f32.mrb[0].mxu0
        %438 = vmatprep.mubr.bf16.mxu0 0
        %439 = vmatmul.mubr.bf16.gmra.mrb[0].mxu0 %v347
        %v440 = vpop.f32.mrb[0].mxu0
        %v441 = vadd.f32 0.0, %v440
        %v442 = vpop.f32.mrb[0].mxu0
        %v443 = vpop.f32.mrb[0].mxu0
        %v444 = vadd.f32 0.0, %v443
        %v445 = vpop.f32.mrb[0].mxu0
        %446 = vdwg.mxu0
        %v447 = vadd.f32 %v314, %v433
        %v448 = vadd.f32 %v315, %v436
        %v449 = vadd.f32 %v316, %v441
        %v450 = vadd.f32 %v317, %v444
        %451 = vst [vmem:[#allocation2] sm:$0xff] %v447
        %452 = vst [vmem:[#allocation2 + $0x8] sm:$0xff] %v448
        %453 = vst [vmem:[#allocation2 + $0x10] sm:$0xff] %v449
        %454 = vst [vmem:[#allocation2 + $0x18] sm:$0xff] %v450
        %p455 = scmp.eq.s32.totalorder %s21, 4
        // Predicated region
        $region78: #{network_forward.15} parent=68 // pred_check
          %p456 = pneg %p455
        $region79: #{network_forward.15} parent=68 // pred_check_branch
          %458 = sbr.rel (%p456) target = $region81
        $region80: #{network_forward.15} parent=68 // pred_region
          %v459 = vld [vmem:[#allocation2] sm:$0xff]
          %v460 = vld [vmem:[#allocation2 + $0x8] sm:$0xff]
          %v461 = vld [vmem:[#allocation2 + $0x10] sm:$0xff]
          %v462 = vld [vmem:[#allocation2 + $0x18] sm:$0xff]
          %v463 = vld [vmem:[%s295] sm:$0x1]
          %v465 = vlaneseq
          %v466 = vshrl.u32 %v465, 7
          %v467 = vsub.s32 0, %v466
          %v468 = vrot.slane %v463, %v467
          %v470 = vadd.f32 %v459, %v468
          %v471 = vadd.f32 %v460, %v468
          %v472 = vadd.f32 %v461, %v468
          %v473 = vadd.f32 %v462, %v468
          %v474 = vxor.u32 %v470, 2147483648
          %v475 = vxor.u32 %v471, 2147483648
          %v476 = vxor.u32 %v472, 2147483648
          %v477 = vxor.u32 %v473, 2147483648
          %v478 = vmul.f32 %v474, 1.442695
          %v479 = vpow.pop %v478
          %v480 = vmul.f32 %v475, 1.442695
          %v481 = vpow.pop %v480
          %v482 = vmul.f32 %v476, 1.442695
          %v483 = vpow.pop %v482
          %v484 = vmul.f32 %v477, 1.442695
          %v485 = vpow.pop %v484
          %v486 = vadd.f32 %v479, 1.0
          %v487 = vadd.f32 %v481, 1.0
          %v488 = vadd.f32 %v483, 1.0
          %v489 = vadd.f32 %v485, 1.0
          %v490 = vrcp.pop %v486
          %v491 = vmul.f32 1.0, %v490
          %v492 = vrcp.pop %v487
          %v493 = vmul.f32 1.0, %v492
          %v494 = vrcp.pop %v488
          %v495 = vmul.f32 1.0, %v494
          %v496 = vrcp.pop %v489
          %v497 = vmul.f32 1.0, %v496
          %498 = vst [vmem:[%s303] sm:$0xff] %v491
          %499 = vst [vmem:[%s303 + $0x8] sm:$0xff] %v493
          %500 = vst [vmem:[%s303 + $0x10] sm:$0xff] %v495
          %501 = vst [vmem:[%s303 + $0x18] sm:$0xff] %v497
        $region81: #{network_forward.15} parent=68 // pred_fallthru
          _
        %s502 = smul.u32 4, %s19
        %p503 = scmp.lt.s32.totalorder %s502, 3
        %s504 = scalar_select %p503, %s502, 3
        %p505 = scmp.lt.s32.totalorder %s20, 0
        %s506 = scalar_select %p505, %s20, 0
        %s507 = sadd.s32 %s506, %s504
        %s508 = smul.addr %s507, 8
        %s509 = scalar_lea.vmem %s3, %s508
        // Predicated region
        $region82: #{network_forward.15} parent=68 // pred_check
          %p510 = pneg %p135
        $region83: #{network_forward.15} parent=68 // pred_check_branch
          %512 = sbr.rel (%p510) target = $region85
        $region84: #{network_forward.15} parent=68 // pred_region
          %s513 = smul.u32 4, %s19
        $region85: #{network_forward.15} parent=68 // pred_fallthru
          _
        // Predicated region
        $region86: #{network_forward.15} parent=68 // pred_check
          %p514 = pneg %p135
        $region87: #{network_forward.15} parent=68 // pred_check_branch
          %516 = sbr.rel (%p514) target = $region89
        $region88: #{network_forward.15} parent=68 // pred_region
          %s517 = smul.u32 4, %s19
          %p518 = scmp.lt.s32.totalorder %s517, 3
          %s519 = scalar_select %p518, %s517, 3
          %p520 = scmp.lt.s32.totalorder %s20, 0
          %s521 = scalar_select %p520, %s20, 0
          %s522 = sadd.s32 %s521, %s519
          %s523 = smul.addr %s522, 8
          %s524 = scalar_lea.vmem %s3, %s523
        $region89: #{network_forward.15} parent=68 // pred_fallthru
          _
      $region69: #{network_forward.15} parent=5 // pred_fallthru
        _
      %p525 = scmp.le.s32.totalorder 2, %s9
      // Predicated region
      $region90: #{network_forward.15} parent=5 // pred_check
        %p526 = pneg %p525
      $region91: #{network_forward.15} parent=5 // pred_check_branch
        %528 = sbr.rel (%p526) target = $region93
      $region92: #{network_forward.15} parent=5 // pred_region
        %s529 = ssub.s32 %s9, 2
      $region93: #{network_forward.15} parent=5 // pred_fallthru
        _
    $region6: #{network_forward.15} parent=1 // loop_footer
      %s13 = sadd.s32 1, %s9
    $region7: #{network_forward.15} parent=1 // loop_footer_branch
      %8 = sbr.rel target = $region3
    $region8: #{network_forward.15} parent=1 // loop_exit
      _

// kernel: network_forward.17
$region0: #{network_forward.17}
  #allocation0 [shape = 'u32[]', space=smem, size = 0x4, offset = 0x4, fixed_abs, tag = 'smem constant byte address 0x4 - core index']
  #allocation1 [shape = 'u32[144,128]{1,0:T(1,128)}', space=vmem, size = 0x12000, scoped, tag = 'internal scratch']
  #allocation2 [shape = 'f32[32,128]{1,0:T(8,128)}', space=vmem, size = 0x4000, scoped, tag = 'scratch operand']
  %s0 = inlined_call_operand.vmem [shape: bf16[32,384], index: 0, kind: input, shape index: {}]
  %s1 = inlined_call_operand.vmem [shape: bf16[384,128], index: 1, kind: input, shape index: {}]
  %s2 = inlined_call_operand.vmem [shape: f32[1,128], index: 2, kind: input, shape index: {}]
  %s3 = inlined_call_operand.vmem [shape: f32[32,128], index: 3, kind: input, shape index: {}]
  %s4 = inlined_call_operand.vmem [shape: f32[32,128], index: 4, kind: output, shape index: {}]
  %s5 = sld [smem:[#allocation0]]
  $region34: #{network_forward.17} parent=0
    _
  %s7 = ssub.s32 1, %s5
  %s8 = scalar_select 0, %s7, %s5
  // Predicated region
  $region2: #{network_forward.17} parent=0 // pred_check
    _
  $region3: #{network_forward.17} parent=0 // pred_check_branch
    %10 = sbr.rel (0) target = $region5
  $region4: #{network_forward.17} parent=0 // pred_region
    _
  $region5: #{network_forward.17} parent=0 // pred_fallthru
    _
  // Predicated region
  $region6: #{network_forward.17} parent=0 // pred_check
    _
  $region7: #{network_forward.17} parent=0 // pred_check_branch
    %12 = sbr.rel (0) target = $region9
  $region8: #{network_forward.17} parent=0 // pred_region
    _
  $region9: #{network_forward.17} parent=0 // pred_fallthru
    _
  // Predicated region
  $region10: #{network_forward.17} parent=0 // pred_check
    _
  $region11: #{network_forward.17} parent=0 // pred_check_branch
    %14 = sbr.rel (0) target = $region13
  $region12: #{network_forward.17} parent=0 // pred_region
    _
  $region13: #{network_forward.17} parent=0 // pred_fallthru
    _
  // Predicated region
  $region14: #{network_forward.17} parent=0 // pred_check
    _
  $region15: #{network_forward.17} parent=0 // pred_check_branch
    %16 = sbr.rel (0) target = $region17
  $region16: #{network_forward.17} parent=0 // pred_region
    _
  $region17: #{network_forward.17} parent=0 // pred_fallthru
    _
  %p18 = scmp.eq.s32.totalorder 0, 0
  // Predicated region
  $region18: #{network_forward.17} parent=0 // pred_check
    %p19 = pneg %p18
  $region19: #{network_forward.17} parent=0 // pred_check_branch
    %21 = sbr.rel (%p19) target = $region21
  $region20: #{network_forward.17} parent=0 // pred_region
    %22 = vst [vmem:[#allocation2] sm:$0xff] 0.0
    %23 = vst [vmem:[#allocation2 + $0x8] sm:$0xff] 0.0
    %24 = vst [vmem:[#allocation2 + $0x10] sm:$0xff] 0.0
    %25 = vst [vmem:[#allocation2 + $0x18] sm:$0xff] 0.0
  $region21: #{network_forward.17} parent=0 // pred_fallthru
    _
  %v26 = vld [vmem:[#allocation2] sm:$0xff]
  %v27 = vld [vmem:[#allocation2 + $0x8] sm:$0xff]
  %v28 = vld [vmem:[#allocation2 + $0x10] sm:$0xff]
  %v29 = vld [vmem:[#allocation2 + $0x18] sm:$0xff]
  %v30 = vld [vmem:[%s0] sm:$0xff]
  %v31 = vld [vmem:[%s0 + $0x8] sm:$0xf]
  %v32 = vld [vmem:[%s0 + $0xc] sm:$0xff]
  %v33 = vld [vmem:[%s0 + $0x14] sm:$0xf]
  %v34 = vld [vmem:[%s0 + $0x18] sm:$0xff]
  %v35 = vld [vmem:[%s0 + $0x20] sm:$0xf]
  %v36 = vld [vmem:[%s0 + $0x24] sm:$0xff]
  %v37 = vld [vmem:[%s0 + $0x2c] sm:$0xf]
  %v38 = vld [vmem:[%s1] sm:$0xf]
  %v39 = vld [vmem:[%s1 + $0x4] sm:$0xf]
  %v40 = vld [vmem:[%s1 + $0x8] sm:$0xf]
  %v41 = vld [vmem:[%s1 + $0xc] sm:$0xf]
  %v42 = vld [vmem:[%s1 + $0x10] sm:$0xf]
  %v43 = vld [vmem:[%s1 + $0x14] sm:$0xf]
  %v44 = vld [vmem:[%s1 + $0x18] sm:$0xf]
  %v45 = vld [vmem:[%s1 + $0x1c] sm:$0xf]
  %v46 = vld [vmem:[%s1 + $0x20] sm:$0xf]
  %v47 = vld [vmem:[%s1 + $0x24] sm:$0xf]
  %v48 = vld [vmem:[%s1 + $0x28] sm:$0xf]
  %v49 = vld [vmem:[%s1 + $0x2c] sm:$0xf]
  %v50 = vld [vmem:[%s1 + $0x30] sm:$0xf]
  %v51 = vld [vmem:[%s1 + $0x34] sm:$0xf]
  %v52 = vld [vmem:[%s1 + $0x38] sm:$0xf]
  %v53 = vld [vmem:[%s1 + $0x3c] sm:$0xf]
  %v54 = vld [vmem:[%s1 + $0x40] sm:$0xf]
  %v55 = vld [vmem:[%s1 + $0x44] sm:$0xf]
  %v56 = vld [vmem:[%s1 + $0x48] sm:$0xf]
  %v57 = vld [vmem:[%s1 + $0x4c] sm:$0xf]
  %v58 = vld [vmem:[%s1 + $0x50] sm:$0xf]
  %v59 = vld [vmem:[%s1 + $0x54] sm:$0xf]
  %v60 = vld [vmem:[%s1 + $0x58] sm:$0xf]
  %v61 = vld [vmem:[%s1 + $0x5c] sm:$0xf]
  %v62 = vld [vmem:[%s1 + $0x60] sm:$0xf]
  %v63 = vld [vmem:[%s1 + $0x64] sm:$0xf]
  %v64 = vld [vmem:[%s1 + $0x68] sm:$0xf]
  %v65 = vld [vmem:[%s1 + $0x6c] sm:$0xf]
  %v66 = vld [vmem:[%s1 + $0x70] sm:$0xf]
  %v67 = vld [vmem:[%s1 + $0x74] sm:$0xf]
  %v68 = vld [vmem:[%s1 + $0x78] sm:$0xf]
  %v69 = vld [vmem:[%s1 + $0x7c] sm:$0xf]
  %v70 = vld [vmem:[%s1 + $0x80] sm:$0xf]
  %v71 = vld [vmem:[%s1 + $0x84] sm:$0xf]
  %v72 = vld [vmem:[%s1 + $0x88] sm:$0xf]
  %v73 = vld [vmem:[%s1 + $0x8c] sm:$0xf]
  %v74 = vld [vmem:[%s1 + $0x90] sm:$0xf]
  %v75 = vld [vmem:[%s1 + $0x94] sm:$0xf]
  %v76 = vld [vmem:[%s1 + $0x98] sm:$0xf]
  %v77 = vld [vmem:[%s1 + $0x9c] sm:$0xf]
  %v78 = vld [vmem:[%s1 + $0xa0] sm:$0xf]
  %v79 = vld [vmem:[%s1 + $0xa4] sm:$0xf]
  %v80 = vld [vmem:[%s1 + $0xa8] sm:$0xf]
  %v81 = vld [vmem:[%s1 + $0xac] sm:$0xf]
  %v82 = vld [vmem:[%s1 + $0xb0] sm:$0xf]
  %v83 = vld [vmem:[%s1 + $0xb4] sm:$0xf]
  %v84 = vld [vmem:[%s1 + $0xb8] sm:$0xf]
  %v85 = vld [vmem:[%s1 + $0xbc] sm:$0xf]
  %v94 = vunpack.c.l.b16 %v30
  %v95 = vunpack.c.h.b16 %v30
  %v96 = vunpack.c.l.b16 %v31
  %v97 = vunpack.c.l.b16 %v32
  %v98 = vunpack.c.h.b16 %v32
  %v99 = vunpack.c.l.b16 %v33
  %v100 = vunpack.c.l.b16 %v34
  %v101 = vunpack.c.h.b16 %v34
  %v102 = vunpack.c.l.b16 %v35
  %v103 = vunpack.c.l.b16 %v36
  %v104 = vunpack.c.h.b16 %v36
  %v105 = vunpack.c.l.b16 %v37
  %v106 = vpack.c.b16 %v97, %v94
  %v107 = vpack.c.b16 %v98, %v95
  %v108 = vpack.c.b16 %v99, %v96
  %v109 = vpack.c.b16 %v103, %v100
  %v110 = vpack.c.b16 %v104, %v101
  %v111 = vpack.c.b16 %v105, %v102
  %v166 = vunpack.c.l.b16 %v38
  %v167 = vunpack.c.l.b16 %v39
  %v168 = vunpack.c.l.b16 %v40
  %v169 = vunpack.c.l.b16 %v41
  %v170 = vunpack.c.l.b16 %v42
  %v171 = vunpack.c.l.b16 %v43
  %v172 = vunpack.c.l.b16 %v44
  %v173 = vunpack.c.l.b16 %v45
  %v174 = vunpack.c.l.b16 %v46
  %v175 = vunpack.c.l.b16 %v47
  %v176 = vunpack.c.l.b16 %v48
  %v177 = vunpack.c.l.b16 %v49
  %v178 = vunpack.c.l.b16 %v50
  %v179 = vunpack.c.l.b16 %v51
  %v180 = vunpack.c.l.b16 %v52
  %v181 = vunpack.c.l.b16 %v53
  %v182 = vunpack.c.l.b16 %v54
  %v183 = vunpack.c.l.b16 %v55
  %v184 = vunpack.c.l.b16 %v56
  %v185 = vunpack.c.l.b16 %v57
  %v186 = vunpack.c.l.b16 %v58
  %v187 = vunpack.c.l.b16 %v59
  %v188 = vunpack.c.l.b16 %v60
  %v189 = vunpack.c.l.b16 %v61
  %v190 = vunpack.c.l.b16 %v62
  %v191 = vunpack.c.l.b16 %v63
  %v192 = vunpack.c.l.b16 %v64
  %v193 = vunpack.c.l.b16 %v65
  %v194 = vunpack.c.l.b16 %v66
  %v195 = vunpack.c.l.b16 %v67
  %v196 = vunpack.c.l.b16 %v68
  %v197 = vunpack.c.l.b16 %v69
  %v198 = vunpack.c.l.b16 %v70
  %v199 = vunpack.c.l.b16 %v71
  %v200 = vunpack.c.l.b16 %v72
  %v201 = vunpack.c.l.b16 %v73
  %v202 = vunpack.c.l.b16 %v74
  %v203 = vunpack.c.l.b16 %v75
  %v204 = vunpack.c.l.b16 %v76
  %v205 = vunpack.c.l.b16 %v77
  %v206 = vunpack.c.l.b16 %v78
  %v207 = vunpack.c.l.b16 %v79
  %v208 = vunpack.c.l.b16 %v80
  %v209 = vunpack.c.l.b16 %v81
  %v210 = vunpack.c.l.b16 %v82
  %v211 = vunpack.c.l.b16 %v83
  %v212 = vunpack.c.l.b16 %v84
  %v213 = vunpack.c.l.b16 %v85
  %v214 = vpack.c.b16 %v167, %v166
  %v215 = vpack.c.b16 %v169, %v168
  %v216 = vpack.c.b16 %v171, %v170
  %v217 = vpack.c.b16 %v173, %v172
  %v218 = vpack.c.b16 %v175, %v174
  %v219 = vpack.c.b16 %v177, %v176
  %v220 = vpack.c.b16 %v179, %v178
  %v221 = vpack.c.b16 %v181, %v180
  %v222 = vpack.c.b16 %v183, %v182
  %v223 = vpack.c.b16 %v185, %v184
  %v224 = vpack.c.b16 %v187, %v186
  %v225 = vpack.c.b16 %v189, %v188
  %v226 = vpack.c.b16 %v191, %v190
  %v227 = vpack.c.b16 %v193, %v192
  %v228 = vpack.c.b16 %v195, %v194
  %v229 = vpack.c.b16 %v197, %v196
  %v230 = vpack.c.b16 %v199, %v198
  %v231 = vpack.c.b16 %v201, %v200
  %v232 = vpack.c.b16 %v203, %v202
  %v233 = vpack.c.b16 %v205, %v204
  %v234 = vpack.c.b16 %v207, %v206
  %v235 = vpack.c.b16 %v209, %v208
  %v236 = vpack.c.b16 %v211, %v210
  %v237 = vpack.c.b16 %v213, %v212
  %262 = vmatprep.subr.bf16.mxu0 0
  %263 = vmatpush1.bf16.msra.mxu0 %v214
  %264 = vmatprep.subr.bf16.mxu0 0
  %265 = vmatpush1.bf16.msra.mxu0 %v215
  %266 = vmatprep.subr.bf16.mxu0 0
  %267 = vmatpush1.bf16.msra.mxu0 %v216
  %268 = vmatprep.subr.bf16.mxu0 0
  %269 = vmatpush1.bf16.msra.mxu0 %v217
  %270 = vmatprep.subr.bf16.mxu0 0
  %271 = vmatpush1.bf16.msra.mxu0 %v218
  %272 = vmatprep.subr.bf16.mxu0 0
  %273 = vmatpush1.bf16.msra.mxu0 %v219
  %274 = vmatprep.subr.bf16.mxu0 0
  %275 = vmatpush1.bf16.msra.mxu0 %v220
  %276 = vmatprep.subr.bf16.mxu0 0
  %277 = vmatpush1.bf16.msra.mxu0 %v221
  %278 = vmatprep.subr.bf16.mxu0 0
  %279 = vmatpush1.bf16.msra.mxu0 %v222
  %280 = vmatprep.subr.bf16.mxu0 0
  %281 = vmatpush1.bf16.msra.mxu0 %v223
  %282 = vmatprep.subr.bf16.mxu0 0
  %283 = vmatpush1.bf16.msra.mxu0 %v224
  %284 = vmatprep.subr.bf16.mxu0 0
  %285 = vmatpush1.bf16.msra.mxu0 %v225
  %286 = vmatprep.subr.bf16.mxu0 0
  %287 = vmatpush1.bf16.msra.mxu0 %v226
  %288 = vmatprep.subr.bf16.mxu0 0
  %289 = vmatpush1.bf16.msra.mxu0 %v227
  %290 = vmatprep.subr.bf16.mxu0 0
  %291 = vmatpush1.bf16.msra.mxu0 %v228
  %292 = vmatprep.subr.bf16.mxu0 0
  %293 = vmatpush1.bf16.msra.mxu0 %v229
  %294 = vmatprep.mubr.bf16.mxu0 %v107
  %295 = vmatmul.mubr.bf16.gmra.mrb[0].mxu0 %v106
  %v296 = vpop.f32.mrb[0].mxu0
  %v297 = vadd.f32 0.0, %v296
  %v298 = vpop.f32.mrb[0].mxu0
  %v299 = vpop.f32.mrb[0].mxu0
  %v300 = vadd.f32 0.0, %v299
  %v301 = vpop.f32.mrb[0].mxu0
  %302 = vmatprep.mubr.bf16.mxu0 %v110
  %303 = vmatmul.mubr.bf16.gmra.mrb[0].mxu0 %v109
  %v304 = vpop.f32.mrb[0].mxu0
  %v305 = vadd.f32 0.0, %v304
  %v306 = vpop.f32.mrb[0].mxu0
  %v307 = vpop.f32.mrb[0].mxu0
  %v308 = vadd.f32 0.0, %v307
  %v309 = vpop.f32.mrb[0].mxu0
  %310 = vdwg.mxu0
  %311 = vmatprep.subr.bf16.mxu0 0
  %312 = vmatpush1.bf16.msra.mxu0 %v230
  %313 = vmatprep.subr.bf16.mxu0 0
  %314 = vmatpush1.bf16.msra.mxu0 %v231
  %315 = vmatprep.subr.bf16.mxu0 0
  %316 = vmatpush1.bf16.msra.mxu0 %v232
  %317 = vmatprep.subr.bf16.mxu0 0
  %318 = vmatpush1.bf16.msra.mxu0 %v233
  %319 = vmatprep.subr.bf16.mxu0 0
  %320 = vmatpush1.bf16.msra.mxu0 %v234
  %321 = vmatprep.subr.bf16.mxu0 0
  %322 = vmatpush1.bf16.msra.mxu0 %v235
  %323 = vmatprep.subr.bf16.mxu0 0
  %324 = vmatpush1.bf16.msra.mxu0 %v236
  %325 = vmatprep.subr.bf16.mxu0 0
  %326 = vmatpush1.bf16.msra.mxu0 %v237
  %327 = vmatprep.subr.bf16.mxu0 0
  %328 = vmatpush1.bf16.msra.mxu0 0
  %329 = vmatprep.subr.bf16.mxu0 0
  %330 = vmatpush1.bf16.msra.mxu0 0
  %331 = vmatprep.subr.bf16.mxu0 0
  %332 = vmatpush1.bf16.msra.mxu0 0
  %333 = vmatprep.subr.bf16.mxu0 0
  %334 = vmatpush1.bf16.msra.mxu0 0
  %335 = vmatprep.subr.bf16.mxu0 0
  %336 = vmatpush1.bf16.msra.mxu0 0
  %337 = vmatprep.subr.bf16.mxu0 0
  %338 = vmatpush1.bf16.msra.mxu0 0
  %339 = vmatprep.subr.bf16.mxu0 0
  %340 = vmatpush1.bf16.msra.mxu0 0
  %341 = vmatprep.subr.bf16.mxu0 0
  %342 = vmatpush1.bf16.msra.mxu0 0
  %343 = vmatprep.mubr.bf16.mxu0 0
  %344 = vmatmul.mubr.bf16.gmra.mrb[0].mxu0 %v108
  %v345 = vpop.f32.mrb[0].mxu0
  %v346 = vadd.f32 %v297, %v345
  %v347 = vpop.f32.mrb[0].mxu0
  %v348 = vpop.f32.mrb[0].mxu0
  %v349 = vadd.f32 %v300, %v348
  %v350 = vpop.f32.mrb[0].mxu0
  %351 = vmatprep.mubr.bf16.mxu0 0
  %352 = vmatmul.mubr.bf16.gmra.mrb[0].mxu0 %v111
  %v353 = vpop.f32.mrb[0].mxu0
  %v354 = vadd.f32 %v305, %v353
  %v355 = vpop.f32.mrb[0].mxu0
  %v356 = vpop.f32.mrb[0].mxu0
  %v357 = vadd.f32 %v308, %v356
  %v358 = vpop.f32.mrb[0].mxu0
  %359 = vdwg.mxu0
  %v360 = vadd.f32 %v26, %v346
  %v361 = vadd.f32 %v27, %v349
  %v362 = vadd.f32 %v28, %v354
  %v363 = vadd.f32 %v29, %v357
  %364 = vst [vmem:[#allocation2] sm:$0xff] %v360
  %365 = vst [vmem:[#allocation2 + $0x8] sm:$0xff] %v361
  %366 = vst [vmem:[#allocation2 + $0x10] sm:$0xff] %v362
  %367 = vst [vmem:[#allocation2 + $0x18] sm:$0xff] %v363
  // Predicated region
  $region22: #{network_forward.17} parent=0 // pred_check
    %p368 = pneg %p18
  $region23: #{network_forward.17} parent=0 // pred_check_branch
    %370 = sbr.rel (%p368) target = $region25
  $region24: #{network_forward.17} parent=0 // pred_region
    %v371 = vld [vmem:[#allocation2] sm:$0xff]
    %v372 = vld [vmem:[#allocation2 + $0x8] sm:$0xff]
    %v373 = vld [vmem:[#allocation2 + $0x10] sm:$0xff]
    %v374 = vld [vmem:[#allocation2 + $0x18] sm:$0xff]
    %v375 = vld [vmem:[%s2] sm:$0x1]
    %v377 = vlaneseq
    %v378 = vshrl.u32 %v377, 7
    %v379 = vsub.s32 0, %v378
    %v380 = vrot.slane %v375, %v379
    %v382 = vadd.f32 %v371, %v380
    %v383 = vadd.f32 %v372, %v380
    %v384 = vadd.f32 %v373, %v380
    %v385 = vadd.f32 %v374, %v380
    %v386 = vld [vmem:[%s3] sm:$0xff]
    %v387 = vld [vmem:[%s3 + $0x8] sm:$0xff]
    %v388 = vld [vmem:[%s3 + $0x10] sm:$0xff]
    %v389 = vld [vmem:[%s3 + $0x18] sm:$0xff]
    %v390 = vadd.f32 %v382, %v386
    %v391 = vadd.f32 %v383, %v387
    %v392 = vadd.f32 %v384, %v388
    %v393 = vadd.f32 %v385, %v389
    %394 = vst [vmem:[%s4] sm:$0xff] %v390
    %395 = vst [vmem:[%s4 + $0x8] sm:$0xff] %v391
    %396 = vst [vmem:[%s4 + $0x10] sm:$0xff] %v392
    %397 = vst [vmem:[%s4 + $0x18] sm:$0xff] %v393
  $region25: #{network_forward.17} parent=0 // pred_fallthru
    _
  // Predicated region
  $region26: #{network_forward.17} parent=0 // pred_check
    _
  $region27: #{network_forward.17} parent=0 // pred_check_branch
    %399 = sbr.rel (0) target = $region29
  $region28: #{network_forward.17} parent=0 // pred_region
    _
  $region29: #{network_forward.17} parent=0 // pred_fallthru
    _
  // Predicated region
  $region30: #{network_forward.17} parent=0 // pred_check
    _
  $region31: #{network_forward.17} parent=0 // pred_check_branch
    %401 = sbr.rel (0) target = $region33
  $region32: #{network_forward.17} parent=0 // pred_region
    _
  $region33: #{network_forward.17} parent=0 // pred_fallthru
    _

</llo_original>
